<compile_context>
chip_gen: v7x
topology: tpu7x:2x2x1
jax: 0.10.0
libtpu: 0.0.40
codegen_flags: <defaults>
</compile_context>

<pallas_src>
import math
import functools

import jax
import jax.numpy as jnp
from jax import lax
from jax.experimental import pallas as pl
from jax.experimental.pallas import tpu as pltpu


_VMEM_LIMIT = 64 * 1024 * 1024   # scoped VMEM ceiling (<= physical on v7x)
_TM, _TN, _TK = 256, 256, 512    # preferred tile sizes (aligned to MXU / (8,128) tiles)


def _fit_tile(dim, pref, align):
    """Largest tile <= pref that divides dim and is a multiple of `align`,
    falling back to the full dim (always legal per the (8,128) rule)."""
    if dim <= pref:
        return dim
    t = (pref // align) * align
    while t >= align:
        if dim % t == 0:
            return t
        t -= align
    return dim  # TODO(synk): non-divisible dims (e.g. odd vocab) fall back to untiled.


def _gelu_tanh(x):
    # GELU(approximate='tanh'), identical formula to PyTorch.
    c = math.sqrt(2.0 / math.pi)
    return 0.5 * x * (1.0 + jnp.tanh(c * (x + 0.044715 * x * x * x)))


# ----------------------------- tiled linear (+residual) ---------------------

def _linear_kernel(x_ref, w_ref, b_ref, *rest, activation, has_residual):
    if has_residual:
        res_ref, o_ref, acc_ref = rest
    else:
        o_ref, acc_ref = rest

    @pl.when(pl.program_id(2) == 0)
    def _():
        acc_ref[...] = jnp.zeros_like(acc_ref)

    acc_ref[...] += jnp.dot(
        x_ref[...].astype(jnp.bfloat16),
        w_ref[...].astype(jnp.bfloat16),
        preferred_element_type=jnp.float32)

    @pl.when(pl.program_id(2) == pl.num_programs(2) - 1)
    def _():
        y = acc_ref[...] + b_ref[...]
        if activation == "gelu_tanh":
            y = _gelu_tanh(y)
        if has_residual:
            y = y + res_ref[...].astype(jnp.float32)
        o_ref[...] = y.astype(o_ref.dtype)


def linear(x, w, b, *, activation=None, residual=None):
    """y = act(x @ w + b) (+ residual). w: (K, N) stored bf16; accumulate in f32."""
    orig_shape = x.shape
    K = orig_shape[-1]
    M = int(math.prod(orig_shape[:-1]))
    N = w.shape[1]
    x2 = x.reshape(M, K)
    b2 = b.reshape(1, N).astype(jnp.float32)

    tm = _fit_tile(M, _TM, 8)
    tn = _fit_tile(N, _TN, 128)
    tk = _fit_tile(K, _TK, 128)
    grid = (M // tm, N // tn, K // tk)

    in_specs = [
        pl.BlockSpec((tm, tk), lambda i, j, k: (i, k)),
        pl.BlockSpec((tk, tn), lambda i, j, k: (k, j)),
        pl.BlockSpec((1, tn), lambda i, j, k: (0, j)),
    ]
    inputs = [x2, w, b2]
    if residual is not None:
        # index is invariant in k -> pipeline fetches this block only once per (i, j).
        in_specs.append(pl.BlockSpec((tm, tn), lambda i, j, k: (i, j)))
        inputs.append(residual.reshape(M, N))

    out = pl.pallas_call(
        functools.partial(_linear_kernel, activation=activation,
                          has_residual=residual is not None),
        out_shape=jax.ShapeDtypeStruct((M, N), x.dtype),
        grid=grid,
        in_specs=in_specs,
        out_specs=pl.BlockSpec((tm, tn), lambda i, j, k: (i, j)),
        scratch_shapes=[pltpu.VMEM((tm, tn), jnp.float32)],
        compiler_params=pltpu.CompilerParams(
            dimension_semantics=("parallel", "parallel", "arbitrary"),
            vmem_limit_bytes=_VMEM_LIMIT),
    )(*inputs)
    return out.reshape(*orig_shape[:-1], N)


# ----------------------------- fused LayerNorm + linear ---------------------

def _ln_linear_kernel(x_ref, g_ref, beta_ref, w_ref, b_ref, o_ref, *, activation):
    x = x_ref[...].astype(jnp.float32)
    mu = jnp.mean(x, axis=-1, keepdims=True)
    var = jnp.mean(jnp.square(x - mu), axis=-1, keepdims=True)
    h = (x - mu) * lax.rsqrt(var + 1e-5) * g_ref[...] + beta_ref[...]
    y = jnp.dot(h.astype(jnp.bfloat16), w_ref[...].astype(jnp.bfloat16),
                preferred_element_type=jnp.float32) + b_ref[...]
    if activation == "gelu_tanh":
        y = _gelu_tanh(y)
    o_ref[...] = y.astype(o_ref.dtype)


def ln_linear(x, gamma, beta, w, b, *, activation=None):
    """y = act(LayerNorm(x) @ w + b), fused; full C as the contraction dim."""
    orig_shape = x.shape
    C = orig_shape[-1]
    M = int(math.prod(orig_shape[:-1]))
    N = w.shape[1]
    x2 = x.reshape(M, C)
    tm = _fit_tile(M, _TM, 8)
    tn = _fit_tile(N, _TN, 128)
    grid = (M // tm, N // tn)
    out = pl.pallas_call(
        functools.partial(_ln_linear_kernel, activation=activation),
        out_shape=jax.ShapeDtypeStruct((M, N), x.dtype),
        grid=grid,
        in_specs=[
            pl.BlockSpec((tm, C), lambda i, j: (i, 0)),
            pl.BlockSpec((1, C), lambda i, j: (0, 0)),
            pl.BlockSpec((1, C), lambda i, j: (0, 0)),
            pl.BlockSpec((C, tn), lambda i, j: (0, j)),
            pl.BlockSpec((1, tn), lambda i, j: (0, j)),
        ],
        out_specs=pl.BlockSpec((tm, tn), lambda i, j: (i, j)),
        compiler_params=pltpu.CompilerParams(
            dimension_semantics=("parallel", "parallel"),
            vmem_limit_bytes=_VMEM_LIMIT),
    )(x2, gamma.reshape(1, C), beta.reshape(1, C), w,
      b.reshape(1, N).astype(jnp.float32))
    return out.reshape(*orig_shape[:-1], N)


# ----------------------------- fused MLP block -------------------------------

def _mlp_kernel(x_ref, g_ref, beta_ref, wfc_ref, bfc_ref, wp_ref, bp_ref, o_ref):
    x = x_ref[...].astype(jnp.float32)
    mu = jnp.mean(x, axis=-1, keepdims=True)
    var = jnp.mean(jnp.square(x - mu), axis=-1, keepdims=True)
    h = (x - mu) * lax.rsqrt(var + 1e-5) * g_ref[...] + beta_ref[...]
    a = jnp.dot(h.astype(jnp.bfloat16), wfc_ref[...].astype(jnp.bfloat16),
                preferred_element_type=jnp.float32) + bfc_ref[...]
    a = _gelu_tanh(a)
    y = jnp.dot(a.astype(jnp.bfloat16), wp_ref[...].astype(jnp.bfloat16),
                preferred_element_type=jnp.float32) + bp_ref[...]
    o_ref[...] = (y + x).astype(o_ref.dtype)


def mlp_block(x, gamma, beta, w_fc, b_fc, w_proj, b_proj):
    """x + proj(gelu(fc(LayerNorm(x)))); the (tm, 4C) intermediate never hits HBM.

    Weight block indices are grid-invariant so they are DMA'd to VMEM only once.
    TODO(synk): for very large C (weights > VMEM) fall back to three separate
    tiled linear calls instead of this fully-fused path.
    """
    B, T, C = x.shape
    M = B * T
    F = w_fc.shape[1]
    x2 = x.reshape(M, C)
    tm = _fit_tile(M, _TM, 8)
    grid = (M // tm,)
    out = pl.pallas_call(
        _mlp_kernel,
        out_shape=jax.ShapeDtypeStruct((M, C), x.dtype),
        grid=grid,
        in_specs=[
            pl.BlockSpec((tm, C), lambda i: (i, 0)),
            pl.BlockSpec((1, C), lambda i: (0, 0)),
            pl.BlockSpec((1, C), lambda i: (0, 0)),
            pl.BlockSpec((C, F), lambda i: (0, 0)),
            pl.BlockSpec((1, F), lambda i: (0, 0)),
            pl.BlockSpec((F, C), lambda i: (0, 0)),
            pl.BlockSpec((1, C), lambda i: (0, 0)),
        ],
        out_specs=pl.BlockSpec((tm, C), lambda i: (i, 0)),
        compiler_params=pltpu.CompilerParams(
            dimension_semantics=("parallel",),
            vmem_limit_bytes=_VMEM_LIMIT),
    )(x2, gamma.reshape(1, C), beta.reshape(1, C),
      w_fc, b_fc.reshape(1, F).astype(jnp.float32),
      w_proj, b_proj.reshape(1, C).astype(jnp.float32))
    return out.reshape(B, T, C)


# ----------------------------- fused ln_f + tied lm_head ---------------------

def _ln_lm_head_kernel(x_ref, g_ref, beta_ref, w_ref, o_ref):
    x = x_ref[...].astype(jnp.float32)
    mu = jnp.mean(x, axis=-1, keepdims=True)
    var = jnp.mean(jnp.square(x - mu), axis=-1, keepdims=True)
    h = (x - mu) * lax.rsqrt(var + 1e-5) * g_ref[...] + beta_ref[...]
    # Contract h's last dim against wte's last dim (wte: (V, C)) — no wrapper-side
    # transpose of the tied embedding and no zero-bias add.
    o_ref[...] = lax.dot_general(
        h.astype(jnp.bfloat16), w_ref[...].astype(jnp.bfloat16),
        dimension_numbers=(((1,), (1,)), ((), ())),
        preferred_element_type=jnp.float32).astype(o_ref.dtype)


def ln_lm_head(x, gamma, beta, wte):
    B, T, C = x.shape
    M = B * T
    V = wte.shape[0]
    x2 = x.reshape(M, C)
    tm = _fit_tile(M, _TM, 8)
    tv = _fit_tile(V, _TN, 128)
    grid = (M // tm, V // tv)
    out = pl.pallas_call(
        _ln_lm_head_kernel,
        out_shape=jax.ShapeDtypeStruct((M, V), x.dtype),
        grid=grid,
        in_specs=[
            pl.BlockSpec((tm, C), lambda i, j: (i, 0)),
            pl.BlockSpec((1, C), lambda i, j: (0, 0)),
            pl.BlockSpec((1, C), lambda i, j: (0, 0)),
            pl.BlockSpec((tv, C), lambda i, j: (j, 0)),
        ],
        out_specs=pl.BlockSpec((tm, tv), lambda i, j: (i, j)),
        compiler_params=pltpu.CompilerParams(
            dimension_semantics=("parallel", "parallel"),
            vmem_limit_bytes=_VMEM_LIMIT),
    )(x2, gamma.reshape(1, C), beta.reshape(1, C), wte)
    return out.reshape(B, T, V)


# ----------------------------- multi-head attention --------------------------

def _attn_kernel(q_ref, k_ref, v_ref, o_ref, *, causal, scale):
    q = q_ref[...].astype(jnp.float32) * scale          # (h, Tq, hd), scale folded into q
    k = k_ref[...]
    v = v_ref[...]
    s = jnp.einsum("hqd,hkd->hqk", q.astype(jnp.bfloat16), k.astype(jnp.bfloat16),
                   preferred_element_type=jnp.float32)  # batched over heads, no k.T
    if causal:
        # 2-D mask broadcast over the head axis (cheaper than a 3-D iota pair).
        row = lax.broadcasted_iota(jnp.int32, (s.shape[1], s.shape[2]), 0)
        col = lax.broadcasted_iota(jnp.int32, (s.shape[1], s.shape[2]), 1)
        s = jnp.where((col <= row)[None, :, :], s, -jnp.inf)
    m = jnp.max(s, axis=-1, keepdims=True)
    p = jnp.exp(s - m)
    denom = jnp.sum(p, axis=-1, keepdims=True)
    p = p * pl.reciprocal(denom, approx=True)           # EUP, not a VPU divide
    o = jnp.einsum("hqk,hkd->hqd", p.astype(jnp.bfloat16), v.astype(jnp.bfloat16),
                   preferred_element_type=jnp.float32)
    o_ref[...] = o.astype(o_ref.dtype)


def multihead_attention(q, k, v, n_head, *, causal):
    """q: (B, Tq, C); k, v: (B, Tk, C) -> (B, Tq, C). Heads batched per grid step."""
    B, Tq, C = q.shape
    Tk = k.shape[1]
    hd = C // n_head
    scale = 1.0 / math.sqrt(hd)

    def to_heads(t, T):
        return t.reshape(B, T, n_head, hd).transpose(0, 2, 1, 3)  # (B, H, T, hd)

    qh, kh, vh = to_heads(q, Tq), to_heads(k, Tk), to_heads(v, Tk)

    # Batch as many heads per step as fit an ~8 MiB VMEM budget. Per head we need
    # the f32 score matrix plus q/k/v/out blocks (double-buffered by the pipeline).
    # TODO(synk): switch to flash-style Tk tiling (online softmax) for long sequences.
    budget = 8 * 1024 * 1024
    bytes_per_head = (Tq * Tk * 4                       # scores (f32)
                      + 2 * (Tq + 2 * Tk + Tq) * hd * 4)  # q/k/v/out, 2x buffered
    hpg = max(1, min(n_head, budget // max(1, bytes_per_head)))
    while n_head % hpg:
        hpg -= 1
    grid = (B, n_head // hpg)

    out = pl.pallas_call(
        functools.partial(_attn_kernel, causal=causal, scale=scale),
        out_shape=jax.ShapeDtypeStruct((B, n_head, Tq, hd), q.dtype),
        grid=grid,
        in_specs=[
            pl.BlockSpec((None, hpg, Tq, hd), lambda b, g: (b, g, 0, 0)),
            pl.BlockSpec((None, hpg, Tk, hd), lambda b, g: (b, g, 0, 0)),
            pl.BlockSpec((None, hpg, Tk, hd), lambda b, g: (b, g, 0, 0)),
        ],
        out_specs=pl.BlockSpec((None, hpg, Tq, hd), lambda b, g: (b, g, 0, 0)),
        compiler_params=pltpu.CompilerParams(
            dimension_semantics=("parallel", "parallel"),
            vmem_limit_bytes=_VMEM_LIMIT),
    )(qh, kh, vh)
    return out.transpose(0, 2, 1, 3).reshape(B, Tq, C)


# ----------------------------- model (glue) ----------------------------------

def block_forward(p, x, encoder_embd, n_head):
    B, T, C = x.shape

    # --- causal self-attention: x = x + c_proj(attn(ln_1(x))) ---
    qkv = ln_linear(x, p["ln1_g"], p["ln1_b"], p["attn_w"], p["attn_b"])     # (B,T,3C)
    att = multihead_attention(qkv[..., :C], qkv[..., C:2 * C], qkv[..., 2 * C:],
                              n_head, causal=True)
    x = linear(att, p["attn_proj_w"], p["attn_proj_b"], residual=x)

    # --- cross attention: q from ln_2(x); k,v from raw encoder_embd (per torch) ---
    q_dec = ln_linear(x, p["ln2_g"], p["ln2_b"], p["xattn_wq"], p["xattn_bq"])   # (B,T,C)
    kv_enc = linear(encoder_embd, p["xattn_wkv"], p["xattn_bkv"])                # (B,Te,2C)
    xatt = multihead_attention(q_dec, kv_enc[..., :C], kv_enc[..., C:],
                               n_head, causal=False)
    x = linear(xatt, p["xattn_proj_w"], p["xattn_proj_b"], residual=x)

    # --- MLP: ln_3 + fc + gelu + proj + residual fused in one kernel ---
    x = mlp_block(x, p["ln3_g"], p["ln3_b"], p["fc_w"], p["fc_b"],
                  p["mlp_proj_w"], p["mlp_proj_b"])
    return x


def decoder_forward(params, tokens, encoder_embd, *, block_size, n_head):
    B, T_in = tokens.shape
    T = min(T_in, block_size)
    tokens = tokens[:, :T]
    pos = jnp.arange(T, dtype=jnp.int32)
    # peft == 'none': prefix embeddings are never consumed, so they are not computed.
    x = params["wte"][tokens] + params["wpe"][pos][None, :, :]
    for blk in params["blocks"]:
        x = block_forward(blk, x, encoder_embd, n_head)
    # lm_head weight is tied to wte (no bias); ln_f fused into the lm_head kernel.
    return ln_lm_head(x, params["ln_f_g"], params["ln_f_b"], params["wte"])


# ----------------------------- param init ------------------------------------

def init_params(key, *, n_embd, n_head, n_layer, block_size, vocab_size, prefix_len):
    def nrm(k, shape, scale=0.02, dtype=jnp.float32):
        return (scale * jax.random.normal(k, shape)).astype(dtype)

    C = n_embd
    wdt = jnp.bfloat16   # matmul weights stored bf16; f32 accumulation in kernels
    keys = iter(jax.random.split(key, 4 + n_layer * 12))
    params = {
        "wte": nrm(next(keys), (vocab_size, C)),
        "wpe": nrm(next(keys), (block_size, C)),
        "pe": nrm(next(keys), (prefix_len, C)),   # parity with the torch module; unused
        "ln_f_g": jnp.ones((C,), jnp.float32),
        "ln_f_b": jnp.zeros((C,), jnp.float32),
        "blocks": [],
    }
    for _ in range(n_layer):
        xattn_w = nrm(next(keys), (C, 3 * C), dtype=wdt)
        xattn_b = nrm(next(keys), (3 * C,))
        blk = {
            "ln1_g": jnp.ones((C,), jnp.float32), "ln1_b": jnp.zeros((C,), jnp.float32),
            "ln2_g": jnp.ones((C,), jnp.float32), "ln2_b": jnp.zeros((C,), jnp.float32),
            "ln3_g": jnp.ones((C,), jnp.float32), "ln3_b": jnp.zeros((C,), jnp.float32),
            "attn_w": nrm(next(keys), (C, 3 * C), dtype=wdt),
            "attn_b": nrm(next(keys), (3 * C,)),
            "attn_proj_w": nrm(next(keys), (C, C), dtype=wdt),
            "attn_proj_b": nrm(next(keys), (C,)),
            # cross-attn c_attn split once: decoder only needs Q, encoder only K/V
            "xattn_wq": xattn_w[:, :C], "xattn_bq": xattn_b[:C],
            "xattn_wkv": xattn_w[:, C:], "xattn_bkv": xattn_b[C:],
            "xattn_proj_w": nrm(next(keys), (C, C), dtype=wdt),
            "xattn_proj_b": nrm(next(keys), (C,)),
            "fc_w": nrm(next(keys), (C, 4 * C), dtype=wdt),
            "fc_b": nrm(next(keys), (4 * C,)),
            "mlp_proj_w": nrm(next(keys), (4 * C, C), dtype=wdt),
            "mlp_proj_b": nrm(next(keys), (C,)),
        }
        params["blocks"].append(blk)
    return params


# ------------------------------- main -----------------------------------------

if __name__ == "__main__":
    cfg = dict(n_embd=32, n_head=4, n_layer=2, block_size=8,
               vocab_size=64, prefix_len=4)

    params = init_params(jax.random.PRNGKey(1), **cfg)

    key = jax.random.PRNGKey(0)
    k_tok, k_enc = jax.random.split(key)
    B, T, T_enc = 2, 8, 8
    tokens = jax.random.randint(k_tok, (B, T), 0, cfg["vocab_size"], dtype=jnp.int32)
    encoder_embd = jax.random.normal(k_enc, (B, T_enc, cfg["n_embd"]), dtype=jnp.float32)

    fwd = jax.jit(functools.partial(decoder_forward,
                                    block_size=cfg["block_size"],
                                    n_head=cfg["n_head"]))

    logits = fwd(params, tokens, encoder_embd)
    jax.block_until_ready(logits)
    assert logits.shape == (B, T, cfg["vocab_size"]), logits.shape
    # TODO(synk): torch.load checkpoint restore has no Pallas equivalent; weights are
    # deterministically initialized in-script instead.
    print("KERNEL_OK")
</pallas_src>

<mosaic_0001>
module attributes {stable_mosaic.version = 11 : i64} {
  func.func @_ln_linear_kernel(%arg0: i32, %arg1: i32, %arg2: memref<16x32xf32, #tpu.memory_space<vmem>>, %arg3: memref<1x32xf32, #tpu.memory_space<vmem>>, %arg4: memref<1x32xf32, #tpu.memory_space<vmem>>, %arg5: memref<32x96xbf16, #tpu.memory_space<vmem>>, %arg6: memref<1x96xf32, #tpu.memory_space<vmem>>, %arg7: memref<16x96xf32, #tpu.memory_space<vmem>>) attributes {dimension_semantics = [#tpu.dimension_semantics<parallel>, #tpu.dimension_semantics<parallel>], iteration_bounds = array<i64: 1, 1>, scalar_prefetch = 0 : i64, scratch_operands = 0 : i64, tpu.core_type = #tpu.core_type<tc>, window_params = [{transform_indices = @transform_0, window_bounds = array<i64: 16, 32>}, {pipeline_mode = #tpu.pipeline_mode<synchronous>, transform_indices = @transform_1, window_bounds = array<i64: 1, 32>}, {pipeline_mode = #tpu.pipeline_mode<synchronous>, transform_indices = @transform_2, window_bounds = array<i64: 1, 32>}, {transform_indices = @transform_3, window_bounds = array<i64: 32, 96>}, {transform_indices = @transform_4, window_bounds = array<i64: 1, 96>}, {transform_indices = @transform_5, window_bounds = array<i64: 16, 96>}]} {
    %c0 = arith.constant 0 : index
    %c0_0 = arith.constant 0 : index
    %0 = vector.load %arg2[%c0, %c0_0] : memref<16x32xf32, #tpu.memory_space<vmem>>, vector<16x32xf32>
    %cst = arith.constant dense<0.000000e+00> : vector<16xf32>
    %1 = vector.multi_reduction <add>, %0, %cst [1] : vector<16x32xf32> to vector<16xf32>
    %2 = vector.shape_cast %1 : vector<16xf32> to vector<16x1xf32>
    %cst_1 = arith.constant 3.200000e+01 : f32
    %3 = vector.broadcast %cst_1 : f32 to vector<16x1xf32>
    %4 = arith.divf %2, %3 : vector<16x1xf32>
    %5 = vector.broadcast %4 : vector<16x1xf32> to vector<16x32xf32>
    %6 = arith.subf %0, %5 : vector<16x32xf32>
    %7 = arith.mulf %6, %6 : vector<16x32xf32>
    %cst_2 = arith.constant dense<0.000000e+00> : vector<16xf32>
    %8 = vector.multi_reduction <add>, %7, %cst_2 [1] : vector<16x32xf32> to vector<16xf32>
    %9 = vector.shape_cast %8 : vector<16xf32> to vector<16x1xf32>
    %cst_3 = arith.constant 3.200000e+01 : f32
    %10 = vector.broadcast %cst_3 : f32 to vector<16x1xf32>
    %11 = arith.divf %9, %10 : vector<16x1xf32>
    %12 = vector.broadcast %4 : vector<16x1xf32> to vector<16x32xf32>
    %13 = arith.subf %0, %12 : vector<16x32xf32>
    %cst_4 = arith.constant 9.99999974E-6 : f32
    %14 = vector.broadcast %cst_4 : f32 to vector<16x1xf32>
    %15 = arith.addf %11, %14 : vector<16x1xf32>
    %16 = math.rsqrt %15 : vector<16x1xf32>
    %17 = vector.broadcast %16 : vector<16x1xf32> to vector<16x32xf32>
    %18 = arith.mulf %13, %17 : vector<16x32xf32>
    %c0_5 = arith.constant 0 : index
    %c0_6 = arith.constant 0 : index
    %19 = vector.load %arg3[%c0_5, %c0_6] : memref<1x32xf32, #tpu.memory_space<vmem>>, vector<1x32xf32>
    %20 = vector.broadcast %19 : vector<1x32xf32> to vector<16x32xf32>
    %21 = arith.mulf %18, %20 : vector<16x32xf32>
    %c0_7 = arith.constant 0 : index
    %c0_8 = arith.constant 0 : index
    %22 = vector.load %arg4[%c0_7, %c0_8] : memref<1x32xf32, #tpu.memory_space<vmem>>, vector<1x32xf32>
    %23 = vector.broadcast %22 : vector<1x32xf32> to vector<16x32xf32>
    %24 = arith.addf %21, %23 : vector<16x32xf32>
    %25 = arith.truncf %24 : vector<16x32xf32> to vector<16x32xbf16>
    %c0_9 = arith.constant 0 : index
    %c0_10 = arith.constant 0 : index
    %26 = vector.load %arg5[%c0_9, %c0_10] : memref<32x96xbf16, #tpu.memory_space<vmem>>, vector<32x96xbf16>
    %cst_11 = arith.constant dense<0.000000e+00> : vector<16x96xf32>
    %27 = tpu.matmul %25, %26, %cst_11 {dimension_numbers = #tpu.dot_dimension_numbers<[1], [0], [0], [1], [0, 0, 1, 1], [], []>} : vector<16x32xbf16>, vector<32x96xbf16>, vector<16x96xf32> -> vector<16x96xf32>
    %c0_12 = arith.constant 0 : index
    %c0_13 = arith.constant 0 : index
    %28 = vector.load %arg6[%c0_12, %c0_13] : memref<1x96xf32, #tpu.memory_space<vmem>>, vector<1x96xf32>
    %29 = vector.broadcast %28 : vector<1x96xf32> to vector<16x96xf32>
    %30 = arith.addf %27, %29 : vector<16x96xf32>
    %c0_14 = arith.constant 0 : index
    %c0_15 = arith.constant 0 : index
    %31 = vector.load %arg7[%c0_14, %c0_15] : memref<16x96xf32, #tpu.memory_space<vmem>>, vector<16x96xf32>
    tpu.vector_store %arg7[%c0_14, %c0_15], %30 {strides = array<i32>} : memref<16x96xf32, #tpu.memory_space<vmem>>, vector<16x96xf32>,
    return
  }
  func.func @transform_0(%arg0: i32, %arg1: i32) -> (i32, i32) {
    %c0_i32 = arith.constant 0 : i32
    %c0_i32_0 = arith.constant 0 : i32
    return %arg0, %c0_i32 : i32, i32
  }
  func.func @transform_1(%arg0: i32, %arg1: i32) -> (i32, i32) {
    %c0_i32 = arith.constant 0 : i32
    %c0_i32_0 = arith.constant 0 : i32
    %c0_i32_1 = arith.constant 0 : i32
    return %c0_i32, %c0_i32_0 : i32, i32
  }
  func.func @transform_2(%arg0: i32, %arg1: i32) -> (i32, i32) {
    %c0_i32 = arith.constant 0 : i32
    %c0_i32_0 = arith.constant 0 : i32
    %c0_i32_1 = arith.constant 0 : i32
    return %c0_i32, %c0_i32_0 : i32, i32
  }
  func.func @transform_3(%arg0: i32, %arg1: i32) -> (i32, i32) {
    %c0_i32 = arith.constant 0 : i32
    %c0_i32_0 = arith.constant 0 : i32
    return %c0_i32, %arg1 : i32, i32
  }
  func.func @transform_4(%arg0: i32, %arg1: i32) -> (i32, i32) {
    %c0_i32 = arith.constant 0 : i32
    %c0_i32_0 = arith.constant 0 : i32
    return %c0_i32, %arg1 : i32, i32
  }
  func.func @transform_5(%arg0: i32, %arg1: i32) -> (i32, i32) {
    %c0_i32 = arith.constant 0 : i32
    return %arg0, %arg1 : i32, i32
  }
}

module attributes {stable_mosaic.version = 11 : i64} {
  func.func @_attn_kernel(%arg0: i32, %arg1: i32, %arg2: memref<1x4x8x8xf32, #tpu.memory_space<vmem>>, %arg3: memref<1x4x8x8xf32, #tpu.memory_space<vmem>>, %arg4: memref<1x4x8x8xf32, #tpu.memory_space<vmem>>, %arg5: memref<1x4x8x8xf32, #tpu.memory_space<vmem>>) attributes {dimension_semantics = [#tpu.dimension_semantics<parallel>, #tpu.dimension_semantics<parallel>], iteration_bounds = array<i64: 2, 1>, scalar_prefetch = 0 : i64, scratch_operands = 0 : i64, tpu.core_type = #tpu.core_type<tc>, window_params = [{transform_indices = @transform_0, window_bounds = array<i64: 1, 4, 8, 8>}, {transform_indices = @transform_1, window_bounds = array<i64: 1, 4, 8, 8>}, {transform_indices = @transform_2, window_bounds = array<i64: 1, 4, 8, 8>}, {transform_indices = @transform_3, window_bounds = array<i64: 1, 4, 8, 8>}]} {
    %c0 = arith.constant 0 : index
    %c0_0 = arith.constant 0 : index
    %c0_1 = arith.constant 0 : index
    %c0_2 = arith.constant 0 : index
    %0 = vector.load %arg2[%c0, %c0_0, %c0_1, %c0_2] : memref<1x4x8x8xf32, #tpu.memory_space<vmem>>, vector<1x4x8x8xf32>
    %1 = vector.shape_cast %0 : vector<1x4x8x8xf32> to vector<4x8x8xf32>
    %cst = arith.constant 0.353553385 : f32
    %2 = vector.broadcast %cst : f32 to vector<4x8x8xf32>
    %3 = arith.mulf %1, %2 : vector<4x8x8xf32>
    %c0_3 = arith.constant 0 : index
    %c0_4 = arith.constant 0 : index
    %c0_5 = arith.constant 0 : index
    %c0_6 = arith.constant 0 : index
    %4 = vector.load %arg3[%c0_3, %c0_4, %c0_5, %c0_6] : memref<1x4x8x8xf32, #tpu.memory_space<vmem>>, vector<1x4x8x8xf32>
    %5 = vector.shape_cast %4 : vector<1x4x8x8xf32> to vector<4x8x8xf32>
    %c0_7 = arith.constant 0 : index
    %c0_8 = arith.constant 0 : index
    %c0_9 = arith.constant 0 : index
    %c0_10 = arith.constant 0 : index
    %6 = vector.load %arg4[%c0_7, %c0_8, %c0_9, %c0_10] : memref<1x4x8x8xf32, #tpu.memory_space<vmem>>, vector<1x4x8x8xf32>
    %7 = vector.shape_cast %6 : vector<1x4x8x8xf32> to vector<4x8x8xf32>
    %8 = arith.truncf %3 : vector<4x8x8xf32> to vector<4x8x8xbf16>
    %9 = arith.truncf %5 : vector<4x8x8xf32> to vector<4x8x8xbf16>
    "tpu.trace_start"() <{level = 10 : i32, message = "hqd,hkd->hqk"}> : () -> ()
    %cst_11 = arith.constant dense<0.000000e+00> : vector<4x8x8xf32>
    %10 = tpu.matmul %8, %9, %cst_11 {dimension_numbers = #tpu.dot_dimension_numbers<[2], [2], [1], [1], [0, 0, 0, 1, 1, 1], [0], [0]>} : vector<4x8x8xbf16>, vector<4x8x8xbf16>, vector<4x8x8xf32> -> vector<4x8x8xf32>
    "tpu.trace_stop"() : () -> ()
    %11 = tpu.iota {dimensions = array<i32: 0>} : vector<8x8xi32>
    %12 = tpu.iota {dimensions = array<i32: 1>} : vector<8x8xi32>
    %13 = arith.cmpi sle, %12, %11 : vector<8x8xi32>
    %14 = vector.shape_cast %13 : vector<8x8xi1> to vector<1x8x8xi1>
    %cst_12 = arith.constant 0xFF800000 : f32
    %15 = vector.shape_cast %14 : vector<1x8x8xi1> to vector<1x8x8xi1>
    %16 = vector.broadcast %15 : vector<1x8x8xi1> to vector<4x8x8xi1>
    %17 = vector.broadcast %cst_12 : f32 to vector<4x8x8xf32>
    %18 = arith.select %16, %10, %17 : vector<4x8x8xi1>, vector<4x8x8xf32>
    %cst_13 = arith.constant dense<0xFF800000> : vector<4x8xf32>
    %19 = vector.multi_reduction <maximumf>, %18, %cst_13 [2] : vector<4x8x8xf32> to vector<4x8xf32>
    %20 = vector.shape_cast %19 : vector<4x8xf32> to vector<4x8x1xf32>
    %21 = vector.broadcast %20 : vector<4x8x1xf32> to vector<4x8x8xf32>
    %22 = arith.subf %18, %21 : vector<4x8x8xf32>
    %23 = math.exp %22 : vector<4x8x8xf32>
    %cst_14 = arith.constant dense<0.000000e+00> : vector<4x8xf32>
    %24 = vector.multi_reduction <add>, %23, %cst_14 [2] : vector<4x8x8xf32> to vector<4x8xf32>
    %25 = vector.shape_cast %24 : vector<4x8xf32> to vector<4x8x1xf32>
    %26 = tpu.reciprocal %25 {approx = true} : vector<4x8x1xf32> -> vector<4x8x1xf32>
    %27 = vector.broadcast %26 : vector<4x8x1xf32> to vector<4x8x8xf32>
    %28 = arith.mulf %23, %27 : vector<4x8x8xf32>
    %29 = arith.truncf %28 : vector<4x8x8xf32> to vector<4x8x8xbf16>
    %30 = arith.truncf %7 : vector<4x8x8xf32> to vector<4x8x8xbf16>
    "tpu.trace_start"() <{level = 10 : i32, message = "hqk,hkd->hqd"}> : () -> ()
    %cst_15 = arith.constant dense<0.000000e+00> : vector<4x8x8xf32>
    %31 = tpu.matmul %29, %30, %cst_15 {dimension_numbers = #tpu.dot_dimension_numbers<[2], [1], [1], [2], [0, 0, 0, 1, 1, 2], [0], [0]>} : vector<4x8x8xbf16>, vector<4x8x8xbf16>, vector<4x8x8xf32> -> vector<4x8x8xf32>
    "tpu.trace_stop"() : () -> ()
    %c0_16 = arith.constant 0 : index
    %c0_17 = arith.constant 0 : index
    %c0_18 = arith.constant 0 : index
    %c0_19 = arith.constant 0 : index
    %32 = vector.load %arg5[%c0_16, %c0_17, %c0_18, %c0_19] : memref<1x4x8x8xf32, #tpu.memory_space<vmem>>, vector<1x4x8x8xf32>
    %33 = vector.shape_cast %32 : vector<1x4x8x8xf32> to vector<4x8x8xf32>
    %34 = vector.shape_cast %31 : vector<4x8x8xf32> to vector<1x4x8x8xf32>
    tpu.vector_store %arg5[%c0_16, %c0_17, %c0_18, %c0_19], %34 {strides = array<i32>} : memref<1x4x8x8xf32, #tpu.memory_space<vmem>>, vector<1x4x8x8xf32>,
    return
  }
  func.func @transform_0(%arg0: i32, %arg1: i32) -> (i32, i32, i32, i32) {
    %c0_i32 = arith.constant 0 : i32
    %c0_i32_0 = arith.constant 0 : i32
    %c0_i32_1 = arith.constant 0 : i32
    return %arg0, %arg1, %c0_i32, %c0_i32_0 : i32, i32, i32, i32
  }
  func.func @transform_1(%arg0: i32, %arg1: i32) -> (i32, i32, i32, i32) {
    %c0_i32 = arith.constant 0 : i32
    %c0_i32_0 = arith.constant 0 : i32
    %c0_i32_1 = arith.constant 0 : i32
    return %arg0, %arg1, %c0_i32, %c0_i32_0 : i32, i32, i32, i32
  }
  func.func @transform_2(%arg0: i32, %arg1: i32) -> (i32, i32, i32, i32) {
    %c0_i32 = arith.constant 0 : i32
    %c0_i32_0 = arith.constant 0 : i32
    %c0_i32_1 = arith.constant 0 : i32
    return %arg0, %arg1, %c0_i32, %c0_i32_0 : i32, i32, i32, i32
  }
  func.func @transform_3(%arg0: i32, %arg1: i32) -> (i32, i32, i32, i32) {
    %c0_i32 = arith.constant 0 : i32
    %c0_i32_0 = arith.constant 0 : i32
    %c0_i32_1 = arith.constant 0 : i32
    return %arg0, %arg1, %c0_i32, %c0_i32_0 : i32, i32, i32, i32
  }
}

module attributes {stable_mosaic.version = 11 : i64} {
  func.func @_linear_kernel(%arg0: i32, %arg1: i32, %arg2: i32, %arg3: memref<16x32xf32, #tpu.memory_space<vmem>>, %arg4: memref<32x32xbf16, #tpu.memory_space<vmem>>, %arg5: memref<1x32xf32, #tpu.memory_space<vmem>>, %arg6: memref<16x32xf32, #tpu.memory_space<vmem>>, %arg7: memref<16x32xf32, #tpu.memory_space<vmem>>, %arg8: memref<16x32xf32, #tpu.memory_space<vmem>>) attributes {dimension_semantics = [#tpu.dimension_semantics<parallel>, #tpu.dimension_semantics<parallel>, #tpu.dimension_semantics<arbitrary>], iteration_bounds = array<i64: 1, 1, 1>, scalar_prefetch = 0 : i64, scratch_operands = 1 : i64, tpu.core_type = #tpu.core_type<tc>, window_params = [{transform_indices = @transform_0, window_bounds = array<i64: 16, 32>}, {transform_indices = @transform_1, window_bounds = array<i64: 32, 32>}, {transform_indices = @transform_2, window_bounds = array<i64: 1, 32>}, {transform_indices = @transform_3, window_bounds = array<i64: 16, 32>}, {transform_indices = @transform_4, window_bounds = array<i64: 16, 32>}]} {
    %c0_i32 = arith.constant 0 : i32
    %0 = arith.cmpi eq, %arg2, %c0_i32 : i32
    %1 = arith.extui %0 : i1 to i32
    %c0_i32_0 = arith.constant 0 : i32
    %2 = arith.cmpi ne, %1, %c0_i32_0 : i32
    scf.if %2 {
      %cst_10 = arith.constant 0.000000e+00 : f32
      %13 = vector.broadcast %cst_10 : f32 to vector<16x32xf32>
      %c0_11 = arith.constant 0 : index
      %c0_12 = arith.constant 0 : index
      %14 = vector.load %arg8[%c0_11, %c0_12] : memref<16x32xf32, #tpu.memory_space<vmem>>, vector<16x32xf32>
      tpu.vector_store %arg8[%c0_11, %c0_12], %13 {strides = array<i32>} : memref<16x32xf32, #tpu.memory_space<vmem>>, vector<16x32xf32>,
    } else {
    }
    %c0 = arith.constant 0 : index
    %c0_1 = arith.constant 0 : index
    %3 = vector.load %arg8[%c0, %c0_1] : memref<16x32xf32, #tpu.memory_space<vmem>>, vector<16x32xf32>
    %c0_2 = arith.constant 0 : index
    %c0_3 = arith.constant 0 : index
    %4 = vector.load %arg3[%c0_2, %c0_3] : memref<16x32xf32, #tpu.memory_space<vmem>>, vector<16x32xf32>
    %5 = arith.truncf %4 : vector<16x32xf32> to vector<16x32xbf16>
    %c0_4 = arith.constant 0 : index
    %c0_5 = arith.constant 0 : index
    %6 = vector.load %arg4[%c0_4, %c0_5] : memref<32x32xbf16, #tpu.memory_space<vmem>>, vector<32x32xbf16>
    %cst = arith.constant dense<0.000000e+00> : vector<16x32xf32>
    %7 = tpu.matmul %5, %6, %cst {dimension_numbers = #tpu.dot_dimension_numbers<[1], [0], [0], [1], [0, 0, 1, 1], [], []>} : vector<16x32xbf16>, vector<32x32xbf16>, vector<16x32xf32> -> vector<16x32xf32>
    %8 = arith.addf %3, %7 : vector<16x32xf32>
    %c0_6 = arith.constant 0 : index
    %c0_7 = arith.constant 0 : index
    %9 = vector.load %arg8[%c0_6, %c0_7] : memref<16x32xf32, #tpu.memory_space<vmem>>, vector<16x32xf32>
    tpu.vector_store %arg8[%c0_6, %c0_7], %8 {strides = array<i32>} : memref<16x32xf32, #tpu.memory_space<vmem>>, vector<16x32xf32>,
    %c0_i32_8 = arith.constant 0 : i32
    %10 = arith.cmpi eq, %arg2, %c0_i32_8 : i32
    %11 = arith.extui %10 : i1 to i32
    %c0_i32_9 = arith.constant 0 : i32
    %12 = arith.cmpi ne, %11, %c0_i32_9 : i32
    scf.if %12 {
      %c0_10 = arith.constant 0 : index
      %c0_11 = arith.constant 0 : index
      %13 = vector.load %arg8[%c0_10, %c0_11] : memref<16x32xf32, #tpu.memory_space<vmem>>, vector<16x32xf32>
      %c0_12 = arith.constant 0 : index
      %c0_13 = arith.constant 0 : index
      %14 = vector.load %arg5[%c0_12, %c0_13] : memref<1x32xf32, #tpu.memory_space<vmem>>, vector<1x32xf32>
      %15 = vector.broadcast %14 : vector<1x32xf32> to vector<16x32xf32>
      %16 = arith.addf %13, %15 : vector<16x32xf32>
      %c0_14 = arith.constant 0 : index
      %c0_15 = arith.constant 0 : index
      %17 = vector.load %arg6[%c0_14, %c0_15] : memref<16x32xf32, #tpu.memory_space<vmem>>, vector<16x32xf32>
      %18 = arith.addf %16, %17 : vector<16x32xf32>
      %c0_16 = arith.constant 0 : index
      %c0_17 = arith.constant 0 : index
      %19 = vector.load %arg7[%c0_16, %c0_17] : memref<16x32xf32, #tpu.memory_space<vmem>>, vector<16x32xf32>
      tpu.vector_store %arg7[%c0_16, %c0_17], %18 {strides = array<i32>} : memref<16x32xf32, #tpu.memory_space<vmem>>, vector<16x32xf32>,
    } else {
    }
    return
  }
  func.func @transform_0(%arg0: i32, %arg1: i32, %arg2: i32) -> (i32, i32) {
    %c0_i32 = arith.constant 0 : i32
    return %arg0, %arg2 : i32, i32
  }
  func.func @transform_1(%arg0: i32, %arg1: i32, %arg2: i32) -> (i32, i32) {
    %c0_i32 = arith.constant 0 : i32
    return %arg2, %arg1 : i32, i32
  }
  func.func @transform_2(%arg0: i32, %arg1: i32, %arg2: i32) -> (i32, i32) {
    %c0_i32 = arith.constant 0 : i32
    %c0_i32_0 = arith.constant 0 : i32
    return %c0_i32, %arg1 : i32, i32
  }
  func.func @transform_3(%arg0: i32, %arg1: i32, %arg2: i32) -> (i32, i32) {
    %c0_i32 = arith.constant 0 : i32
    return %arg0, %arg1 : i32, i32
  }
  func.func @transform_4(%arg0: i32, %arg1: i32, %arg2: i32) -> (i32, i32) {
    %c0_i32 = arith.constant 0 : i32
    return %arg0, %arg1 : i32, i32
  }
}

module attributes {stable_mosaic.version = 11 : i64} {
  func.func @_ln_linear_kernel(%arg0: i32, %arg1: i32, %arg2: memref<16x32xf32, #tpu.memory_space<vmem>>, %arg3: memref<1x32xf32, #tpu.memory_space<vmem>>, %arg4: memref<1x32xf32, #tpu.memory_space<vmem>>, %arg5: memref<32x32xbf16, #tpu.memory_space<vmem>>, %arg6: memref<1x32xf32, #tpu.memory_space<vmem>>, %arg7: memref<16x32xf32, #tpu.memory_space<vmem>>) attributes {dimension_semantics = [#tpu.dimension_semantics<parallel>, #tpu.dimension_semantics<parallel>], iteration_bounds = array<i64: 1, 1>, scalar_prefetch = 0 : i64, scratch_operands = 0 : i64, tpu.core_type = #tpu.core_type<tc>, window_params = [{transform_indices = @transform_0, window_bounds = array<i64: 16, 32>}, {pipeline_mode = #tpu.pipeline_mode<synchronous>, transform_indices = @transform_1, window_bounds = array<i64: 1, 32>}, {pipeline_mode = #tpu.pipeline_mode<synchronous>, transform_indices = @transform_2, window_bounds = array<i64: 1, 32>}, {transform_indices = @transform_3, window_bounds = array<i64: 32, 32>}, {transform_indices = @transform_4, window_bounds = array<i64: 1, 32>}, {transform_indices = @transform_5, window_bounds = array<i64: 16, 32>}]} {
    %c0 = arith.constant 0 : index
    %c0_0 = arith.constant 0 : index
    %0 = vector.load %arg2[%c0, %c0_0] : memref<16x32xf32, #tpu.memory_space<vmem>>, vector<16x32xf32>
    %cst = arith.constant dense<0.000000e+00> : vector<16xf32>
    %1 = vector.multi_reduction <add>, %0, %cst [1] : vector<16x32xf32> to vector<16xf32>
    %2 = vector.shape_cast %1 : vector<16xf32> to vector<16x1xf32>
    %cst_1 = arith.constant 3.200000e+01 : f32
    %3 = vector.broadcast %cst_1 : f32 to vector<16x1xf32>
    %4 = arith.divf %2, %3 : vector<16x1xf32>
    %5 = vector.broadcast %4 : vector<16x1xf32> to vector<16x32xf32>
    %6 = arith.subf %0, %5 : vector<16x32xf32>
    %7 = arith.mulf %6, %6 : vector<16x32xf32>
    %cst_2 = arith.constant dense<0.000000e+00> : vector<16xf32>
    %8 = vector.multi_reduction <add>, %7, %cst_2 [1] : vector<16x32xf32> to vector<16xf32>
    %9 = vector.shape_cast %8 : vector<16xf32> to vector<16x1xf32>
    %cst_3 = arith.constant 3.200000e+01 : f32
    %10 = vector.broadcast %cst_3 : f32 to vector<16x1xf32>
    %11 = arith.divf %9, %10 : vector<16x1xf32>
    %12 = vector.broadcast %4 : vector<16x1xf32> to vector<16x32xf32>
    %13 = arith.subf %0, %12 : vector<16x32xf32>
    %cst_4 = arith.constant 9.99999974E-6 : f32
    %14 = vector.broadcast %cst_4 : f32 to vector<16x1xf32>
    %15 = arith.addf %11, %14 : vector<16x1xf32>
    %16 = math.rsqrt %15 : vector<16x1xf32>
    %17 = vector.broadcast %16 : vector<16x1xf32> to vector<16x32xf32>
    %18 = arith.mulf %13, %17 : vector<16x32xf32>
    %c0_5 = arith.constant 0 : index
    %c0_6 = arith.constant 0 : index
    %19 = vector.load %arg3[%c0_5, %c0_6] : memref<1x32xf32, #tpu.memory_space<vmem>>, vector<1x32xf32>
    %20 = vector.broadcast %19 : vector<1x32xf32> to vector<16x32xf32>
    %21 = arith.mulf %18, %20 : vector<16x32xf32>
    %c0_7 = arith.constant 0 : index
    %c0_8 = arith.constant 0 : index
    %22 = vector.load %arg4[%c0_7, %c0_8] : memref<1x32xf32, #tpu.memory_space<vmem>>, vector<1x32xf32>
    %23 = vector.broadcast %22 : vector<1x32xf32> to vector<16x32xf32>
    %24 = arith.addf %21, %23 : vector<16x32xf32>
    %25 = arith.truncf %24 : vector<16x32xf32> to vector<16x32xbf16>
    %c0_9 = arith.constant 0 : index
    %c0_10 = arith.constant 0 : index
    %26 = vector.load %arg5[%c0_9, %c0_10] : memref<32x32xbf16, #tpu.memory_space<vmem>>, vector<32x32xbf16>
    %cst_11 = arith.constant dense<0.000000e+00> : vector<16x32xf32>
    %27 = tpu.matmul %25, %26, %cst_11 {dimension_numbers = #tpu.dot_dimension_numbers<[1], [0], [0], [1], [0, 0, 1, 1], [], []>} : vector<16x32xbf16>, vector<32x32xbf16>, vector<16x32xf32> -> vector<16x32xf32>
    %c0_12 = arith.constant 0 : index
    %c0_13 = arith.constant 0 : index
    %28 = vector.load %arg6[%c0_12, %c0_13] : memref<1x32xf32, #tpu.memory_space<vmem>>, vector<1x32xf32>
    %29 = vector.broadcast %28 : vector<1x32xf32> to vector<16x32xf32>
    %30 = arith.addf %27, %29 : vector<16x32xf32>
    %c0_14 = arith.constant 0 : index
    %c0_15 = arith.constant 0 : index
    %31 = vector.load %arg7[%c0_14, %c0_15] : memref<16x32xf32, #tpu.memory_space<vmem>>, vector<16x32xf32>
    tpu.vector_store %arg7[%c0_14, %c0_15], %30 {strides = array<i32>} : memref<16x32xf32, #tpu.memory_space<vmem>>, vector<16x32xf32>,
    return
  }
  func.func @transform_0(%arg0: i32, %arg1: i32) -> (i32, i32) {
    %c0_i32 = arith.constant 0 : i32
    %c0_i32_0 = arith.constant 0 : i32
    return %arg0, %c0_i32 : i32, i32
  }
  func.func @transform_1(%arg0: i32, %arg1: i32) -> (i32, i32) {
    %c0_i32 = arith.constant 0 : i32
    %c0_i32_0 = arith.constant 0 : i32
    %c0_i32_1 = arith.constant 0 : i32
    return %c0_i32, %c0_i32_0 : i32, i32
  }
  func.func @transform_2(%arg0: i32, %arg1: i32) -> (i32, i32) {
    %c0_i32 = arith.constant 0 : i32
    %c0_i32_0 = arith.constant 0 : i32
    %c0_i32_1 = arith.constant 0 : i32
    return %c0_i32, %c0_i32_0 : i32, i32
  }
  func.func @transform_3(%arg0: i32, %arg1: i32) -> (i32, i32) {
    %c0_i32 = arith.constant 0 : i32
    %c0_i32_0 = arith.constant 0 : i32
    return %c0_i32, %arg1 : i32, i32
  }
  func.func @transform_4(%arg0: i32, %arg1: i32) -> (i32, i32) {
    %c0_i32 = arith.constant 0 : i32
    %c0_i32_0 = arith.constant 0 : i32
    return %c0_i32, %arg1 : i32, i32
  }
  func.func @transform_5(%arg0: i32, %arg1: i32) -> (i32, i32) {
    %c0_i32 = arith.constant 0 : i32
    return %arg0, %arg1 : i32, i32
  }
}

module attributes {stable_mosaic.version = 11 : i64} {
  func.func @_linear_kernel(%arg0: i32, %arg1: i32, %arg2: i32, %arg3: memref<16x32xf32, #tpu.memory_space<vmem>>, %arg4: memref<32x64xbf16, #tpu.memory_space<vmem>>, %arg5: memref<1x64xf32, #tpu.memory_space<vmem>>, %arg6: memref<16x64xf32, #tpu.memory_space<vmem>>, %arg7: memref<16x64xf32, #tpu.memory_space<vmem>>) attributes {dimension_semantics = [#tpu.dimension_semantics<parallel>, #tpu.dimension_semantics<parallel>, #tpu.dimension_semantics<arbitrary>], iteration_bounds = array<i64: 1, 1, 1>, scalar_prefetch = 0 : i64, scratch_operands = 1 : i64, tpu.core_type = #tpu.core_type<tc>, window_params = [{transform_indices = @transform_0, window_bounds = array<i64: 16, 32>}, {transform_indices = @transform_1, window_bounds = array<i64: 32, 64>}, {transform_indices = @transform_2, window_bounds = array<i64: 1, 64>}, {transform_indices = @transform_3, window_bounds = array<i64: 16, 64>}]} {
    %c0_i32 = arith.constant 0 : i32
    %0 = arith.cmpi eq, %arg2, %c0_i32 : i32
    %1 = arith.extui %0 : i1 to i32
    %c0_i32_0 = arith.constant 0 : i32
    %2 = arith.cmpi ne, %1, %c0_i32_0 : i32
    scf.if %2 {
      %cst_10 = arith.constant 0.000000e+00 : f32
      %13 = vector.broadcast %cst_10 : f32 to vector<16x64xf32>
      %c0_11 = arith.constant 0 : index
      %c0_12 = arith.constant 0 : index
      %14 = vector.load %arg7[%c0_11, %c0_12] : memref<16x64xf32, #tpu.memory_space<vmem>>, vector<16x64xf32>
      tpu.vector_store %arg7[%c0_11, %c0_12], %13 {strides = array<i32>} : memref<16x64xf32, #tpu.memory_space<vmem>>, vector<16x64xf32>,
    } else {
    }
    %c0 = arith.constant 0 : index
    %c0_1 = arith.constant 0 : index
    %3 = vector.load %arg7[%c0, %c0_1] : memref<16x64xf32, #tpu.memory_space<vmem>>, vector<16x64xf32>
    %c0_2 = arith.constant 0 : index
    %c0_3 = arith.constant 0 : index
    %4 = vector.load %arg3[%c0_2, %c0_3] : memref<16x32xf32, #tpu.memory_space<vmem>>, vector<16x32xf32>
    %5 = arith.truncf %4 : vector<16x32xf32> to vector<16x32xbf16>
    %c0_4 = arith.constant 0 : index
    %c0_5 = arith.constant 0 : index
    %6 = vector.load %arg4[%c0_4, %c0_5] : memref<32x64xbf16, #tpu.memory_space<vmem>>, vector<32x64xbf16>
    %cst = arith.constant dense<0.000000e+00> : vector<16x64xf32>
    %7 = tpu.matmul %5, %6, %cst {dimension_numbers = #tpu.dot_dimension_numbers<[1], [0], [0], [1], [0, 0, 1, 1], [], []>} : vector<16x32xbf16>, vector<32x64xbf16>, vector<16x64xf32> -> vector<16x64xf32>
    %8 = arith.addf %3, %7 : vector<16x64xf32>
    %c0_6 = arith.constant 0 : index
    %c0_7 = arith.constant 0 : index
    %9 = vector.load %arg7[%c0_6, %c0_7] : memref<16x64xf32, #tpu.memory_space<vmem>>, vector<16x64xf32>
    tpu.vector_store %arg7[%c0_6, %c0_7], %8 {strides = array<i32>} : memref<16x64xf32, #tpu.memory_space<vmem>>, vector<16x64xf32>,
    %c0_i32_8 = arith.constant 0 : i32
    %10 = arith.cmpi eq, %arg2, %c0_i32_8 : i32
    %11 = arith.extui %10 : i1 to i32
    %c0_i32_9 = arith.constant 0 : i32
    %12 = arith.cmpi ne, %11, %c0_i32_9 : i32
    scf.if %12 {
      %c0_10 = arith.constant 0 : index
      %c0_11 = arith.constant 0 : index
      %13 = vector.load %arg7[%c0_10, %c0_11] : memref<16x64xf32, #tpu.memory_space<vmem>>, vector<16x64xf32>
      %c0_12 = arith.constant 0 : index
      %c0_13 = arith.constant 0 : index
      %14 = vector.load %arg5[%c0_12, %c0_13] : memref<1x64xf32, #tpu.memory_space<vmem>>, vector<1x64xf32>
      %15 = vector.broadcast %14 : vector<1x64xf32> to vector<16x64xf32>
      %16 = arith.addf %13, %15 : vector<16x64xf32>
      %c0_14 = arith.constant 0 : index
      %c0_15 = arith.constant 0 : index
      %17 = vector.load %arg6[%c0_14, %c0_15] : memref<16x64xf32, #tpu.memory_space<vmem>>, vector<16x64xf32>
      tpu.vector_store %arg6[%c0_14, %c0_15], %16 {strides = array<i32>} : memref<16x64xf32, #tpu.memory_space<vmem>>, vector<16x64xf32>,
    } else {
    }
    return
  }
  func.func @transform_0(%arg0: i32, %arg1: i32, %arg2: i32) -> (i32, i32) {
    %c0_i32 = arith.constant 0 : i32
    return %arg0, %arg2 : i32, i32
  }
  func.func @transform_1(%arg0: i32, %arg1: i32, %arg2: i32) -> (i32, i32) {
    %c0_i32 = arith.constant 0 : i32
    return %arg2, %arg1 : i32, i32
  }
  func.func @transform_2(%arg0: i32, %arg1: i32, %arg2: i32) -> (i32, i32) {
    %c0_i32 = arith.constant 0 : i32
    %c0_i32_0 = arith.constant 0 : i32
    return %c0_i32, %arg1 : i32, i32
  }
  func.func @transform_3(%arg0: i32, %arg1: i32, %arg2: i32) -> (i32, i32) {
    %c0_i32 = arith.constant 0 : i32
    return %arg0, %arg1 : i32, i32
  }
}

module attributes {stable_mosaic.version = 11 : i64} {
  func.func @_attn_kernel(%arg0: i32, %arg1: i32, %arg2: memref<1x4x8x8xf32, #tpu.memory_space<vmem>>, %arg3: memref<1x4x8x8xf32, #tpu.memory_space<vmem>>, %arg4: memref<1x4x8x8xf32, #tpu.memory_space<vmem>>, %arg5: memref<1x4x8x8xf32, #tpu.memory_space<vmem>>) attributes {dimension_semantics = [#tpu.dimension_semantics<parallel>, #tpu.dimension_semantics<parallel>], iteration_bounds = array<i64: 2, 1>, scalar_prefetch = 0 : i64, scratch_operands = 0 : i64, tpu.core_type = #tpu.core_type<tc>, window_params = [{transform_indices = @transform_0, window_bounds = array<i64: 1, 4, 8, 8>}, {transform_indices = @transform_1, window_bounds = array<i64: 1, 4, 8, 8>}, {transform_indices = @transform_2, window_bounds = array<i64: 1, 4, 8, 8>}, {transform_indices = @transform_3, window_bounds = array<i64: 1, 4, 8, 8>}]} {
    %c0 = arith.constant 0 : index
    %c0_0 = arith.constant 0 : index
    %c0_1 = arith.constant 0 : index
    %c0_2 = arith.constant 0 : index
    %0 = vector.load %arg2[%c0, %c0_0, %c0_1, %c0_2] : memref<1x4x8x8xf32, #tpu.memory_space<vmem>>, vector<1x4x8x8xf32>
    %1 = vector.shape_cast %0 : vector<1x4x8x8xf32> to vector<4x8x8xf32>
    %cst = arith.constant 0.353553385 : f32
    %2 = vector.broadcast %cst : f32 to vector<4x8x8xf32>
    %3 = arith.mulf %1, %2 : vector<4x8x8xf32>
    %c0_3 = arith.constant 0 : index
    %c0_4 = arith.constant 0 : index
    %c0_5 = arith.constant 0 : index
    %c0_6 = arith.constant 0 : index
    %4 = vector.load %arg3[%c0_3, %c0_4, %c0_5, %c0_6] : memref<1x4x8x8xf32, #tpu.memory_space<vmem>>, vector<1x4x8x8xf32>
    %5 = vector.shape_cast %4 : vector<1x4x8x8xf32> to vector<4x8x8xf32>
    %c0_7 = arith.constant 0 : index
    %c0_8 = arith.constant 0 : index
    %c0_9 = arith.constant 0 : index
    %c0_10 = arith.constant 0 : index
    %6 = vector.load %arg4[%c0_7, %c0_8, %c0_9, %c0_10] : memref<1x4x8x8xf32, #tpu.memory_space<vmem>>, vector<1x4x8x8xf32>
    %7 = vector.shape_cast %6 : vector<1x4x8x8xf32> to vector<4x8x8xf32>
    %8 = arith.truncf %3 : vector<4x8x8xf32> to vector<4x8x8xbf16>
    %9 = arith.truncf %5 : vector<4x8x8xf32> to vector<4x8x8xbf16>
    "tpu.trace_start"() <{level = 10 : i32, message = "hqd,hkd->hqk"}> : () -> ()
    %cst_11 = arith.constant dense<0.000000e+00> : vector<4x8x8xf32>
    %10 = tpu.matmul %8, %9, %cst_11 {dimension_numbers = #tpu.dot_dimension_numbers<[2], [2], [1], [1], [0, 0, 0, 1, 1, 1], [0], [0]>} : vector<4x8x8xbf16>, vector<4x8x8xbf16>, vector<4x8x8xf32> -> vector<4x8x8xf32>
    "tpu.trace_stop"() : () -> ()
    %cst_12 = arith.constant dense<0xFF800000> : vector<4x8xf32>
    %11 = vector.multi_reduction <maximumf>, %10, %cst_12 [2] : vector<4x8x8xf32> to vector<4x8xf32>
    %12 = vector.shape_cast %11 : vector<4x8xf32> to vector<4x8x1xf32>
    %13 = vector.broadcast %12 : vector<4x8x1xf32> to vector<4x8x8xf32>
    %14 = arith.subf %10, %13 : vector<4x8x8xf32>
    %15 = math.exp %14 : vector<4x8x8xf32>
    %cst_13 = arith.constant dense<0.000000e+00> : vector<4x8xf32>
    %16 = vector.multi_reduction <add>, %15, %cst_13 [2] : vector<4x8x8xf32> to vector<4x8xf32>
    %17 = vector.shape_cast %16 : vector<4x8xf32> to vector<4x8x1xf32>
    %18 = tpu.reciprocal %17 {approx = true} : vector<4x8x1xf32> -> vector<4x8x1xf32>
    %19 = vector.broadcast %18 : vector<4x8x1xf32> to vector<4x8x8xf32>
    %20 = arith.mulf %15, %19 : vector<4x8x8xf32>
    %21 = arith.truncf %20 : vector<4x8x8xf32> to vector<4x8x8xbf16>
    %22 = arith.truncf %7 : vector<4x8x8xf32> to vector<4x8x8xbf16>
    "tpu.trace_start"() <{level = 10 : i32, message = "hqk,hkd->hqd"}> : () -> ()
    %cst_14 = arith.constant dense<0.000000e+00> : vector<4x8x8xf32>
    %23 = tpu.matmul %21, %22, %cst_14 {dimension_numbers = #tpu.dot_dimension_numbers<[2], [1], [1], [2], [0, 0, 0, 1, 1, 2], [0], [0]>} : vector<4x8x8xbf16>, vector<4x8x8xbf16>, vector<4x8x8xf32> -> vector<4x8x8xf32>
    "tpu.trace_stop"() : () -> ()
    %c0_15 = arith.constant 0 : index
    %c0_16 = arith.constant 0 : index
    %c0_17 = arith.constant 0 : index
    %c0_18 = arith.constant 0 : index
    %24 = vector.load %arg5[%c0_15, %c0_16, %c0_17, %c0_18] : memref<1x4x8x8xf32, #tpu.memory_space<vmem>>, vector<1x4x8x8xf32>
    %25 = vector.shape_cast %24 : vector<1x4x8x8xf32> to vector<4x8x8xf32>
    %26 = vector.shape_cast %23 : vector<4x8x8xf32> to vector<1x4x8x8xf32>
    tpu.vector_store %arg5[%c0_15, %c0_16, %c0_17, %c0_18], %26 {strides = array<i32>} : memref<1x4x8x8xf32, #tpu.memory_space<vmem>>, vector<1x4x8x8xf32>,
    return
  }
  func.func @transform_0(%arg0: i32, %arg1: i32) -> (i32, i32, i32, i32) {
    %c0_i32 = arith.constant 0 : i32
    %c0_i32_0 = arith.constant 0 : i32
    %c0_i32_1 = arith.constant 0 : i32
    return %arg0, %arg1, %c0_i32, %c0_i32_0 : i32, i32, i32, i32
  }
  func.func @transform_1(%arg0: i32, %arg1: i32) -> (i32, i32, i32, i32) {
    %c0_i32 = arith.constant 0 : i32
    %c0_i32_0 = arith.constant 0 : i32
    %c0_i32_1 = arith.constant 0 : i32
    return %arg0, %arg1, %c0_i32, %c0_i32_0 : i32, i32, i32, i32
  }
  func.func @transform_2(%arg0: i32, %arg1: i32) -> (i32, i32, i32, i32) {
    %c0_i32 = arith.constant 0 : i32
    %c0_i32_0 = arith.constant 0 : i32
    %c0_i32_1 = arith.constant 0 : i32
    return %arg0, %arg1, %c0_i32, %c0_i32_0 : i32, i32, i32, i32
  }
  func.func @transform_3(%arg0: i32, %arg1: i32) -> (i32, i32, i32, i32) {
    %c0_i32 = arith.constant 0 : i32
    %c0_i32_0 = arith.constant 0 : i32
    %c0_i32_1 = arith.constant 0 : i32
    return %arg0, %arg1, %c0_i32, %c0_i32_0 : i32, i32, i32, i32
  }
}

module attributes {stable_mosaic.version = 11 : i64} {
  func.func @_ln_lm_head_kernel(%arg0: i32, %arg1: i32, %arg2: memref<16x32xf32, #tpu.memory_space<vmem>>, %arg3: memref<1x32xf32, #tpu.memory_space<vmem>>, %arg4: memref<1x32xf32, #tpu.memory_space<vmem>>, %arg5: memref<64x32xf32, #tpu.memory_space<vmem>>, %arg6: memref<16x64xf32, #tpu.memory_space<vmem>>) attributes {dimension_semantics = [#tpu.dimension_semantics<parallel>, #tpu.dimension_semantics<parallel>], iteration_bounds = array<i64: 1, 1>, scalar_prefetch = 0 : i64, scratch_operands = 0 : i64, tpu.core_type = #tpu.core_type<tc>, window_params = [{transform_indices = @transform_0, window_bounds = array<i64: 16, 32>}, {pipeline_mode = #tpu.pipeline_mode<synchronous>, transform_indices = @transform_1, window_bounds = array<i64: 1, 32>}, {pipeline_mode = #tpu.pipeline_mode<synchronous>, transform_indices = @transform_2, window_bounds = array<i64: 1, 32>}, {transform_indices = @transform_3, window_bounds = array<i64: 64, 32>}, {transform_indices = @transform_4, window_bounds = array<i64: 16, 64>}]} {
    %c0 = arith.constant 0 : index
    %c0_0 = arith.constant 0 : index
    %0 = vector.load %arg2[%c0, %c0_0] : memref<16x32xf32, #tpu.memory_space<vmem>>, vector<16x32xf32>
    %cst = arith.constant dense<0.000000e+00> : vector<16xf32>
    %1 = vector.multi_reduction <add>, %0, %cst [1] : vector<16x32xf32> to vector<16xf32>
    %2 = vector.shape_cast %1 : vector<16xf32> to vector<16x1xf32>
    %cst_1 = arith.constant 3.200000e+01 : f32
    %3 = vector.broadcast %cst_1 : f32 to vector<16x1xf32>
    %4 = arith.divf %2, %3 : vector<16x1xf32>
    %5 = vector.broadcast %4 : vector<16x1xf32> to vector<16x32xf32>
    %6 = arith.subf %0, %5 : vector<16x32xf32>
    %7 = arith.mulf %6, %6 : vector<16x32xf32>
    %cst_2 = arith.constant dense<0.000000e+00> : vector<16xf32>
    %8 = vector.multi_reduction <add>, %7, %cst_2 [1] : vector<16x32xf32> to vector<16xf32>
    %9 = vector.shape_cast %8 : vector<16xf32> to vector<16x1xf32>
    %cst_3 = arith.constant 3.200000e+01 : f32
    %10 = vector.broadcast %cst_3 : f32 to vector<16x1xf32>
    %11 = arith.divf %9, %10 : vector<16x1xf32>
    %12 = vector.broadcast %4 : vector<16x1xf32> to vector<16x32xf32>
    %13 = arith.subf %0, %12 : vector<16x32xf32>
    %cst_4 = arith.constant 9.99999974E-6 : f32
    %14 = vector.broadcast %cst_4 : f32 to vector<16x1xf32>
    %15 = arith.addf %11, %14 : vector<16x1xf32>
    %16 = math.rsqrt %15 : vector<16x1xf32>
    %17 = vector.broadcast %16 : vector<16x1xf32> to vector<16x32xf32>
    %18 = arith.mulf %13, %17 : vector<16x32xf32>
    %c0_5 = arith.constant 0 : index
    %c0_6 = arith.constant 0 : index
    %19 = vector.load %arg3[%c0_5, %c0_6] : memref<1x32xf32, #tpu.memory_space<vmem>>, vector<1x32xf32>
    %20 = vector.broadcast %19 : vector<1x32xf32> to vector<16x32xf32>
    %21 = arith.mulf %18, %20 : vector<16x32xf32>
    %c0_7 = arith.constant 0 : index
    %c0_8 = arith.constant 0 : index
    %22 = vector.load %arg4[%c0_7, %c0_8] : memref<1x32xf32, #tpu.memory_space<vmem>>, vector<1x32xf32>
    %23 = vector.broadcast %22 : vector<1x32xf32> to vector<16x32xf32>
    %24 = arith.addf %21, %23 : vector<16x32xf32>
    %25 = arith.truncf %24 : vector<16x32xf32> to vector<16x32xbf16>
    %c0_9 = arith.constant 0 : index
    %c0_10 = arith.constant 0 : index
    %26 = vector.load %arg5[%c0_9, %c0_10] : memref<64x32xf32, #tpu.memory_space<vmem>>, vector<64x32xf32>
    %27 = arith.truncf %26 : vector<64x32xf32> to vector<64x32xbf16>
    %cst_11 = arith.constant dense<0.000000e+00> : vector<16x64xf32>
    %28 = tpu.matmul %25, %27, %cst_11 {dimension_numbers = #tpu.dot_dimension_numbers<[1], [1], [0], [0], [0, 0, 1, 0], [], []>} : vector<16x32xbf16>, vector<64x32xbf16>, vector<16x64xf32> -> vector<16x64xf32>
    %c0_12 = arith.constant 0 : index
    %c0_13 = arith.constant 0 : index
    %29 = vector.load %arg6[%c0_12, %c0_13] : memref<16x64xf32, #tpu.memory_space<vmem>>, vector<16x64xf32>
    tpu.vector_store %arg6[%c0_12, %c0_13], %28 {strides = array<i32>} : memref<16x64xf32, #tpu.memory_space<vmem>>, vector<16x64xf32>,
    return
  }
  func.func @transform_0(%arg0: i32, %arg1: i32) -> (i32, i32) {
    %c0_i32 = arith.constant 0 : i32
    %c0_i32_0 = arith.constant 0 : i32
    return %arg0, %c0_i32 : i32, i32
  }
  func.func @transform_1(%arg0: i32, %arg1: i32) -> (i32, i32) {
    %c0_i32 = arith.constant 0 : i32
    %c0_i32_0 = arith.constant 0 : i32
    %c0_i32_1 = arith.constant 0 : i32
    return %c0_i32, %c0_i32_0 : i32, i32
  }
  func.func @transform_2(%arg0: i32, %arg1: i32) -> (i32, i32) {
    %c0_i32 = arith.constant 0 : i32
    %c0_i32_0 = arith.constant 0 : i32
    %c0_i32_1 = arith.constant 0 : i32
    return %c0_i32, %c0_i32_0 : i32, i32
  }
  func.func @transform_3(%arg0: i32, %arg1: i32) -> (i32, i32) {
    %c0_i32 = arith.constant 0 : i32
    %c0_i32_0 = arith.constant 0 : i32
    return %arg1, %c0_i32 : i32, i32
  }
  func.func @transform_4(%arg0: i32, %arg1: i32) -> (i32, i32) {
    %c0_i32 = arith.constant 0 : i32
    return %arg0, %arg1 : i32, i32
  }
}

module attributes {stable_mosaic.version = 11 : i64} {
  func.func @_mlp_kernel(%arg0: i32, %arg1: memref<16x32xf32, #tpu.memory_space<vmem>>, %arg2: memref<1x32xf32, #tpu.memory_space<vmem>>, %arg3: memref<1x32xf32, #tpu.memory_space<vmem>>, %arg4: memref<32x128xbf16, #tpu.memory_space<vmem>>, %arg5: memref<1x128xf32, #tpu.memory_space<vmem>>, %arg6: memref<128x32xbf16, #tpu.memory_space<vmem>>, %arg7: memref<1x32xf32, #tpu.memory_space<vmem>>, %arg8: memref<16x32xf32, #tpu.memory_space<vmem>>) attributes {dimension_semantics = [#tpu.dimension_semantics<parallel>], iteration_bounds = array<i64: 1>, scalar_prefetch = 0 : i64, scratch_operands = 0 : i64, tpu.core_type = #tpu.core_type<tc>, window_params = [{transform_indices = @transform_0, window_bounds = array<i64: 16, 32>}, {pipeline_mode = #tpu.pipeline_mode<synchronous>, transform_indices = @transform_1, window_bounds = array<i64: 1, 32>}, {pipeline_mode = #tpu.pipeline_mode<synchronous>, transform_indices = @transform_2, window_bounds = array<i64: 1, 32>}, {pipeline_mode = #tpu.pipeline_mode<synchronous>, transform_indices = @transform_3, window_bounds = array<i64: 32, 128>}, {pipeline_mode = #tpu.pipeline_mode<synchronous>, transform_indices = @transform_4, window_bounds = array<i64: 1, 128>}, {pipeline_mode = #tpu.pipeline_mode<synchronous>, transform_indices = @transform_5, window_bounds = array<i64: 128, 32>}, {pipeline_mode = #tpu.pipeline_mode<synchronous>, transform_indices = @transform_6, window_bounds = array<i64: 1, 32>}, {transform_indices = @transform_7, window_bounds = array<i64: 16, 32>}]} {
    %c0 = arith.constant 0 : index
    %c0_0 = arith.constant 0 : index
    %0 = vector.load %arg1[%c0, %c0_0] : memref<16x32xf32, #tpu.memory_space<vmem>>, vector<16x32xf32>
    %cst = arith.constant dense<0.000000e+00> : vector<16xf32>
    %1 = vector.multi_reduction <add>, %0, %cst [1] : vector<16x32xf32> to vector<16xf32>
    %2 = vector.shape_cast %1 : vector<16xf32> to vector<16x1xf32>
    %cst_1 = arith.constant 3.200000e+01 : f32
    %3 = vector.broadcast %cst_1 : f32 to vector<16x1xf32>
    %4 = arith.divf %2, %3 : vector<16x1xf32>
    %5 = vector.broadcast %4 : vector<16x1xf32> to vector<16x32xf32>
    %6 = arith.subf %0, %5 : vector<16x32xf32>
    %7 = arith.mulf %6, %6 : vector<16x32xf32>
    %cst_2 = arith.constant dense<0.000000e+00> : vector<16xf32>
    %8 = vector.multi_reduction <add>, %7, %cst_2 [1] : vector<16x32xf32> to vector<16xf32>
    %9 = vector.shape_cast %8 : vector<16xf32> to vector<16x1xf32>
    %cst_3 = arith.constant 3.200000e+01 : f32
    %10 = vector.broadcast %cst_3 : f32 to vector<16x1xf32>
    %11 = arith.divf %9, %10 : vector<16x1xf32>
    %12 = vector.broadcast %4 : vector<16x1xf32> to vector<16x32xf32>
    %13 = arith.subf %0, %12 : vector<16x32xf32>
    %cst_4 = arith.constant 9.99999974E-6 : f32
    %14 = vector.broadcast %cst_4 : f32 to vector<16x1xf32>
    %15 = arith.addf %11, %14 : vector<16x1xf32>
    %16 = math.rsqrt %15 : vector<16x1xf32>
    %17 = vector.broadcast %16 : vector<16x1xf32> to vector<16x32xf32>
    %18 = arith.mulf %13, %17 : vector<16x32xf32>
    %c0_5 = arith.constant 0 : index
    %c0_6 = arith.constant 0 : index
    %19 = vector.load %arg2[%c0_5, %c0_6] : memref<1x32xf32, #tpu.memory_space<vmem>>, vector<1x32xf32>
    %20 = vector.broadcast %19 : vector<1x32xf32> to vector<16x32xf32>
    %21 = arith.mulf %18, %20 : vector<16x32xf32>
    %c0_7 = arith.constant 0 : index
    %c0_8 = arith.constant 0 : index
    %22 = vector.load %arg3[%c0_7, %c0_8] : memref<1x32xf32, #tpu.memory_space<vmem>>, vector<1x32xf32>
    %23 = vector.broadcast %22 : vector<1x32xf32> to vector<16x32xf32>
    %24 = arith.addf %21, %23 : vector<16x32xf32>
    %25 = arith.truncf %24 : vector<16x32xf32> to vector<16x32xbf16>
    %c0_9 = arith.constant 0 : index
    %c0_10 = arith.constant 0 : index
    %26 = vector.load %arg4[%c0_9, %c0_10] : memref<32x128xbf16, #tpu.memory_space<vmem>>, vector<32x128xbf16>
    %cst_11 = arith.constant dense<0.000000e+00> : vector<16x128xf32>
    %27 = tpu.matmul %25, %26, %cst_11 {dimension_numbers = #tpu.dot_dimension_numbers<[1], [0], [0], [1], [0, 0, 1, 1], [], []>} : vector<16x32xbf16>, vector<32x128xbf16>, vector<16x128xf32> -> vector<16x128xf32>
    %c0_12 = arith.constant 0 : index
    %c0_13 = arith.constant 0 : index
    %28 = vector.load %arg5[%c0_12, %c0_13] : memref<1x128xf32, #tpu.memory_space<vmem>>, vector<1x128xf32>
    %29 = vector.broadcast %28 : vector<1x128xf32> to vector<16x128xf32>
    %30 = arith.addf %27, %29 : vector<16x128xf32>
    %cst_14 = arith.constant 5.000000e-01 : f32
    %31 = vector.broadcast %cst_14 : f32 to vector<16x128xf32>
    %32 = arith.mulf %31, %30 : vector<16x128xf32>
    %cst_15 = arith.constant 4.471500e-02 : f32
    %33 = vector.broadcast %cst_15 : f32 to vector<16x128xf32>
    %34 = arith.mulf %33, %30 : vector<16x128xf32>
    %35 = arith.mulf %34, %30 : vector<16x128xf32>
    %36 = arith.mulf %35, %30 : vector<16x128xf32>
    %37 = arith.addf %30, %36 : vector<16x128xf32>
    %cst_16 = arith.constant 0.797884583 : f32
    %38 = vector.broadcast %cst_16 : f32 to vector<16x128xf32>
    %39 = arith.mulf %38, %37 : vector<16x128xf32>
    %40 = math.tanh %39 : vector<16x128xf32>
    %cst_17 = arith.constant 1.000000e+00 : f32
    %41 = vector.broadcast %cst_17 : f32 to vector<16x128xf32>
    %42 = arith.addf %41, %40 : vector<16x128xf32>
    %43 = arith.mulf %32, %42 : vector<16x128xf32>
    %44 = arith.truncf %43 : vector<16x128xf32> to vector<16x128xbf16>
    %c0_18 = arith.constant 0 : index
    %c0_19 = arith.constant 0 : index
    %45 = vector.load %arg6[%c0_18, %c0_19] : memref<128x32xbf16, #tpu.memory_space<vmem>>, vector<128x32xbf16>
    %cst_20 = arith.constant dense<0.000000e+00> : vector<16x32xf32>
    %46 = tpu.matmul %44, %45, %cst_20 {dimension_numbers = #tpu.dot_dimension_numbers<[1], [0], [0], [1], [0, 0, 1, 1], [], []>} : vector<16x128xbf16>, vector<128x32xbf16>, vector<16x32xf32> -> vector<16x32xf32>
    %c0_21 = arith.constant 0 : index
    %c0_22 = arith.constant 0 : index
    %47 = vector.load %arg7[%c0_21, %c0_22] : memref<1x32xf32, #tpu.memory_space<vmem>>, vector<1x32xf32>
    %48 = vector.broadcast %47 : vector<1x32xf32> to vector<16x32xf32>
    %49 = arith.addf %46, %48 : vector<16x32xf32>
    %50 = arith.addf %49, %0 : vector<16x32xf32>
    %c0_23 = arith.constant 0 : index
    %c0_24 = arith.constant 0 : index
    %51 = vector.load %arg8[%c0_23, %c0_24] : memref<16x32xf32, #tpu.memory_space<vmem>>, vector<16x32xf32>
    tpu.vector_store %arg8[%c0_23, %c0_24], %50 {strides = array<i32>} : memref<16x32xf32, #tpu.memory_space<vmem>>, vector<16x32xf32>,
    return
  }
  func.func @transform_0(%arg0: i32) -> (i32, i32) {
    %c0_i32 = arith.constant 0 : i32
    %c0_i32_0 = arith.constant 0 : i32
    return %arg0, %c0_i32 : i32, i32
  }
  func.func @transform_1(%arg0: i32) -> (i32, i32) {
    %c0_i32 = arith.constant 0 : i32
    %c0_i32_0 = arith.constant 0 : i32
    %c0_i32_1 = arith.constant 0 : i32
    return %c0_i32, %c0_i32_0 : i32, i32
  }
  func.func @transform_2(%arg0: i32) -> (i32, i32) {
    %c0_i32 = arith.constant 0 : i32
    %c0_i32_0 = arith.constant 0 : i32
    %c0_i32_1 = arith.constant 0 : i32
    return %c0_i32, %c0_i32_0 : i32, i32
  }
  func.func @transform_3(%arg0: i32) -> (i32, i32) {
    %c0_i32 = arith.constant 0 : i32
    %c0_i32_0 = arith.constant 0 : i32
    %c0_i32_1 = arith.constant 0 : i32
    return %c0_i32, %c0_i32_0 : i32, i32
  }
  func.func @transform_4(%arg0: i32) -> (i32, i32) {
    %c0_i32 = arith.constant 0 : i32
    %c0_i32_0 = arith.constant 0 : i32
    %c0_i32_1 = arith.constant 0 : i32
    return %c0_i32, %c0_i32_0 : i32, i32
  }
  func.func @transform_5(%arg0: i32) -> (i32, i32) {
    %c0_i32 = arith.constant 0 : i32
    %c0_i32_0 = arith.constant 0 : i32
    %c0_i32_1 = arith.constant 0 : i32
    return %c0_i32, %c0_i32_0 : i32, i32
  }
  func.func @transform_6(%arg0: i32) -> (i32, i32) {
    %c0_i32 = arith.constant 0 : i32
    %c0_i32_0 = arith.constant 0 : i32
    %c0_i32_1 = arith.constant 0 : i32
    return %c0_i32, %c0_i32_0 : i32, i32
  }
  func.func @transform_7(%arg0: i32) -> (i32, i32) {
    %c0_i32 = arith.constant 0 : i32
    %c0_i32_0 = arith.constant 0 : i32
    return %arg0, %c0_i32 : i32, i32
  }
}

</mosaic_0001>

<llo_original>
// kernel: decoder_forward.20
$region0: #{decoder_forward.20}
  #allocation0 [shape = 'u32[]', space=smem, size = 0x4, offset = 0x4, fixed_abs, tag = 'smem constant byte address 0x4 - core index']
  #allocation1 [shape = 'u32[144,128]{1,0:T(1,128)}', space=vmem, size = 0x12000, scoped, tag = 'internal scratch']
  %s0 = inlined_call_operand.hbm [shape: f32[16,32], index: 0, kind: input, shape index: {}]
  %s1 = inlined_call_operand.hbm [shape: f32[1,32], index: 1, kind: input, shape index: {}]
  %s2 = inlined_call_operand.hbm [shape: f32[1,32], index: 2, kind: input, shape index: {}]
  %s3 = inlined_call_operand.hbm [shape: bf16[32,32], index: 3, kind: input, shape index: {}]
  %s4 = inlined_call_operand.hbm [shape: f32[1,32], index: 4, kind: input, shape index: {}]
  %s5 = inlined_call_operand.hbm [shape: f32[16,32], index: 5, kind: output, shape index: {}]
  %s6 = sld [smem:[#allocation0]]
  $region50: #{decoder_forward.20} parent=0
    _
  %s8 = ssub.s32 1, %s6
  %s9 = scalar_select 0, %s8, %s6
  $region1: #{decoder_forward.20} parent=0
    #allocation2 [shape = 'u8[8192]{0}', space=vmem, size = 0x2000, scoped, tag = 'input window, operand 0, single buffered']
    #allocation3 [shape = 's32[1]{0}', space=sflag, size = 0x4, scoped, tag = 'scoped memory for decoder_forward.20']
    #allocation4 [shape = 's32[1]{0}', space=sflag, size = 0x4, scoped, tag = 'scoped memory for decoder_forward.20']
    #allocation5 [shape = 'u8[512]{0}', space=vmem, size = 0x400, scoped, tag = 'input window, operand 1, single buffered']
    #allocation6 [shape = 's32[1]{0}', space=sflag, size = 0x4, scoped, tag = 'scoped memory for decoder_forward.20']
    #allocation7 [shape = 'u8[512]{0}', space=vmem, size = 0x400, scoped, tag = 'input window, operand 2, single buffered']
    #allocation8 [shape = 'u8[8192]{0}', space=vmem, size = 0x2000, scoped, tag = 'input window, operand 3, single buffered']
    #allocation9 [shape = 's32[1]{0}', space=sflag, size = 0x4, scoped, tag = 'scoped memory for decoder_forward.20']
    #allocation10 [shape = 'u8[512]{0}', space=vmem, size = 0x400, scoped, tag = 'input window, operand 4, single buffered']
    #allocation11 [shape = 'u8[8192]{0}', space=vmem, size = 0x2000, scoped, tag = 'output window, operand 0, single buffered']
    %10 = vsyncpa [#allocation3], 0
    %11 = vsyncpa [#allocation6], 0
    %12 = vsyncpa [#allocation9], 0
    %13 = vsyncpa [#allocation4], 0
    // Predicated region
    $region2: #{decoder_forward.20} parent=1 // pred_check
      _
    $region3: #{decoder_forward.20} parent=1 // pred_check_branch
      %15 = sbr.rel (0) target = $region5
    $region4: #{decoder_forward.20} parent=1 // pred_region
      %s17 = ssub.s32 256, 256
      %18 = vsyncadd [#allocation3], %s17
      %s19 = sshll.u32 [#allocation2], 4
      %s20 = int_to_ptr.vmem [resolvable:$true] %s19
      %25 = dma.hbm_to_vmem [thread:$0]  %s0, 256, %s20, [#allocation3], 128, 128, 8
    $region5: #{decoder_forward.20} parent=1 // pred_fallthru
      _
    // Predicated region
    $region6: #{decoder_forward.20} parent=1 // pred_check
      _
    $region7: #{decoder_forward.20} parent=1 // pred_check_branch
      %27 = sbr.rel (0) target = $region9
    $region8: #{decoder_forward.20} parent=1 // pred_region
      %s29 = ssub.s32 16, 16
      %30 = vsyncadd [#allocation6], %s29
      %s32 = sshll.u32 [#allocation5], 4
      %s33 = int_to_ptr.vmem [resolvable:$true] %s32
      %35 = dma.hbm_to_vmem [thread:$0]  %s1, 16, %s33, [#allocation6]
    $region9: #{decoder_forward.20} parent=1 // pred_fallthru
      _
    // Predicated region
    $region10: #{decoder_forward.20} parent=1 // pred_check
      _
    $region11: #{decoder_forward.20} parent=1 // pred_check_branch
      %37 = sbr.rel (0) target = $region13
    $region12: #{decoder_forward.20} parent=1 // pred_region
      %s39 = ssub.s32 16, 16
      %40 = vsyncadd [#allocation6], %s39
      %s42 = sshll.u32 [#allocation7], 4
      %s43 = int_to_ptr.vmem [resolvable:$true] %s42
      %45 = dma.hbm_to_vmem [thread:$0]  %s2, 16, %s43, [#allocation6]
    $region13: #{decoder_forward.20} parent=1 // pred_fallthru
      _
    // Predicated region
    $region14: #{decoder_forward.20} parent=1 // pred_check
      _
    $region15: #{decoder_forward.20} parent=1 // pred_check_branch
      %47 = sbr.rel (0) target = $region17
    $region16: #{decoder_forward.20} parent=1 // pred_region
      %s49 = ssub.s32 256, 256
      %50 = vsyncadd [#allocation9], %s49
      %s51 = sshll.u32 [#allocation8], 4
      %s52 = int_to_ptr.vmem [resolvable:$true] %s51
      %57 = dma.hbm_to_vmem [thread:$0]  %s3, 256, %s52, [#allocation9], 64, 64, 4
    $region17: #{decoder_forward.20} parent=1 // pred_fallthru
      _
    // Predicated region
    $region18: #{decoder_forward.20} parent=1 // pred_check
      _
    $region19: #{decoder_forward.20} parent=1 // pred_check_branch
      %59 = sbr.rel (0) target = $region21
    $region20: #{decoder_forward.20} parent=1 // pred_region
      %s61 = ssub.s32 16, 16
      %62 = vsyncadd [#allocation9], %s61
      %s64 = sshll.u32 [#allocation10], 4
      %s65 = int_to_ptr.vmem [resolvable:$true] %s64
      %67 = dma.hbm_to_vmem [thread:$0]  %s4, 16, %s65, [#allocation9]
    $region21: #{decoder_forward.20} parent=1 // pred_fallthru
      _
    // Predicated region
    $region22: #{decoder_forward.20} parent=1 // pred_check
      _
    $region23: #{decoder_forward.20} parent=1 // pred_check_branch
      %69 = sbr.rel (0) target = $region25
    $region24: #{decoder_forward.20} parent=1 // pred_region
      %70 = dma.done [#allocation3], 256
    $region25: #{decoder_forward.20} parent=1 // pred_fallthru
      _
    // Predicated region
    $region26: #{decoder_forward.20} parent=1 // pred_check
      _
    $region27: #{decoder_forward.20} parent=1 // pred_check_branch
      %72 = sbr.rel (0) target = $region29
    $region28: #{decoder_forward.20} parent=1 // pred_region
      %73 = dma.done [#allocation6], 16
    $region29: #{decoder_forward.20} parent=1 // pred_fallthru
      _
    // Predicated region
    $region30: #{decoder_forward.20} parent=1 // pred_check
      _
    $region31: #{decoder_forward.20} parent=1 // pred_check_branch
      %75 = sbr.rel (0) target = $region33
    $region32: #{decoder_forward.20} parent=1 // pred_region
      %76 = dma.done [#allocation6], 16
    $region33: #{decoder_forward.20} parent=1 // pred_fallthru
      _
    // Predicated region
    $region34: #{decoder_forward.20} parent=1 // pred_check
      _
    $region35: #{decoder_forward.20} parent=1 // pred_check_branch
      %78 = sbr.rel (0) target = $region37
    $region36: #{decoder_forward.20} parent=1 // pred_region
      %79 = dma.done [#allocation9], 256
    $region37: #{decoder_forward.20} parent=1 // pred_fallthru
      _
    // Predicated region
    $region38: #{decoder_forward.20} parent=1 // pred_check
      _
    $region39: #{decoder_forward.20} parent=1 // pred_check_branch
      %81 = sbr.rel (0) target = $region41
    $region40: #{decoder_forward.20} parent=1 // pred_region
      %82 = dma.done [#allocation9], 16
    $region41: #{decoder_forward.20} parent=1 // pred_fallthru
      _
    %v84 = vld [vmem:[#allocation2] sm:$0xff]
    %v85 = vld [vmem:[#allocation2 + $0x8] sm:$0xff]
    %vm86 = vcmask 261120
    %v87 = vsel %vm86, %v84, 0.0
    %88 = vadd.xlane.f32.xlu0 %v87
    %v89 = vpop.xlane.xlu0 %88
    %v90 = vsel %vm86, %v85, 0.0
    %91 = vadd.xlane.f32.xlu0 %v90
    %v92 = vpop.xlane.xlu0 %91
    %v93 = vrcp.pop 32.0
    %v94 = vmul.f32 %v89, %v93
    %v95 = vmul.f32 %v92, %v93
    %v96 = vsub.f32 %v84, %v94
    %v97 = vsub.f32 %v85, %v95
    %v98 = vmul.f32 %v96, %v96
    %v99 = vmul.f32 %v97, %v97
    %v100 = vsel %vm86, %v98, 0.0
    %101 = vadd.xlane.f32.xlu0 %v100
    %v102 = vpop.xlane.xlu0 %101
    %v103 = vsel %vm86, %v99, 0.0
    %104 = vadd.xlane.f32.xlu0 %v103
    %v105 = vpop.xlane.xlu0 %104
    %v106 = vmul.f32 %v102, %v93
    %v107 = vmul.f32 %v105, %v93
    %v108 = vadd.f32 %v106, 1e-05
    %v109 = vadd.f32 %v107, 1e-05
    %v110 = vrsqrt.pop %v108
    %v111 = vrsqrt.pop %v109
    %v112 = vmul.f32 %v96, %v110
    %v113 = vmul.f32 %v97, %v111
    %v114 = vld [vmem:[#allocation5] sm:$0x1]
    %v116 = vlaneseq
    %v117 = vshrl.u32 %v116, 7
    %v118 = vsub.s32 0, %v117
    %v119 = vrot.slane %v114, %v118
    %v121 = vmul.f32 %v112, %v119
    %v122 = vmul.f32 %v113, %v119
    %v123 = vld [vmem:[#allocation7] sm:$0x1]
    %v125 = vlaneseq
    %v126 = vshrl.u32 %v125, 7
    %v127 = vsub.s32 0, %v126
    %v128 = vrot.slane %v123, %v127
    %v130 = vadd.f32 %v121, %v128
    %v131 = vadd.f32 %v122, %v128
    %v132 = vpack.c.bf16 %v131, %v130
    %v133 = vld [vmem:[#allocation8] sm:$0xf]
    %v134 = vld [vmem:[#allocation8 + $0x4] sm:$0xf]
    %v135 = vld [vmem:[#allocation8 + $0x8] sm:$0xf]
    %v136 = vld [vmem:[#allocation8 + $0xc] sm:$0xf]
    %v137 = vld [vmem:[#allocation10] sm:$0x1]
    %v139 = vlaneseq
    %v140 = vshrl.u32 %v139, 7
    %v141 = vsub.s32 0, %v140
    %v142 = vrot.slane %v137, %v141
    %v148 = vunpack.c.l.b16 %v133
    %v149 = vunpack.c.l.b16 %v134
    %v150 = vunpack.c.l.b16 %v135
    %v151 = vunpack.c.l.b16 %v136
    %v152 = vpack.c.b16 %v149, %v148
    %v153 = vpack.c.b16 %v151, %v150
    %v157 = vsel %vm86, %v132, 0
    %159 = vmatprep.subr.bf16.mxu0 0
    %160 = vmatpush1.bf16.msra.mxu0 %v152
    %161 = vmatprep.subr.bf16.mxu0 0
    %162 = vmatpush1.bf16.msra.mxu0 %v153
    %163 = vmatprep.subr.bf16.mxu0 0
    %164 = vmatpush1.bf16.msra.mxu0 0
    %165 = vmatprep.subr.bf16.mxu0 0
    %166 = vmatpush1.bf16.msra.mxu0 0
    %167 = vmatprep.subr.bf16.mxu0 0
    %168 = vmatpush1.bf16.msra.mxu0 0
    %169 = vmatprep.subr.bf16.mxu0 0
    %170 = vmatpush1.bf16.msra.mxu0 0
    %171 = vmatprep.subr.bf16.mxu0 0
    %172 = vmatpush1.bf16.msra.mxu0 0
    %173 = vmatprep.subr.bf16.mxu0 0
    %174 = vmatpush1.bf16.msra.mxu0 0
    %175 = vmatprep.subr.bf16.mxu0 0
    %176 = vmatpush1.bf16.msra.mxu0 0
    %177 = vmatprep.subr.bf16.mxu0 0
    %178 = vmatpush1.bf16.msra.mxu0 0
    %179 = vmatprep.subr.bf16.mxu0 0
    %180 = vmatpush1.bf16.msra.mxu0 0
    %181 = vmatprep.subr.bf16.mxu0 0
    %182 = vmatpush1.bf16.msra.mxu0 0
    %183 = vmatprep.subr.bf16.mxu0 0
    %184 = vmatpush1.bf16.msra.mxu0 0
    %185 = vmatprep.subr.bf16.mxu0 0
    %186 = vmatpush1.bf16.msra.mxu0 0
    %187 = vmatprep.subr.bf16.mxu0 0
    %188 = vmatpush1.bf16.msra.mxu0 0
    %189 = vmatprep.subr.bf16.mxu0 0
    %190 = vmatpush1.bf16.msra.mxu0 0
    %191 = vmatprep.mubr.bf16.mxu0 0
    %192 = vmatmul.mubr.bf16.gmra.mrb[0].mxu0 %v157
    %v193 = vpop.f32.mrb[0].mxu0
    %v194 = vadd.f32 %v142, %v193
    %v195 = vpop.f32.mrb[0].mxu0
    %v196 = vpop.f32.mrb[0].mxu0
    %v197 = vadd.f32 %v142, %v196
    %v198 = vpop.f32.mrb[0].mxu0
    %199 = vdwg.mxu0
    %200 = vst.msk [vmem:[#allocation11] sm:$0xff] %vm86, %v194
    %201 = vst.msk [vmem:[#allocation11 + $0x8] sm:$0xff] %vm86, %v197
    // Predicated region
    $region42: #{decoder_forward.20} parent=1 // pred_check
      _
    $region43: #{decoder_forward.20} parent=1 // pred_check_branch
      %203 = sbr.rel (0) target = $region45
    $region44: #{decoder_forward.20} parent=1 // pred_region
      %s205 = ssub.s32 256, 256
      %206 = vsyncadd [#allocation4], %s205
      %s207 = sshll.u32 [#allocation11], 4
      %s208 = int_to_ptr.vmem [resolvable:$true] %s207
      %213 = dma.vmem_to_hbm [thread:$0]  %s208, 256, %s5, [#allocation4], 128, 128, 8
    $region45: #{decoder_forward.20} parent=1 // pred_fallthru
      _
    // Predicated region
    $region46: #{decoder_forward.20} parent=1 // pred_check
      _
    $region47: #{decoder_forward.20} parent=1 // pred_check_branch
      %215 = sbr.rel (0) target = $region49
    $region48: #{decoder_forward.20} parent=1 // pred_region
      %216 = dma.done [#allocation4], 256
    $region49: #{decoder_forward.20} parent=1 // pred_fallthru
      _
    %217 = vsyncpa [#allocation3], 1
    %218 = vsyncpa [#allocation6], 1
    %219 = vsyncpa [#allocation9], 1
    %220 = vsyncpa [#allocation4], 1

// kernel: decoder_forward.19
$region0: #{decoder_forward.19}
  #allocation0 [shape = 'u32[]', space=smem, size = 0x4, offset = 0x4, fixed_abs, tag = 'smem constant byte address 0x4 - core index']
  #allocation1 [shape = 'u32[144,128]{1,0:T(1,128)}', space=vmem, size = 0x12000, scoped, tag = 'internal scratch']
  #allocation2 [shape = 'f32[16,32]{1,0:T(8,128)}', space=vmem, size = 0x2000, scoped, tag = 'scratch operand']
  %s0 = inlined_call_operand.hbm [shape: f32[16,32], index: 0, kind: input, shape index: {}]
  %s1 = inlined_call_operand.hbm [shape: bf16[32,32], index: 1, kind: input, shape index: {}]
  %s2 = inlined_call_operand.hbm [shape: f32[1,32], index: 2, kind: input, shape index: {}]
  %s3 = inlined_call_operand.hbm [shape: f32[16,32], index: 3, kind: input, shape index: {}]
  %s4 = inlined_call_operand.hbm [shape: f32[16,32], index: 4, kind: output, shape index: {}]
  %s5 = sld [smem:[#allocation0]]
  $region50: #{decoder_forward.19} parent=0
    _
  %s7 = ssub.s32 1, %s5
  %s8 = scalar_select 0, %s7, %s5
  $region1: #{decoder_forward.19} parent=0
    #allocation3 [shape = 'u8[8192]{0}', space=vmem, size = 0x2000, scoped, tag = 'input window, operand 0, single buffered']
    #allocation4 [shape = 's32[1]{0}', space=sflag, size = 0x4, scoped, tag = 'scoped memory for decoder_forward.19']
    #allocation5 [shape = 's32[1]{0}', space=sflag, size = 0x4, scoped, tag = 'scoped memory for decoder_forward.19']
    #allocation6 [shape = 'u8[8192]{0}', space=vmem, size = 0x2000, scoped, tag = 'input window, operand 1, single buffered']
    #allocation7 [shape = 's32[1]{0}', space=sflag, size = 0x4, scoped, tag = 'scoped memory for decoder_forward.19']
    #allocation8 [shape = 'u8[512]{0}', space=vmem, size = 0x400, scoped, tag = 'input window, operand 2, single buffered']
    #allocation9 [shape = 'u8[8192]{0}', space=vmem, size = 0x2000, scoped, tag = 'input window, operand 3, single buffered']
    #allocation10 [shape = 's32[1]{0}', space=sflag, size = 0x4, scoped, tag = 'scoped memory for decoder_forward.19']
    #allocation11 [shape = 'u8[8192]{0}', space=vmem, size = 0x2000, scoped, tag = 'output window, operand 0, single buffered']
    %9 = vsyncpa [#allocation4], 0
    %10 = vsyncpa [#allocation7], 0
    %11 = vsyncpa [#allocation10], 0
    %12 = vsyncpa [#allocation5], 0
    // Predicated region
    $region2: #{decoder_forward.19} parent=1 // pred_check
      _
    $region3: #{decoder_forward.19} parent=1 // pred_check_branch
      %14 = sbr.rel (0) target = $region5
    $region4: #{decoder_forward.19} parent=1 // pred_region
      %s16 = ssub.s32 256, 256
      %17 = vsyncadd [#allocation4], %s16
      %s18 = sshll.u32 [#allocation3], 4
      %s19 = int_to_ptr.vmem [resolvable:$true] %s18
      %24 = dma.hbm_to_vmem [thread:$0]  %s0, 256, %s19, [#allocation4], 128, 128, 8
    $region5: #{decoder_forward.19} parent=1 // pred_fallthru
      _
    // Predicated region
    $region6: #{decoder_forward.19} parent=1 // pred_check
      _
    $region7: #{decoder_forward.19} parent=1 // pred_check_branch
      %26 = sbr.rel (0) target = $region9
    $region8: #{decoder_forward.19} parent=1 // pred_region
      %s28 = ssub.s32 256, 256
      %29 = vsyncadd [#allocation7], %s28
      %s30 = sshll.u32 [#allocation6], 4
      %s31 = int_to_ptr.vmem [resolvable:$true] %s30
      %36 = dma.hbm_to_vmem [thread:$0]  %s1, 256, %s31, [#allocation7], 64, 64, 4
    $region9: #{decoder_forward.19} parent=1 // pred_fallthru
      _
    // Predicated region
    $region10: #{decoder_forward.19} parent=1 // pred_check
      _
    $region11: #{decoder_forward.19} parent=1 // pred_check_branch
      %38 = sbr.rel (0) target = $region13
    $region12: #{decoder_forward.19} parent=1 // pred_region
      %s40 = ssub.s32 16, 16
      %41 = vsyncadd [#allocation7], %s40
      %s43 = sshll.u32 [#allocation8], 4
      %s44 = int_to_ptr.vmem [resolvable:$true] %s43
      %46 = dma.hbm_to_vmem [thread:$0]  %s2, 16, %s44, [#allocation7]
    $region13: #{decoder_forward.19} parent=1 // pred_fallthru
      _
    // Predicated region
    $region14: #{decoder_forward.19} parent=1 // pred_check
      _
    $region15: #{decoder_forward.19} parent=1 // pred_check_branch
      %48 = sbr.rel (0) target = $region17
    $region16: #{decoder_forward.19} parent=1 // pred_region
      %s50 = ssub.s32 256, 256
      %51 = vsyncadd [#allocation10], %s50
      %s52 = sshll.u32 [#allocation9], 4
      %s53 = int_to_ptr.vmem [resolvable:$true] %s52
      %58 = dma.hbm_to_vmem [thread:$0]  %s3, 256, %s53, [#allocation10], 128, 128, 8
    $region17: #{decoder_forward.19} parent=1 // pred_fallthru
      _
    // Predicated region
    $region18: #{decoder_forward.19} parent=1 // pred_check
      _
    $region19: #{decoder_forward.19} parent=1 // pred_check_branch
      %60 = sbr.rel (0) target = $region21
    $region20: #{decoder_forward.19} parent=1 // pred_region
      %61 = dma.done [#allocation4], 256
    $region21: #{decoder_forward.19} parent=1 // pred_fallthru
      _
    // Predicated region
    $region22: #{decoder_forward.19} parent=1 // pred_check
      _
    $region23: #{decoder_forward.19} parent=1 // pred_check_branch
      %63 = sbr.rel (0) target = $region25
    $region24: #{decoder_forward.19} parent=1 // pred_region
      %64 = dma.done [#allocation7], 256
    $region25: #{decoder_forward.19} parent=1 // pred_fallthru
      _
    // Predicated region
    $region26: #{decoder_forward.19} parent=1 // pred_check
      _
    $region27: #{decoder_forward.19} parent=1 // pred_check_branch
      %66 = sbr.rel (0) target = $region29
    $region28: #{decoder_forward.19} parent=1 // pred_region
      %67 = dma.done [#allocation7], 16
    $region29: #{decoder_forward.19} parent=1 // pred_fallthru
      _
    // Predicated region
    $region30: #{decoder_forward.19} parent=1 // pred_check
      _
    $region31: #{decoder_forward.19} parent=1 // pred_check_branch
      %69 = sbr.rel (0) target = $region33
    $region32: #{decoder_forward.19} parent=1 // pred_region
      %70 = dma.done [#allocation10], 256
    $region33: #{decoder_forward.19} parent=1 // pred_fallthru
      _
    %p72 = scmp.eq.s32.totalorder 0, 0
    // Predicated region
    $region34: #{decoder_forward.19} parent=1 // pred_check
      %p73 = pneg %p72
    $region35: #{decoder_forward.19} parent=1 // pred_check_branch
      %75 = sbr.rel (%p73) target = $region37
    $region36: #{decoder_forward.19} parent=1 // pred_region
      %vm76 = vcmask 261120
      %77 = vst.msk [vmem:[#allocation2] sm:$0xff] %vm76, 0.0
      %78 = vst.msk [vmem:[#allocation2 + $0x8] sm:$0xff] %vm76, 0.0
    $region37: #{decoder_forward.19} parent=1 // pred_fallthru
      _
    %v79 = vld [vmem:[#allocation2] sm:$0xff]
    %v80 = vld [vmem:[#allocation2 + $0x8] sm:$0xff]
    %v81 = vld [vmem:[#allocation3] sm:$0xff]
    %v82 = vld [vmem:[#allocation3 + $0x8] sm:$0xff]
    %v83 = vpack.c.bf16 %v82, %v81
    %v84 = vld [vmem:[#allocation6] sm:$0xf]
    %v85 = vld [vmem:[#allocation6 + $0x4] sm:$0xf]
    %v86 = vld [vmem:[#allocation6 + $0x8] sm:$0xf]
    %v87 = vld [vmem:[#allocation6 + $0xc] sm:$0xf]
    %v92 = vunpack.c.l.b16 %v84
    %v93 = vunpack.c.l.b16 %v85
    %v94 = vunpack.c.l.b16 %v86
    %v95 = vunpack.c.l.b16 %v87
    %v96 = vpack.c.b16 %v93, %v92
    %v97 = vpack.c.b16 %v95, %v94
    %vm100 = vcmask 261120
    %v102 = vsel %vm100, %v83, 0
    %104 = vmatprep.subr.bf16.mxu0 0
    %105 = vmatpush1.bf16.msra.mxu0 %v96
    %106 = vmatprep.subr.bf16.mxu0 0
    %107 = vmatpush1.bf16.msra.mxu0 %v97
    %108 = vmatprep.subr.bf16.mxu0 0
    %109 = vmatpush1.bf16.msra.mxu0 0
    %110 = vmatprep.subr.bf16.mxu0 0
    %111 = vmatpush1.bf16.msra.mxu0 0
    %112 = vmatprep.subr.bf16.mxu0 0
    %113 = vmatpush1.bf16.msra.mxu0 0
    %114 = vmatprep.subr.bf16.mxu0 0
    %115 = vmatpush1.bf16.msra.mxu0 0
    %116 = vmatprep.subr.bf16.mxu0 0
    %117 = vmatpush1.bf16.msra.mxu0 0
    %118 = vmatprep.subr.bf16.mxu0 0
    %119 = vmatpush1.bf16.msra.mxu0 0
    %120 = vmatprep.subr.bf16.mxu0 0
    %121 = vmatpush1.bf16.msra.mxu0 0
    %122 = vmatprep.subr.bf16.mxu0 0
    %123 = vmatpush1.bf16.msra.mxu0 0
    %124 = vmatprep.subr.bf16.mxu0 0
    %125 = vmatpush1.bf16.msra.mxu0 0
    %126 = vmatprep.subr.bf16.mxu0 0
    %127 = vmatpush1.bf16.msra.mxu0 0
    %128 = vmatprep.subr.bf16.mxu0 0
    %129 = vmatpush1.bf16.msra.mxu0 0
    %130 = vmatprep.subr.bf16.mxu0 0
    %131 = vmatpush1.bf16.msra.mxu0 0
    %132 = vmatprep.subr.bf16.mxu0 0
    %133 = vmatpush1.bf16.msra.mxu0 0
    %134 = vmatprep.subr.bf16.mxu0 0
    %135 = vmatpush1.bf16.msra.mxu0 0
    %136 = vmatprep.mubr.bf16.mxu0 0
    %137 = vmatmul.mubr.bf16.gmra.mrb[0].mxu0 %v102
    %v138 = vpop.f32.mrb[0].mxu0
    %v139 = vadd.f32 0.0, %v138
    %v140 = vpop.f32.mrb[0].mxu0
    %v141 = vpop.f32.mrb[0].mxu0
    %v142 = vadd.f32 0.0, %v141
    %v143 = vpop.f32.mrb[0].mxu0
    %144 = vdwg.mxu0
    %v145 = vadd.f32 %v79, %v139
    %v146 = vadd.f32 %v80, %v142
    %147 = vst.msk [vmem:[#allocation2] sm:$0xff] %vm100, %v145
    %148 = vst.msk [vmem:[#allocation2 + $0x8] sm:$0xff] %vm100, %v146
    // Predicated region
    $region38: #{decoder_forward.19} parent=1 // pred_check
      %p149 = pneg %p72
    $region39: #{decoder_forward.19} parent=1 // pred_check_branch
      %151 = sbr.rel (%p149) target = $region41
    $region40: #{decoder_forward.19} parent=1 // pred_region
      %v152 = vld [vmem:[#allocation2] sm:$0xff]
      %v153 = vld [vmem:[#allocation2 + $0x8] sm:$0xff]
      %v154 = vld [vmem:[#allocation8] sm:$0x1]
      %v156 = vlaneseq
      %v157 = vshrl.u32 %v156, 7
      %v158 = vsub.s32 0, %v157
      %v159 = vrot.slane %v154, %v158
      %v161 = vadd.f32 %v152, %v159
      %v162 = vadd.f32 %v153, %v159
      %v163 = vld [vmem:[#allocation9] sm:$0xff]
      %v164 = vld [vmem:[#allocation9 + $0x8] sm:$0xff]
      %v165 = vadd.f32 %v161, %v163
      %v166 = vadd.f32 %v162, %v164
      %167 = vst.msk [vmem:[#allocation11] sm:$0xff] %vm100, %v165
      %168 = vst.msk [vmem:[#allocation11 + $0x8] sm:$0xff] %vm100, %v166
    $region41: #{decoder_forward.19} parent=1 // pred_fallthru
      _
    // Predicated region
    $region42: #{decoder_forward.19} parent=1 // pred_check
      _
    $region43: #{decoder_forward.19} parent=1 // pred_check_branch
      %170 = sbr.rel (0) target = $region45
    $region44: #{decoder_forward.19} parent=1 // pred_region
      %s172 = ssub.s32 256, 256
      %173 = vsyncadd [#allocation5], %s172
      %s174 = sshll.u32 [#allocation11], 4
      %s175 = int_to_ptr.vmem [resolvable:$true] %s174
      %180 = dma.vmem_to_hbm [thread:$0]  %s175, 256, %s4, [#allocation5], 128, 128, 8
    $region45: #{decoder_forward.19} parent=1 // pred_fallthru
      _
    // Predicated region
    $region46: #{decoder_forward.19} parent=1 // pred_check
      _
    $region47: #{decoder_forward.19} parent=1 // pred_check_branch
      %182 = sbr.rel (0) target = $region49
    $region48: #{decoder_forward.19} parent=1 // pred_region
      %183 = dma.done [#allocation5], 256
    $region49: #{decoder_forward.19} parent=1 // pred_fallthru
      _
    %184 = vsyncpa [#allocation4], 1
    %185 = vsyncpa [#allocation7], 1
    %186 = vsyncpa [#allocation10], 1
    %187 = vsyncpa [#allocation5], 1

// kernel: decoder_forward.17
$region0: #{decoder_forward.17}
  #allocation0 [shape = 'u32[]', space=smem, size = 0x4, offset = 0x4, fixed_abs, tag = 'smem constant byte address 0x4 - core index']
  #allocation1 [shape = 'u32[144,128]{1,0:T(1,128)}', space=vmem, size = 0x12000, scoped, tag = 'internal scratch']
  %s0 = inlined_call_operand.hbm [shape: f32[16,32], index: 0, kind: input, shape index: {}]
  %s1 = inlined_call_operand.hbm [shape: f32[1,32], index: 1, kind: input, shape index: {}]
  %s2 = inlined_call_operand.hbm [shape: f32[1,32], index: 2, kind: input, shape index: {}]
  %s3 = inlined_call_operand.hbm [shape: bf16[32,96], index: 3, kind: input, shape index: {}]
  %s4 = inlined_call_operand.hbm [shape: f32[1,96], index: 4, kind: input, shape index: {}]
  %s5 = inlined_call_operand.hbm [shape: f32[16,96], index: 5, kind: output, shape index: {}]
  %s6 = sld [smem:[#allocation0]]
  $region50: #{decoder_forward.17} parent=0
    _
  %s8 = ssub.s32 1, %s6
  %s9 = scalar_select 0, %s8, %s6
  $region1: #{decoder_forward.17} parent=0
    #allocation2 [shape = 'u8[8192]{0}', space=vmem, size = 0x2000, scoped, tag = 'input window, operand 0, single buffered']
    #allocation3 [shape = 's32[1]{0}', space=sflag, size = 0x4, scoped, tag = 'scoped memory for decoder_forward.17']
    #allocation4 [shape = 's32[1]{0}', space=sflag, size = 0x4, scoped, tag = 'scoped memory for decoder_forward.17']
    #allocation5 [shape = 'u8[512]{0}', space=vmem, size = 0x400, scoped, tag = 'input window, operand 1, single buffered']
    #allocation6 [shape = 's32[1]{0}', space=sflag, size = 0x4, scoped, tag = 'scoped memory for decoder_forward.17']
    #allocation7 [shape = 'u8[512]{0}', space=vmem, size = 0x400, scoped, tag = 'input window, operand 2, single buffered']
    #allocation8 [shape = 'u8[8192]{0}', space=vmem, size = 0x2000, scoped, tag = 'input window, operand 3, single buffered']
    #allocation9 [shape = 's32[1]{0}', space=sflag, size = 0x4, scoped, tag = 'scoped memory for decoder_forward.17']
    #allocation10 [shape = 'u8[512]{0}', space=vmem, size = 0x400, scoped, tag = 'input window, operand 4, single buffered']
    #allocation11 [shape = 'u8[8192]{0}', space=vmem, size = 0x2000, scoped, tag = 'output window, operand 0, single buffered']
    %10 = vsyncpa [#allocation3], 0
    %11 = vsyncpa [#allocation6], 0
    %12 = vsyncpa [#allocation9], 0
    %13 = vsyncpa [#allocation4], 0
    // Predicated region
    $region2: #{decoder_forward.17} parent=1 // pred_check
      _
    $region3: #{decoder_forward.17} parent=1 // pred_check_branch
      %15 = sbr.rel (0) target = $region5
    $region4: #{decoder_forward.17} parent=1 // pred_region
      %s17 = ssub.s32 256, 256
      %18 = vsyncadd [#allocation3], %s17
      %s19 = sshll.u32 [#allocation2], 4
      %s20 = int_to_ptr.vmem [resolvable:$true] %s19
      %25 = dma.hbm_to_vmem [thread:$0]  %s0, 256, %s20, [#allocation3], 128, 128, 8
    $region5: #{decoder_forward.17} parent=1 // pred_fallthru
      _
    // Predicated region
    $region6: #{decoder_forward.17} parent=1 // pred_check
      _
    $region7: #{decoder_forward.17} parent=1 // pred_check_branch
      %27 = sbr.rel (0) target = $region9
    $region8: #{decoder_forward.17} parent=1 // pred_region
      %s29 = ssub.s32 16, 16
      %30 = vsyncadd [#allocation6], %s29
      %s32 = sshll.u32 [#allocation5], 4
      %s33 = int_to_ptr.vmem [resolvable:$true] %s32
      %35 = dma.hbm_to_vmem [thread:$0]  %s1, 16, %s33, [#allocation6]
    $region9: #{decoder_forward.17} parent=1 // pred_fallthru
      _
    // Predicated region
    $region10: #{decoder_forward.17} parent=1 // pred_check
      _
    $region11: #{decoder_forward.17} parent=1 // pred_check_branch
      %37 = sbr.rel (0) target = $region13
    $region12: #{decoder_forward.17} parent=1 // pred_region
      %s39 = ssub.s32 16, 16
      %40 = vsyncadd [#allocation6], %s39
      %s42 = sshll.u32 [#allocation7], 4
      %s43 = int_to_ptr.vmem [resolvable:$true] %s42
      %45 = dma.hbm_to_vmem [thread:$0]  %s2, 16, %s43, [#allocation6]
    $region13: #{decoder_forward.17} parent=1 // pred_fallthru
      _
    // Predicated region
    $region14: #{decoder_forward.17} parent=1 // pred_check
      _
    $region15: #{decoder_forward.17} parent=1 // pred_check_branch
      %47 = sbr.rel (0) target = $region17
    $region16: #{decoder_forward.17} parent=1 // pred_region
      %s49 = ssub.s32 256, 256
      %50 = vsyncadd [#allocation9], %s49
      %s51 = sshll.u32 [#allocation8], 4
      %s52 = int_to_ptr.vmem [resolvable:$true] %s51
      %57 = dma.hbm_to_vmem [thread:$0]  %s3, 256, %s52, [#allocation9], 64, 64, 4
    $region17: #{decoder_forward.17} parent=1 // pred_fallthru
      _
    // Predicated region
    $region18: #{decoder_forward.17} parent=1 // pred_check
      _
    $region19: #{decoder_forward.17} parent=1 // pred_check_branch
      %59 = sbr.rel (0) target = $region21
    $region20: #{decoder_forward.17} parent=1 // pred_region
      %s61 = ssub.s32 16, 16
      %62 = vsyncadd [#allocation9], %s61
      %s64 = sshll.u32 [#allocation10], 4
      %s65 = int_to_ptr.vmem [resolvable:$true] %s64
      %67 = dma.hbm_to_vmem [thread:$0]  %s4, 16, %s65, [#allocation9]
    $region21: #{decoder_forward.17} parent=1 // pred_fallthru
      _
    // Predicated region
    $region22: #{decoder_forward.17} parent=1 // pred_check
      _
    $region23: #{decoder_forward.17} parent=1 // pred_check_branch
      %69 = sbr.rel (0) target = $region25
    $region24: #{decoder_forward.17} parent=1 // pred_region
      %70 = dma.done [#allocation3], 256
    $region25: #{decoder_forward.17} parent=1 // pred_fallthru
      _
    // Predicated region
    $region26: #{decoder_forward.17} parent=1 // pred_check
      _
    $region27: #{decoder_forward.17} parent=1 // pred_check_branch
      %72 = sbr.rel (0) target = $region29
    $region28: #{decoder_forward.17} parent=1 // pred_region
      %73 = dma.done [#allocation6], 16
    $region29: #{decoder_forward.17} parent=1 // pred_fallthru
      _
    // Predicated region
    $region30: #{decoder_forward.17} parent=1 // pred_check
      _
    $region31: #{decoder_forward.17} parent=1 // pred_check_branch
      %75 = sbr.rel (0) target = $region33
    $region32: #{decoder_forward.17} parent=1 // pred_region
      %76 = dma.done [#allocation6], 16
    $region33: #{decoder_forward.17} parent=1 // pred_fallthru
      _
    // Predicated region
    $region34: #{decoder_forward.17} parent=1 // pred_check
      _
    $region35: #{decoder_forward.17} parent=1 // pred_check_branch
      %78 = sbr.rel (0) target = $region37
    $region36: #{decoder_forward.17} parent=1 // pred_region
      %79 = dma.done [#allocation9], 256
    $region37: #{decoder_forward.17} parent=1 // pred_fallthru
      _
    // Predicated region
    $region38: #{decoder_forward.17} parent=1 // pred_check
      _
    $region39: #{decoder_forward.17} parent=1 // pred_check_branch
      %81 = sbr.rel (0) target = $region41
    $region40: #{decoder_forward.17} parent=1 // pred_region
      %82 = dma.done [#allocation9], 16
    $region41: #{decoder_forward.17} parent=1 // pred_fallthru
      _
    %v84 = vld [vmem:[#allocation2] sm:$0xff]
    %v85 = vld [vmem:[#allocation2 + $0x8] sm:$0xff]
    %vm86 = vcmask 261120
    %v87 = vsel %vm86, %v84, 0.0
    %88 = vadd.xlane.f32.xlu0 %v87
    %v89 = vpop.xlane.xlu0 %88
    %v90 = vsel %vm86, %v85, 0.0
    %91 = vadd.xlane.f32.xlu0 %v90
    %v92 = vpop.xlane.xlu0 %91
    %v93 = vrcp.pop 32.0
    %v94 = vmul.f32 %v89, %v93
    %v95 = vmul.f32 %v92, %v93
    %v96 = vsub.f32 %v84, %v94
    %v97 = vsub.f32 %v85, %v95
    %v98 = vmul.f32 %v96, %v96
    %v99 = vmul.f32 %v97, %v97
    %v100 = vsel %vm86, %v98, 0.0
    %101 = vadd.xlane.f32.xlu0 %v100
    %v102 = vpop.xlane.xlu0 %101
    %v103 = vsel %vm86, %v99, 0.0
    %104 = vadd.xlane.f32.xlu0 %v103
    %v105 = vpop.xlane.xlu0 %104
    %v106 = vmul.f32 %v102, %v93
    %v107 = vmul.f32 %v105, %v93
    %v108 = vadd.f32 %v106, 1e-05
    %v109 = vadd.f32 %v107, 1e-05
    %v110 = vrsqrt.pop %v108
    %v111 = vrsqrt.pop %v109
    %v112 = vmul.f32 %v96, %v110
    %v113 = vmul.f32 %v97, %v111
    %v114 = vld [vmem:[#allocation5] sm:$0x1]
    %v116 = vlaneseq
    %v117 = vshrl.u32 %v116, 7
    %v118 = vsub.s32 0, %v117
    %v119 = vrot.slane %v114, %v118
    %v121 = vmul.f32 %v112, %v119
    %v122 = vmul.f32 %v113, %v119
    %v123 = vld [vmem:[#allocation7] sm:$0x1]
    %v125 = vlaneseq
    %v126 = vshrl.u32 %v125, 7
    %v127 = vsub.s32 0, %v126
    %v128 = vrot.slane %v123, %v127
    %v130 = vadd.f32 %v121, %v128
    %v131 = vadd.f32 %v122, %v128
    %v132 = vpack.c.bf16 %v131, %v130
    %v133 = vld [vmem:[#allocation8] sm:$0xf]
    %v134 = vld [vmem:[#allocation8 + $0x4] sm:$0xf]
    %v135 = vld [vmem:[#allocation8 + $0x8] sm:$0xf]
    %v136 = vld [vmem:[#allocation8 + $0xc] sm:$0xf]
    %v137 = vld [vmem:[#allocation10] sm:$0x1]
    %v139 = vlaneseq
    %v140 = vshrl.u32 %v139, 7
    %v141 = vsub.s32 0, %v140
    %v142 = vrot.slane %v137, %v141
    %v148 = vunpack.c.l.b16 %v133
    %v149 = vunpack.c.l.b16 %v134
    %v150 = vunpack.c.l.b16 %v135
    %v151 = vunpack.c.l.b16 %v136
    %v152 = vpack.c.b16 %v149, %v148
    %v153 = vpack.c.b16 %v151, %v150
    %v157 = vsel %vm86, %v132, 0
    %159 = vmatprep.subr.bf16.mxu0 0
    %160 = vmatpush1.bf16.msra.mxu0 %v152
    %161 = vmatprep.subr.bf16.mxu0 0
    %162 = vmatpush1.bf16.msra.mxu0 %v153
    %163 = vmatprep.subr.bf16.mxu0 0
    %164 = vmatpush1.bf16.msra.mxu0 0
    %165 = vmatprep.subr.bf16.mxu0 0
    %166 = vmatpush1.bf16.msra.mxu0 0
    %167 = vmatprep.subr.bf16.mxu0 0
    %168 = vmatpush1.bf16.msra.mxu0 0
    %169 = vmatprep.subr.bf16.mxu0 0
    %170 = vmatpush1.bf16.msra.mxu0 0
    %171 = vmatprep.subr.bf16.mxu0 0
    %172 = vmatpush1.bf16.msra.mxu0 0
    %173 = vmatprep.subr.bf16.mxu0 0
    %174 = vmatpush1.bf16.msra.mxu0 0
    %175 = vmatprep.subr.bf16.mxu0 0
    %176 = vmatpush1.bf16.msra.mxu0 0
    %177 = vmatprep.subr.bf16.mxu0 0
    %178 = vmatpush1.bf16.msra.mxu0 0
    %179 = vmatprep.subr.bf16.mxu0 0
    %180 = vmatpush1.bf16.msra.mxu0 0
    %181 = vmatprep.subr.bf16.mxu0 0
    %182 = vmatpush1.bf16.msra.mxu0 0
    %183 = vmatprep.subr.bf16.mxu0 0
    %184 = vmatpush1.bf16.msra.mxu0 0
    %185 = vmatprep.subr.bf16.mxu0 0
    %186 = vmatpush1.bf16.msra.mxu0 0
    %187 = vmatprep.subr.bf16.mxu0 0
    %188 = vmatpush1.bf16.msra.mxu0 0
    %189 = vmatprep.subr.bf16.mxu0 0
    %190 = vmatpush1.bf16.msra.mxu0 0
    %191 = vmatprep.mubr.bf16.mxu0 0
    %192 = vmatmul.mubr.bf16.gmra.mrb[0].mxu0 %v157
    %v193 = vpop.f32.mrb[0].mxu0
    %v194 = vadd.f32 %v142, %v193
    %v195 = vpop.f32.mrb[0].mxu0
    %v196 = vpop.f32.mrb[0].mxu0
    %v197 = vadd.f32 %v142, %v196
    %v198 = vpop.f32.mrb[0].mxu0
    %199 = vdwg.mxu0
    %vm200 = vcmask 785408
    %201 = vst.msk [vmem:[#allocation11] sm:$0xff] %vm200, %v194
    %202 = vst.msk [vmem:[#allocation11 + $0x8] sm:$0xff] %vm200, %v197
    // Predicated region
    $region42: #{decoder_forward.17} parent=1 // pred_check
      _
    $region43: #{decoder_forward.17} parent=1 // pred_check_branch
      %204 = sbr.rel (0) target = $region45
    $region44: #{decoder_forward.17} parent=1 // pred_region
      %s206 = ssub.s32 256, 256
      %207 = vsyncadd [#allocation4], %s206
      %s208 = sshll.u32 [#allocation11], 4
      %s209 = int_to_ptr.vmem [resolvable:$true] %s208
      %214 = dma.vmem_to_hbm [thread:$0]  %s209, 256, %s5, [#allocation4], 128, 128, 8
    $region45: #{decoder_forward.17} parent=1 // pred_fallthru
      _
    // Predicated region
    $region46: #{decoder_forward.17} parent=1 // pred_check
      _
    $region47: #{decoder_forward.17} parent=1 // pred_check_branch
      %216 = sbr.rel (0) target = $region49
    $region48: #{decoder_forward.17} parent=1 // pred_region
      %217 = dma.done [#allocation4], 256
    $region49: #{decoder_forward.17} parent=1 // pred_fallthru
      _
    %218 = vsyncpa [#allocation3], 1
    %219 = vsyncpa [#allocation6], 1
    %220 = vsyncpa [#allocation9], 1
    %221 = vsyncpa [#allocation4], 1

// kernel: decoder_forward.18
$region0: #{decoder_forward.18}
  #allocation0 [shape = 'u32[]', space=smem, size = 0x4, offset = 0x4, fixed_abs, tag = 'smem constant byte address 0x4 - core index']
  #allocation1 [shape = 'u32[144,128]{1,0:T(1,128)}', space=vmem, size = 0x12000, scoped, tag = 'internal scratch']
  %s0 = inlined_call_operand.hbm [shape: f32[2,4,8,8], index: 0, kind: input, shape index: {}]
  %s1 = inlined_call_operand.hbm [shape: f32[2,4,8,8], index: 1, kind: input, shape index: {}]
  %s2 = inlined_call_operand.hbm [shape: f32[2,4,8,8], index: 2, kind: input, shape index: {}]
  %s3 = inlined_call_operand.hbm [shape: f32[2,4,8,8], index: 3, kind: output, shape index: {}]
  %s4 = sld [smem:[#allocation0]]
  $region57: #{decoder_forward.18} parent=0
    _
  %s6 = ssub.s32 1, %s4
  %s7 = scalar_select 0, %s6, %s4
  $region1: #{decoder_forward.18} parent=0
    #allocation2 [shape = 'u8[32768]{0}', space=vmem, size = 0x8000, scoped, tag = 'input window, operand 0']
    #allocation3 [shape = 's32[2]{0}', space=sflag, size = 0x8, scoped, tag = 'scoped memory for decoder_forward.18']
    #allocation4 [shape = 's32[2]{0}', space=sflag, size = 0x8, scoped, tag = 'scoped memory for decoder_forward.18']
    #allocation5 [shape = 'u8[32768]{0}', space=vmem, size = 0x8000, scoped, tag = 'input window, operand 1']
    #allocation6 [shape = 's32[2]{0}', space=sflag, size = 0x8, scoped, tag = 'scoped memory for decoder_forward.18']
    #allocation7 [shape = 'u8[32768]{0}', space=vmem, size = 0x8000, scoped, tag = 'input window, operand 2']
    #allocation8 [shape = 'u8[32768]{0}', space=vmem, size = 0x8000, scoped, tag = 'output window, operand 0']
    %8 = vsyncpa [#allocation3], 0
    %s9 = scalar_lea.sflag [#allocation3], 1
    %10 = vsyncpa %s9, 0
    %11 = vsyncpa [#allocation6], 0
    %s12 = scalar_lea.sflag [#allocation6], 1
    %13 = vsyncpa %s12, 0
    %14 = vsyncpa [#allocation4], 0
    %s15 = scalar_lea.sflag [#allocation4], 1
    %16 = vsyncpa %s15, 0
    loop: start=0, step=1, limit=4
    $region2: #{decoder_forward.18} parent=1 // loop_pre_header
      _
    $region3: #{decoder_forward.18} parent=1 // loop_header
      %s18 = sphi 0, %s22
      %p19 = scmp.ge.s32.totalorder %s18, 4
      %s25 = sphi 0, %s37
      %s26 = sphi 0, %s33
      %s27 = sphi 0, %s25
      %s28 = sphi 0, %s26
      %s29 = sphi 0, %s27
      %s30 = sphi 0, %s28
      %s42 = sphi 0, %s44
      %s45 = sphi 0, %s42
      %s46 = sphi 0, %s45
      %s62 = sphi 0, %s46
      %s70 = sphi 0, %s72
      %s73 = sphi 0, %s70
      %s74 = sphi 0, %s73
      %s90 = sphi 0, %s74
      %s98 = sphi 0, %s100
      %s101 = sphi 0, %s98
      %s102 = sphi 0, %s101
      %s118 = sphi 0, %s102
      %s126 = sphi 0, %s128
      %s129 = sphi 0, %s126
      %s130 = sphi 0, %s129
      %s146 = sphi 0, %s130
    $region4: #{decoder_forward.18} parent=1 // loop_header_branch
      %21 = sbr.rel (%p19) target = $region8
    $region5: #{decoder_forward.18} parent=1 // loop_body
      %s23 = ssub.s32 %s18, 1
      %s24 = ssub.s32 %s18, 2
      %s31 = sadd.s32 1, %s26
      %p32 = scmp.ge.s32.totalorder %s31, 1
      %s33 = scalar_select %p32, 0, %s31
      %s34 = sadd.s32 1, %s25
      %s35 = scalar_select %p32, %s34, %s25
      %p36 = scmp.ge.s32.totalorder %s35, 2
      %s37 = scalar_select %p36, 0, %s35
      %s38 = ssub.s32 %s25, %s37
      %s39 = ssub.s32 %s26, %s33
      %s40 = sor.u32 %s38, %s39
      %p41 = scmp.eq.s32.totalorder %s40, 0
      %s43 = sadd.s32 %s42, 1
      %s44 = scalar_select %p41, %s42, %s43
      %p47 = pneg %p41
      %p48 = scmp.eq.s32.totalorder %s18, 1
      %p49 = por %p47, %p48
      %p50 = scmp.ne.s32.totalorder %s42, %s45
      %p51 = scmp.eq.s32.totalorder %s18, 0
      %p52 = por %p50, %p51
      %p53 = scmp.ne.s32.totalorder %s42, %s45
      %p54 = scmp.eq.s32.totalorder %s23, 1
      %p55 = por %p53, %p54
      %p56 = scmp.ne.s32.totalorder %s45, %s46
      %p57 = scmp.eq.s32.totalorder %s23, 0
      %p58 = por %p56, %p57
      %p59 = scmp.ne.s32.totalorder %s45, %s46
      %p60 = scmp.eq.s32.totalorder %s24, 1
      %p61 = por %p59, %p60
      %p63 = scmp.ne.s32.totalorder %s46, %s62
      %p64 = scmp.eq.s32.totalorder %s24, 0
      %p65 = por %p63, %p64
      %s66 = ssub.s32 %s25, %s37
      %s67 = ssub.s32 %s26, %s33
      %s68 = sor.u32 %s66, %s67
      %p69 = scmp.eq.s32.totalorder %s68, 0
      %s71 = sadd.s32 %s70, 1
      %s72 = scalar_select %p69, %s70, %s71
      %p75 = pneg %p69
      %p76 = scmp.eq.s32.totalorder %s18, 1
      %p77 = por %p75, %p76
      %p78 = scmp.ne.s32.totalorder %s70, %s73
      %p79 = scmp.eq.s32.totalorder %s18, 0
      %p80 = por %p78, %p79
      %p81 = scmp.ne.s32.totalorder %s70, %s73
      %p82 = scmp.eq.s32.totalorder %s23, 1
      %p83 = por %p81, %p82
      %p84 = scmp.ne.s32.totalorder %s73, %s74
      %p85 = scmp.eq.s32.totalorder %s23, 0
      %p86 = por %p84, %p85
      %p87 = scmp.ne.s32.totalorder %s73, %s74
      %p88 = scmp.eq.s32.totalorder %s24, 1
      %p89 = por %p87, %p88
      %p91 = scmp.ne.s32.totalorder %s74, %s90
      %p92 = scmp.eq.s32.totalorder %s24, 0
      %p93 = por %p91, %p92
      %s94 = ssub.s32 %s25, %s37
      %s95 = ssub.s32 %s26, %s33
      %s96 = sor.u32 %s94, %s95
      %p97 = scmp.eq.s32.totalorder %s96, 0
      %s99 = sadd.s32 %s98, 1
      %s100 = scalar_select %p97, %s98, %s99
      %p103 = pneg %p97
      %p104 = scmp.eq.s32.totalorder %s18, 1
      %p105 = por %p103, %p104
      %p106 = scmp.ne.s32.totalorder %s98, %s101
      %p107 = scmp.eq.s32.totalorder %s18, 0
      %p108 = por %p106, %p107
      %p109 = scmp.ne.s32.totalorder %s98, %s101
      %p110 = scmp.eq.s32.totalorder %s23, 1
      %p111 = por %p109, %p110
      %p112 = scmp.ne.s32.totalorder %s101, %s102
      %p113 = scmp.eq.s32.totalorder %s23, 0
      %p114 = por %p112, %p113
      %p115 = scmp.ne.s32.totalorder %s101, %s102
      %p116 = scmp.eq.s32.totalorder %s24, 1
      %p117 = por %p115, %p116
      %p119 = scmp.ne.s32.totalorder %s102, %s118
      %p120 = scmp.eq.s32.totalorder %s24, 0
      %p121 = por %p119, %p120
      %s122 = ssub.s32 %s25, %s37
      %s123 = ssub.s32 %s26, %s33
      %s124 = sor.u32 %s122, %s123
      %p125 = scmp.eq.s32.totalorder %s124, 0
      %s127 = sadd.s32 %s126, 1
      %s128 = scalar_select %p125, %s126, %s127
      %p131 = pneg %p125
      %p132 = scmp.eq.s32.totalorder %s18, 1
      %p133 = por %p131, %p132
      %p134 = scmp.ne.s32.totalorder %s126, %s129
      %p135 = scmp.eq.s32.totalorder %s18, 0
      %p136 = por %p134, %p135
      %p137 = scmp.ne.s32.totalorder %s126, %s129
      %p138 = scmp.eq.s32.totalorder %s23, 1
      %p139 = por %p137, %p138
      %p140 = scmp.ne.s32.totalorder %s129, %s130
      %p141 = scmp.eq.s32.totalorder %s23, 0
      %p142 = por %p140, %p141
      %p143 = scmp.ne.s32.totalorder %s129, %s130
      %p144 = scmp.eq.s32.totalorder %s24, 1
      %p145 = por %p143, %p144
      %p147 = scmp.ne.s32.totalorder %s130, %s146
      %p148 = scmp.eq.s32.totalorder %s24, 0
      %p149 = por %p147, %p148
      %p150 = scmp.le.s32.totalorder 1, %s18
      %p151 = scmp.lt.s32.totalorder %s18, 3
      %p152 = pnand %p150, %p151
      %p153 = pneg %p152
      // Predicated region
      $region9: #{decoder_forward.18} parent=5 // pred_check
        _
      $region10: #{decoder_forward.18} parent=5 // pred_check_branch
        %155 = sbr.rel (%p152) target = $region12
      $region11: #{decoder_forward.18} parent=5 // pred_region
        %s156 = ssub.s32 %s18, 1
      $region12: #{decoder_forward.18} parent=5 // pred_fallthru
        _
      %p157 = scmp.lt.s32.totalorder %s18, 2
      // Predicated region
      $region13: #{decoder_forward.18} parent=5 // pred_check
        %p158 = pneg %p157
      $region14: #{decoder_forward.18} parent=5 // pred_check_branch
        %160 = sbr.rel (%p158) target = $region16
      $region15: #{decoder_forward.18} parent=5 // pred_region
        // Predicated region
        $region17: #{decoder_forward.18} parent=15 // pred_check
          %p161 = pneg %p52
        $region18: #{decoder_forward.18} parent=15 // pred_check_branch
          %163 = sbr.rel (%p161) target = $region20
        $region19: #{decoder_forward.18} parent=15 // pred_region
          %s164 = sand.u32 %s42, 1
          %s165 = scalar_lea.sflag [#allocation3], %s164
          %s166 = sand.u32 %s42, 1
          %s167 = smul.addr %s166, 32
          %s168 = scalar_lea.vmem [#allocation2], %s167
          %s169 = smul.u32 4, %s26
          %s171 = ssub.s32 512, 512
          %172 = vsyncadd %s165, %s171
          %s173 = smul.addr %s25, 4
          %s174 = sadd.s32 %s169, %s173
          %s175 = smul.addr %s174, 128
          %s176 = scalar_lea.hbm %s0, %s175
          %s177 = sshll.u32 %s168, 4
          %s178 = int_to_ptr.vmem [resolvable:$true] %s177
          %183 = dma.hbm_to_vmem [thread:$0]  %s176, 512, %s178, %s165, 128, 128, 8
        $region20: #{decoder_forward.18} parent=15 // pred_fallthru
          _
        // Predicated region
        $region21: #{decoder_forward.18} parent=15 // pred_check
          %p184 = pneg %p80
        $region22: #{decoder_forward.18} parent=15 // pred_check_branch
          %186 = sbr.rel (%p184) target = $region24
        $region23: #{decoder_forward.18} parent=15 // pred_region
          %s187 = sand.u32 %s18, 1
          %s188 = scalar_lea.sflag [#allocation6], %s187
          %s189 = sand.u32 %s70, 1
          %s190 = smul.addr %s189, 32
          %s191 = scalar_lea.vmem [#allocation5], %s190
          %s192 = smul.u32 4, %s26
          %s194 = ssub.s32 512, 512
          %195 = vsyncadd %s188, %s194
          %s196 = smul.addr %s25, 4
          %s197 = sadd.s32 %s192, %s196
          %s198 = smul.addr %s197, 128
          %s199 = scalar_lea.hbm %s1, %s198
          %s200 = sshll.u32 %s191, 4
          %s201 = int_to_ptr.vmem [resolvable:$true] %s200
          %206 = dma.hbm_to_vmem [thread:$0]  %s199, 512, %s201, %s188, 128, 128, 8
        $region24: #{decoder_forward.18} parent=15 // pred_fallthru
          _
        // Predicated region
        $region25: #{decoder_forward.18} parent=15 // pred_check
          %p207 = pneg %p108
        $region26: #{decoder_forward.18} parent=15 // pred_check_branch
          %209 = sbr.rel (%p207) target = $region28
        $region27: #{decoder_forward.18} parent=15 // pred_region
          %s210 = sand.u32 %s18, 1
          %s211 = scalar_lea.sflag [#allocation6], %s210
          %s212 = sand.u32 %s98, 1
          %s213 = smul.addr %s212, 32
          %s214 = scalar_lea.vmem [#allocation7], %s213
          %s215 = smul.u32 4, %s26
          %s217 = ssub.s32 512, 512
          %218 = vsyncadd %s211, %s217
          %s219 = smul.addr %s25, 4
          %s220 = sadd.s32 %s215, %s219
          %s221 = smul.addr %s220, 128
          %s222 = scalar_lea.hbm %s2, %s221
          %s223 = sshll.u32 %s214, 4
          %s224 = int_to_ptr.vmem [resolvable:$true] %s223
          %229 = dma.hbm_to_vmem [thread:$0]  %s222, 512, %s224, %s211, 128, 128, 8
        $region28: #{decoder_forward.18} parent=15 // pred_fallthru
          _
      $region16: #{decoder_forward.18} parent=5 // pred_fallthru
        _
      %p230 = scmp.le.s32.totalorder 1, %s18
      %p231 = scmp.lt.s32.totalorder %s18, 3
      %p232 = pnand %p230, %p231
      %p233 = pneg %p232
      // Predicated region
      $region29: #{decoder_forward.18} parent=5 // pred_check
        _
      $region30: #{decoder_forward.18} parent=5 // pred_check_branch
        %235 = sbr.rel (%p232) target = $region32
      $region31: #{decoder_forward.18} parent=5 // pred_region
        %s236 = ssub.s32 %s18, 1
        %s237 = sand.u32 %s45, 1
        %s238 = scalar_lea.sflag [#allocation3], %s237
        %s239 = sand.u32 %s45, 1
        %s240 = smul.addr %s239, 32
        %s241 = scalar_lea.vmem [#allocation2], %s240
        // Predicated region
        $region33: #{decoder_forward.18} parent=31 // pred_check
          %p242 = pneg %p58
        $region34: #{decoder_forward.18} parent=31 // pred_check_branch
          %244 = sbr.rel (%p242) target = $region36
        $region35: #{decoder_forward.18} parent=31 // pred_region
          %245 = dma.done %s238, 512
        $region36: #{decoder_forward.18} parent=31 // pred_fallthru
          _
        %s246 = sand.u32 %s23, 1
        %s247 = scalar_lea.sflag [#allocation6], %s246
        %s248 = sand.u32 %s73, 1
        %s249 = smul.addr %s248, 32
        %s250 = scalar_lea.vmem [#allocation5], %s249
        // Predicated region
        $region37: #{decoder_forward.18} parent=31 // pred_check
          %p251 = pneg %p86
        $region38: #{decoder_forward.18} parent=31 // pred_check_branch
          %253 = sbr.rel (%p251) target = $region40
        $region39: #{decoder_forward.18} parent=31 // pred_region
          %254 = dma.done %s247, 512
        $region40: #{decoder_forward.18} parent=31 // pred_fallthru
          _
        %s255 = sand.u32 %s23, 1
        %s256 = scalar_lea.sflag [#allocation6], %s255
        %s257 = sand.u32 %s101, 1
        %s258 = smul.addr %s257, 32
        %s259 = scalar_lea.vmem [#allocation7], %s258
        // Predicated region
        $region41: #{decoder_forward.18} parent=31 // pred_check
          %p260 = pneg %p114
        $region42: #{decoder_forward.18} parent=31 // pred_check_branch
          %262 = sbr.rel (%p260) target = $region44
        $region43: #{decoder_forward.18} parent=31 // pred_region
          %263 = dma.done %s256, 512
        $region44: #{decoder_forward.18} parent=31 // pred_fallthru
          _
        %s264 = sand.u32 %s45, 1
        %s265 = scalar_lea.sflag [#allocation3], %s264
        %s266 = sand.u32 %s45, 1
        %s267 = smul.addr %s266, 32
        %s268 = scalar_lea.vmem [#allocation2], %s267
        %p269 = pneg %p58
        %p270 = pneg %p55
        %s271 = sand.u32 %s23, 1
        %s272 = scalar_lea.sflag [#allocation6], %s271
        %s273 = sand.u32 %s73, 1
        %s274 = smul.addr %s273, 32
        %s275 = scalar_lea.vmem [#allocation5], %s274
        %p276 = pneg %p86
        %p277 = pneg %p83
        %s278 = sand.u32 %s23, 1
        %s279 = scalar_lea.sflag [#allocation6], %s278
        %s280 = sand.u32 %s101, 1
        %s281 = smul.addr %s280, 32
        %s282 = scalar_lea.vmem [#allocation7], %s281
        %p283 = pneg %p114
        %p284 = pneg %p111
        %p285 = pneg %p142
        %p286 = pneg %p139
        %s287 = sand.u32 %s129, 1
        %s288 = scalar_lea.sflag [#allocation4], %s287
        %s289 = sand.u32 %s129, 1
        %s290 = smul.addr %s289, 32
        %s291 = scalar_lea.vmem [#allocation8], %s290
        %s292 = smul.u32 4, %s28
        %s293 = smul.u32 4, %s28
        %s294 = smul.u32 4, %s28
        %s295 = smul.u32 4, %s28
        %v297 = vld [vmem:[%s241] sm:$0xff]
        %v298 = vld [vmem:[%s241 + $0x8] sm:$0xff]
        %v299 = vld [vmem:[%s241 + $0x10] sm:$0xff]
        %v300 = vld [vmem:[%s241 + $0x18] sm:$0xff]
        %v301 = vmul.f32 %v297, 0.35355338
        %v302 = vmul.f32 %v298, 0.35355338
        %v303 = vmul.f32 %v299, 0.35355338
        %v304 = vmul.f32 %v300, 0.35355338
        %v305 = vld [vmem:[%s250] sm:$0xff]
        %v306 = vld [vmem:[%s250 + $0x8] sm:$0xff]
        %v307 = vld [vmem:[%s250 + $0x10] sm:$0xff]
        %v308 = vld [vmem:[%s250 + $0x18] sm:$0xff]
        %v309 = vld [vmem:[%s259] sm:$0xff]
        %v310 = vld [vmem:[%s259 + $0x8] sm:$0xff]
        %v311 = vld [vmem:[%s259 + $0x10] sm:$0xff]
        %v312 = vld [vmem:[%s259 + $0x18] sm:$0xff]
        %v313 = vpack.c.bf16 %v301, %v301
        %v314 = vpack.c.bf16 %v302, %v302
        %v315 = vpack.c.bf16 %v303, %v303
        %v316 = vpack.c.bf16 %v304, %v304
        %v317 = vpack.c.bf16 %v305, %v305
        %v318 = vpack.c.bf16 %v306, %v306
        %v319 = vpack.c.bf16 %v307, %v307
        %v320 = vpack.c.bf16 %v308, %v308
        %vm321 = vcmask 64512
        %v323 = vsel %vm321, %v313, 0
        %v326 = vsel %vm321, %v317, 0
        %328 = vmatprep.subr.bf16.mxu0 0
        %329 = vmatpush1.bf16.xpose.msra.mxu0 %v326
        %330 = vmatprep.subr.bf16.mxu0 0
        %331 = vmatpush1.bf16.xpose.msra.mxu0 0
        %332 = vmatprep.subr.bf16.mxu0 0
        %333 = vmatpush1.bf16.xpose.msra.mxu0 0
        %334 = vmatprep.subr.bf16.mxu0 0
        %335 = vmatpush1.bf16.xpose.msra.mxu0 0
        %336 = vmatprep.subr.bf16.mxu0 0
        %337 = vmatpush1.bf16.xpose.msra.mxu0 0
        %338 = vmatprep.subr.bf16.mxu0 0
        %339 = vmatpush1.bf16.xpose.msra.mxu0 0
        %340 = vmatprep.subr.bf16.mxu0 0
        %341 = vmatpush1.bf16.xpose.msra.mxu0 0
        %342 = vmatprep.subr.bf16.mxu0 0
        %343 = vmatpush1.bf16.xpose.msra.mxu0 0
        %344 = vmatprep.subr.bf16.mxu0 0
        %345 = vmatpush1.bf16.xpose.msra.mxu0 0
        %346 = vmatprep.subr.bf16.mxu0 0
        %347 = vmatpush1.bf16.xpose.msra.mxu0 0
        %348 = vmatprep.subr.bf16.mxu0 0
        %349 = vmatpush1.bf16.xpose.msra.mxu0 0
        %350 = vmatprep.subr.bf16.mxu0 0
        %351 = vmatpush1.bf16.xpose.msra.mxu0 0
        %352 = vmatprep.subr.bf16.mxu0 0
        %353 = vmatpush1.bf16.xpose.msra.mxu0 0
        %354 = vmatprep.subr.bf16.mxu0 0
        %355 = vmatpush1.bf16.xpose.msra.mxu0 0
        %356 = vmatprep.subr.bf16.mxu0 0
        %357 = vmatpush1.bf16.xpose.msra.mxu0 0
        %358 = vmatprep.subr.bf16.mxu0 0
        %359 = vmatpush1.bf16.xpose.msra.mxu0 0
        %360 = vmatprep.mubr.bf16.mxu0 0
        %361 = vmatmul.mubr.bf16.gmra.mrb[0].mxu0 %v323
        %v362 = vpop.f32.mrb[0].mxu0
        %v363 = vadd.f32 0.0, %v362
        %v364 = vpop.f32.mrb[0].mxu0
        %v365 = vpop.f32.mrb[0].mxu0
        %v366 = vpop.f32.mrb[0].mxu0
        %367 = vdwg.mxu0
        %v369 = vsel %vm321, %v314, 0
        %v372 = vsel %vm321, %v318, 0
        %374 = vmatprep.subr.bf16.mxu0 0
        %375 = vmatpush1.bf16.xpose.msra.mxu0 %v372
        %376 = vmatprep.subr.bf16.mxu0 0
        %377 = vmatpush1.bf16.xpose.msra.mxu0 0
        %378 = vmatprep.subr.bf16.mxu0 0
        %379 = vmatpush1.bf16.xpose.msra.mxu0 0
        %380 = vmatprep.subr.bf16.mxu0 0
        %381 = vmatpush1.bf16.xpose.msra.mxu0 0
        %382 = vmatprep.subr.bf16.mxu0 0
        %383 = vmatpush1.bf16.xpose.msra.mxu0 0
        %384 = vmatprep.subr.bf16.mxu0 0
        %385 = vmatpush1.bf16.xpose.msra.mxu0 0
        %386 = vmatprep.subr.bf16.mxu0 0
        %387 = vmatpush1.bf16.xpose.msra.mxu0 0
        %388 = vmatprep.subr.bf16.mxu0 0
        %389 = vmatpush1.bf16.xpose.msra.mxu0 0
        %390 = vmatprep.subr.bf16.mxu0 0
        %391 = vmatpush1.bf16.xpose.msra.mxu0 0
        %392 = vmatprep.subr.bf16.mxu0 0
        %393 = vmatpush1.bf16.xpose.msra.mxu0 0
        %394 = vmatprep.subr.bf16.mxu0 0
        %395 = vmatpush1.bf16.xpose.msra.mxu0 0
        %396 = vmatprep.subr.bf16.mxu0 0
        %397 = vmatpush1.bf16.xpose.msra.mxu0 0
        %398 = vmatprep.subr.bf16.mxu0 0
        %399 = vmatpush1.bf16.xpose.msra.mxu0 0
        %400 = vmatprep.subr.bf16.mxu0 0
        %401 = vmatpush1.bf16.xpose.msra.mxu0 0
        %402 = vmatprep.subr.bf16.mxu0 0
        %403 = vmatpush1.bf16.xpose.msra.mxu0 0
        %404 = vmatprep.subr.bf16.mxu0 0
        %405 = vmatpush1.bf16.xpose.msra.mxu0 0
        %406 = vmatprep.mubr.bf16.mxu0 0
        %407 = vmatmul.mubr.bf16.gmra.mrb[0].mxu0 %v369
        %v408 = vpop.f32.mrb[0].mxu0
        %v409 = vadd.f32 0.0, %v408
        %v410 = vpop.f32.mrb[0].mxu0
        %v411 = vpop.f32.mrb[0].mxu0
        %v412 = vpop.f32.mrb[0].mxu0
        %413 = vdwg.mxu0
        %v415 = vsel %vm321, %v315, 0
        %v418 = vsel %vm321, %v319, 0
        %420 = vmatprep.subr.bf16.mxu0 0
        %421 = vmatpush1.bf16.xpose.msra.mxu0 %v418
        %422 = vmatprep.subr.bf16.mxu0 0
        %423 = vmatpush1.bf16.xpose.msra.mxu0 0
        %424 = vmatprep.subr.bf16.mxu0 0
        %425 = vmatpush1.bf16.xpose.msra.mxu0 0
        %426 = vmatprep.subr.bf16.mxu0 0
        %427 = vmatpush1.bf16.xpose.msra.mxu0 0
        %428 = vmatprep.subr.bf16.mxu0 0
        %429 = vmatpush1.bf16.xpose.msra.mxu0 0
        %430 = vmatprep.subr.bf16.mxu0 0
        %431 = vmatpush1.bf16.xpose.msra.mxu0 0
        %432 = vmatprep.subr.bf16.mxu0 0
        %433 = vmatpush1.bf16.xpose.msra.mxu0 0
        %434 = vmatprep.subr.bf16.mxu0 0
        %435 = vmatpush1.bf16.xpose.msra.mxu0 0
        %436 = vmatprep.subr.bf16.mxu0 0
        %437 = vmatpush1.bf16.xpose.msra.mxu0 0
        %438 = vmatprep.subr.bf16.mxu0 0
        %439 = vmatpush1.bf16.xpose.msra.mxu0 0
        %440 = vmatprep.subr.bf16.mxu0 0
        %441 = vmatpush1.bf16.xpose.msra.mxu0 0
        %442 = vmatprep.subr.bf16.mxu0 0
        %443 = vmatpush1.bf16.xpose.msra.mxu0 0
        %444 = vmatprep.subr.bf16.mxu0 0
        %445 = vmatpush1.bf16.xpose.msra.mxu0 0
        %446 = vmatprep.subr.bf16.mxu0 0
        %447 = vmatpush1.bf16.xpose.msra.mxu0 0
        %448 = vmatprep.subr.bf16.mxu0 0
        %449 = vmatpush1.bf16.xpose.msra.mxu0 0
        %450 = vmatprep.subr.bf16.mxu0 0
        %451 = vmatpush1.bf16.xpose.msra.mxu0 0
        %452 = vmatprep.mubr.bf16.mxu0 0
        %453 = vmatmul.mubr.bf16.gmra.mrb[0].mxu0 %v415
        %v454 = vpop.f32.mrb[0].mxu0
        %v455 = vadd.f32 0.0, %v454
        %v456 = vpop.f32.mrb[0].mxu0
        %v457 = vpop.f32.mrb[0].mxu0
        %v458 = vpop.f32.mrb[0].mxu0
        %459 = vdwg.mxu0
        %v461 = vsel %vm321, %v316, 0
        %v464 = vsel %vm321, %v320, 0
        %466 = vmatprep.subr.bf16.mxu0 0
        %467 = vmatpush1.bf16.xpose.msra.mxu0 %v464
        %468 = vmatprep.subr.bf16.mxu0 0
        %469 = vmatpush1.bf16.xpose.msra.mxu0 0
        %470 = vmatprep.subr.bf16.mxu0 0
        %471 = vmatpush1.bf16.xpose.msra.mxu0 0
        %472 = vmatprep.subr.bf16.mxu0 0
        %473 = vmatpush1.bf16.xpose.msra.mxu0 0
        %474 = vmatprep.subr.bf16.mxu0 0
        %475 = vmatpush1.bf16.xpose.msra.mxu0 0
        %476 = vmatprep.subr.bf16.mxu0 0
        %477 = vmatpush1.bf16.xpose.msra.mxu0 0
        %478 = vmatprep.subr.bf16.mxu0 0
        %479 = vmatpush1.bf16.xpose.msra.mxu0 0
        %480 = vmatprep.subr.bf16.mxu0 0
        %481 = vmatpush1.bf16.xpose.msra.mxu0 0
        %482 = vmatprep.subr.bf16.mxu0 0
        %483 = vmatpush1.bf16.xpose.msra.mxu0 0
        %484 = vmatprep.subr.bf16.mxu0 0
        %485 = vmatpush1.bf16.xpose.msra.mxu0 0
        %486 = vmatprep.subr.bf16.mxu0 0
        %487 = vmatpush1.bf16.xpose.msra.mxu0 0
        %488 = vmatprep.subr.bf16.mxu0 0
        %489 = vmatpush1.bf16.xpose.msra.mxu0 0
        %490 = vmatprep.subr.bf16.mxu0 0
        %491 = vmatpush1.bf16.xpose.msra.mxu0 0
        %492 = vmatprep.subr.bf16.mxu0 0
        %493 = vmatpush1.bf16.xpose.msra.mxu0 0
        %494 = vmatprep.subr.bf16.mxu0 0
        %495 = vmatpush1.bf16.xpose.msra.mxu0 0
        %496 = vmatprep.subr.bf16.mxu0 0
        %497 = vmatpush1.bf16.xpose.msra.mxu0 0
        %498 = vmatprep.mubr.bf16.mxu0 0
        %499 = vmatmul.mubr.bf16.gmra.mrb[0].mxu0 %v461
        %v500 = vpop.f32.mrb[0].mxu0
        %v501 = vadd.f32 0.0, %v500
        %v502 = vpop.f32.mrb[0].mxu0
        %v503 = vpop.f32.mrb[0].mxu0
        %v504 = vpop.f32.mrb[0].mxu0
        %505 = vdwg.mxu0
        %v506 = vlaneseq
        %v507 = vshrl.u32 %v506, 7
        %v508 = vlaneseq
        %v509 = vand.u32 %v508, 127
        %vm510 = vcmp.le.s32.totalorder %v509, %v507
        %v511 = vsel %vm510, 1, 0
        %vm512 = vcmp.eq.s32.totalorder %v511, 1
        %v513 = vsel %vm512, %v363, -inf
        %v514 = vsel %vm512, %v409, -inf
        %v515 = vsel %vm512, %v455, -inf
        %v516 = vsel %vm512, %v501, -inf
        %v517 = vsel %vm321, %v513, -inf
        %518 = vmax.xlane.f32.xlu0 %v517
        %v519 = vpop.xlane.xlu0 %518
        %v520 = vsel %vm321, %v514, -inf
        %521 = vmax.xlane.f32.xlu0 %v520
        %v522 = vpop.xlane.xlu0 %521
        %v523 = vsel %vm321, %v515, -inf
        %524 = vmax.xlane.f32.xlu0 %v523
        %v525 = vpop.xlane.xlu0 %524
        %v526 = vsel %vm321, %v516, -inf
        %527 = vmax.xlane.f32.xlu0 %v526
        %v528 = vpop.xlane.xlu0 %527
        %v529 = vsub.f32 %v513, %v519
        %v530 = vsub.f32 %v514, %v522
        %v531 = vsub.f32 %v515, %v525
        %v532 = vsub.f32 %v516, %v528
        %v533 = vmul.f32 %v529, 1.442695
        %v534 = vpow.pop %v533
        %v535 = vmul.f32 %v530, 1.442695
        %v536 = vpow.pop %v535
        %v537 = vmul.f32 %v531, 1.442695
        %v538 = vpow.pop %v537
        %v539 = vmul.f32 %v532, 1.442695
        %v540 = vpow.pop %v539
        %v541 = vsel %vm321, %v534, 0.0
        %542 = vadd.xlane.f32.xlu0 %v541
        %v543 = vpop.xlane.xlu0 %542
        %v544 = vsel %vm321, %v536, 0.0
        %545 = vadd.xlane.f32.xlu0 %v544
        %v546 = vpop.xlane.xlu0 %545
        %v547 = vsel %vm321, %v538, 0.0
        %548 = vadd.xlane.f32.xlu0 %v547
        %v549 = vpop.xlane.xlu0 %548
        %v550 = vsel %vm321, %v540, 0.0
        %551 = vadd.xlane.f32.xlu0 %v550
        %v552 = vpop.xlane.xlu0 %551
        %v553 = vrcp.pop %v543
        %v554 = vrcp.pop %v546
        %v555 = vrcp.pop %v549
        %v556 = vrcp.pop %v552
        %v557 = vmul.f32 %v534, %v553
        %v558 = vmul.f32 %v536, %v554
        %v559 = vmul.f32 %v538, %v555
        %v560 = vmul.f32 %v540, %v556
        %v561 = vpack.c.bf16 %v557, %v557
        %v562 = vpack.c.bf16 %v558, %v558
        %v563 = vpack.c.bf16 %v559, %v559
        %v564 = vpack.c.bf16 %v560, %v560
        %v565 = vpack.c.bf16 %v309, %v309
        %v566 = vpack.c.bf16 %v310, %v310
        %v567 = vpack.c.bf16 %v311, %v311
        %v568 = vpack.c.bf16 %v312, %v312
        %v570 = vsel %vm321, %v561, 0
        %vm572 = vcmask 1043456
        %v574 = vsel %vm572, %v565, 0
        %576 = vmatprep.subr.bf16.mxu0 0
        %577 = vmatpush1.bf16.msra.mxu0 %v574
        %578 = vmatprep.subr.bf16.mxu0 0
        %579 = vmatpush1.bf16.msra.mxu0 0
        %580 = vmatprep.subr.bf16.mxu0 0
        %581 = vmatpush1.bf16.msra.mxu0 0
        %582 = vmatprep.subr.bf16.mxu0 0
        %583 = vmatpush1.bf16.msra.mxu0 0
        %584 = vmatprep.subr.bf16.mxu0 0
        %585 = vmatpush1.bf16.msra.mxu0 0
        %586 = vmatprep.subr.bf16.mxu0 0
        %587 = vmatpush1.bf16.msra.mxu0 0
        %588 = vmatprep.subr.bf16.mxu0 0
        %589 = vmatpush1.bf16.msra.mxu0 0
        %590 = vmatprep.subr.bf16.mxu0 0
        %591 = vmatpush1.bf16.msra.mxu0 0
        %592 = vmatprep.subr.bf16.mxu0 0
        %593 = vmatpush1.bf16.msra.mxu0 0
        %594 = vmatprep.subr.bf16.mxu0 0
        %595 = vmatpush1.bf16.msra.mxu0 0
        %596 = vmatprep.subr.bf16.mxu0 0
        %597 = vmatpush1.bf16.msra.mxu0 0
        %598 = vmatprep.subr.bf16.mxu0 0
        %599 = vmatpush1.bf16.msra.mxu0 0
        %600 = vmatprep.subr.bf16.mxu0 0
        %601 = vmatpush1.bf16.msra.mxu0 0
        %602 = vmatprep.subr.bf16.mxu0 0
        %603 = vmatpush1.bf16.msra.mxu0 0
        %604 = vmatprep.subr.bf16.mxu0 0
        %605 = vmatpush1.bf16.msra.mxu0 0
        %606 = vmatprep.subr.bf16.mxu0 0
        %607 = vmatpush1.bf16.msra.mxu0 0
        %608 = vmatprep.mubr.bf16.mxu0 0
        %609 = vmatmul.mubr.bf16.gmra.mrb[0].mxu0 %v570
        %v610 = vpop.f32.mrb[0].mxu0
        %v611 = vadd.f32 0.0, %v610
        %v612 = vpop.f32.mrb[0].mxu0
        %v613 = vpop.f32.mrb[0].mxu0
        %v614 = vpop.f32.mrb[0].mxu0
        %615 = vdwg.mxu0
        %v617 = vsel %vm321, %v562, 0
        %v620 = vsel %vm572, %v566, 0
        %622 = vmatprep.subr.bf16.mxu0 0
        %623 = vmatpush1.bf16.msra.mxu0 %v620
        %624 = vmatprep.subr.bf16.mxu0 0
        %625 = vmatpush1.bf16.msra.mxu0 0
        %626 = vmatprep.subr.bf16.mxu0 0
        %627 = vmatpush1.bf16.msra.mxu0 0
        %628 = vmatprep.subr.bf16.mxu0 0
        %629 = vmatpush1.bf16.msra.mxu0 0
        %630 = vmatprep.subr.bf16.mxu0 0
        %631 = vmatpush1.bf16.msra.mxu0 0
        %632 = vmatprep.subr.bf16.mxu0 0
        %633 = vmatpush1.bf16.msra.mxu0 0
        %634 = vmatprep.subr.bf16.mxu0 0
        %635 = vmatpush1.bf16.msra.mxu0 0
        %636 = vmatprep.subr.bf16.mxu0 0
        %637 = vmatpush1.bf16.msra.mxu0 0
        %638 = vmatprep.subr.bf16.mxu0 0
        %639 = vmatpush1.bf16.msra.mxu0 0
        %640 = vmatprep.subr.bf16.mxu0 0
        %641 = vmatpush1.bf16.msra.mxu0 0
        %642 = vmatprep.subr.bf16.mxu0 0
        %643 = vmatpush1.bf16.msra.mxu0 0
        %644 = vmatprep.subr.bf16.mxu0 0
        %645 = vmatpush1.bf16.msra.mxu0 0
        %646 = vmatprep.subr.bf16.mxu0 0
        %647 = vmatpush1.bf16.msra.mxu0 0
        %648 = vmatprep.subr.bf16.mxu0 0
        %649 = vmatpush1.bf16.msra.mxu0 0
        %650 = vmatprep.subr.bf16.mxu0 0
        %651 = vmatpush1.bf16.msra.mxu0 0
        %652 = vmatprep.subr.bf16.mxu0 0
        %653 = vmatpush1.bf16.msra.mxu0 0
        %654 = vmatprep.mubr.bf16.mxu0 0
        %655 = vmatmul.mubr.bf16.gmra.mrb[0].mxu0 %v617
        %v656 = vpop.f32.mrb[0].mxu0
        %v657 = vadd.f32 0.0, %v656
        %v658 = vpop.f32.mrb[0].mxu0
        %v659 = vpop.f32.mrb[0].mxu0
        %v660 = vpop.f32.mrb[0].mxu0
        %661 = vdwg.mxu0
        %v663 = vsel %vm321, %v563, 0
        %v666 = vsel %vm572, %v567, 0
        %668 = vmatprep.subr.bf16.mxu0 0
        %669 = vmatpush1.bf16.msra.mxu0 %v666
        %670 = vmatprep.subr.bf16.mxu0 0
        %671 = vmatpush1.bf16.msra.mxu0 0
        %672 = vmatprep.subr.bf16.mxu0 0
        %673 = vmatpush1.bf16.msra.mxu0 0
        %674 = vmatprep.subr.bf16.mxu0 0
        %675 = vmatpush1.bf16.msra.mxu0 0
        %676 = vmatprep.subr.bf16.mxu0 0
        %677 = vmatpush1.bf16.msra.mxu0 0
        %678 = vmatprep.subr.bf16.mxu0 0
        %679 = vmatpush1.bf16.msra.mxu0 0
        %680 = vmatprep.subr.bf16.mxu0 0
        %681 = vmatpush1.bf16.msra.mxu0 0
        %682 = vmatprep.subr.bf16.mxu0 0
        %683 = vmatpush1.bf16.msra.mxu0 0
        %684 = vmatprep.subr.bf16.mxu0 0
        %685 = vmatpush1.bf16.msra.mxu0 0
        %686 = vmatprep.subr.bf16.mxu0 0
        %687 = vmatpush1.bf16.msra.mxu0 0
        %688 = vmatprep.subr.bf16.mxu0 0
        %689 = vmatpush1.bf16.msra.mxu0 0
        %690 = vmatprep.subr.bf16.mxu0 0
        %691 = vmatpush1.bf16.msra.mxu0 0
        %692 = vmatprep.subr.bf16.mxu0 0
        %693 = vmatpush1.bf16.msra.mxu0 0
        %694 = vmatprep.subr.bf16.mxu0 0
        %695 = vmatpush1.bf16.msra.mxu0 0
        %696 = vmatprep.subr.bf16.mxu0 0
        %697 = vmatpush1.bf16.msra.mxu0 0
        %698 = vmatprep.subr.bf16.mxu0 0
        %699 = vmatpush1.bf16.msra.mxu0 0
        %700 = vmatprep.mubr.bf16.mxu0 0
        %701 = vmatmul.mubr.bf16.gmra.mrb[0].mxu0 %v663
        %v702 = vpop.f32.mrb[0].mxu0
        %v703 = vadd.f32 0.0, %v702
        %v704 = vpop.f32.mrb[0].mxu0
        %v705 = vpop.f32.mrb[0].mxu0
        %v706 = vpop.f32.mrb[0].mxu0
        %707 = vdwg.mxu0
        %v709 = vsel %vm321, %v564, 0
        %v712 = vsel %vm572, %v568, 0
        %714 = vmatprep.subr.bf16.mxu0 0
        %715 = vmatpush1.bf16.msra.mxu0 %v712
        %716 = vmatprep.subr.bf16.mxu0 0
        %717 = vmatpush1.bf16.msra.mxu0 0
        %718 = vmatprep.subr.bf16.mxu0 0
        %719 = vmatpush1.bf16.msra.mxu0 0
        %720 = vmatprep.subr.bf16.mxu0 0
        %721 = vmatpush1.bf16.msra.mxu0 0
        %722 = vmatprep.subr.bf16.mxu0 0
        %723 = vmatpush1.bf16.msra.mxu0 0
        %724 = vmatprep.subr.bf16.mxu0 0
        %725 = vmatpush1.bf16.msra.mxu0 0
        %726 = vmatprep.subr.bf16.mxu0 0
        %727 = vmatpush1.bf16.msra.mxu0 0
        %728 = vmatprep.subr.bf16.mxu0 0
        %729 = vmatpush1.bf16.msra.mxu0 0
        %730 = vmatprep.subr.bf16.mxu0 0
        %731 = vmatpush1.bf16.msra.mxu0 0
        %732 = vmatprep.subr.bf16.mxu0 0
        %733 = vmatpush1.bf16.msra.mxu0 0
        %734 = vmatprep.subr.bf16.mxu0 0
        %735 = vmatpush1.bf16.msra.mxu0 0
        %736 = vmatprep.subr.bf16.mxu0 0
        %737 = vmatpush1.bf16.msra.mxu0 0
        %738 = vmatprep.subr.bf16.mxu0 0
        %739 = vmatpush1.bf16.msra.mxu0 0
        %740 = vmatprep.subr.bf16.mxu0 0
        %741 = vmatpush1.bf16.msra.mxu0 0
        %742 = vmatprep.subr.bf16.mxu0 0
        %743 = vmatpush1.bf16.msra.mxu0 0
        %744 = vmatprep.subr.bf16.mxu0 0
        %745 = vmatpush1.bf16.msra.mxu0 0
        %746 = vmatprep.mubr.bf16.mxu0 0
        %747 = vmatmul.mubr.bf16.gmra.mrb[0].mxu0 %v709
        %v748 = vpop.f32.mrb[0].mxu0
        %v749 = vadd.f32 0.0, %v748
        %v750 = vpop.f32.mrb[0].mxu0
        %v751 = vpop.f32.mrb[0].mxu0
        %v752 = vpop.f32.mrb[0].mxu0
        %753 = vdwg.mxu0
        %754 = vst.msk [vmem:[%s291] sm:$0xff] %vm321, %v611
        %755 = vst.msk [vmem:[%s291 + $0x8] sm:$0xff] %vm321, %v657
        %756 = vst.msk [vmem:[%s291 + $0x10] sm:$0xff] %vm321, %v703
        %757 = vst.msk [vmem:[%s291 + $0x18] sm:$0xff] %vm321, %v749
        %s758 = sand.u32 %s129, 1
        %s759 = scalar_lea.sflag [#allocation4], %s758
        %s760 = sand.u32 %s129, 1
        %s761 = smul.addr %s760, 32
        %s762 = scalar_lea.vmem [#allocation8], %s761
        // Predicated region
        $region45: #{decoder_forward.18} parent=31 // pred_check
          %p763 = pneg %p139
        $region46: #{decoder_forward.18} parent=31 // pred_check_branch
          %765 = sbr.rel (%p763) target = $region48
        $region47: #{decoder_forward.18} parent=31 // pred_region
          %s766 = smul.u32 4, %s28
          %s768 = ssub.s32 512, 512
          %769 = vsyncadd %s759, %s768
          %s770 = smul.addr %s27, 4
          %s771 = sadd.s32 %s766, %s770
          %s772 = smul.addr %s771, 128
          %s773 = scalar_lea.hbm %s3, %s772
          %s774 = sshll.u32 %s762, 4
          %s775 = int_to_ptr.vmem [resolvable:$true] %s774
          %780 = dma.vmem_to_hbm [thread:$0]  %s775, 512, %s773, %s759, 128, 128, 8
        $region48: #{decoder_forward.18} parent=31 // pred_fallthru
          _
      $region32: #{decoder_forward.18} parent=5 // pred_fallthru
        _
      %p781 = scmp.le.s32.totalorder 2, %s18
      // Predicated region
      $region49: #{decoder_forward.18} parent=5 // pred_check
        %p782 = pneg %p781
      $region50: #{decoder_forward.18} parent=5 // pred_check_branch
        %784 = sbr.rel (%p782) target = $region52
      $region51: #{decoder_forward.18} parent=5 // pred_region
        %s785 = ssub.s32 %s18, 2
        // Predicated region
        $region53: #{decoder_forward.18} parent=51 // pred_check
          %p786 = pneg %p145
        $region54: #{decoder_forward.18} parent=51 // pred_check_branch
          %788 = sbr.rel (%p786) target = $region56
        $region55: #{decoder_forward.18} parent=51 // pred_region
          %s789 = sand.u32 %s130, 1
          %s790 = scalar_lea.sflag [#allocation4], %s789
          %s791 = sand.u32 %s130, 1
          %s792 = smul.addr %s791, 32
          %s793 = scalar_lea.vmem [#allocation8], %s792
          %794 = dma.done %s790, 512
        $region56: #{decoder_forward.18} parent=51 // pred_fallthru
          _
      $region52: #{decoder_forward.18} parent=5 // pred_fallthru
        _
    $region6: #{decoder_forward.18} parent=1 // loop_footer
      %s22 = sadd.s32 1, %s18
    $region7: #{decoder_forward.18} parent=1 // loop_footer_branch
      %17 = sbr.rel target = $region3
    $region8: #{decoder_forward.18} parent=1 // loop_exit
      _
    %795 = vsyncpa [#allocation3], 1
    %s796 = scalar_lea.sflag [#allocation3], 1
    %797 = vsyncpa %s796, 1
    %798 = vsyncpa [#allocation6], 1
    %s799 = scalar_lea.sflag [#allocation6], 1
    %800 = vsyncpa %s799, 1
    %801 = vsyncpa [#allocation4], 1
    %s802 = scalar_lea.sflag [#allocation4], 1
    %803 = vsyncpa %s802, 1

// kernel: decoder_forward.21
$region0: #{decoder_forward.21}
  #allocation0 [shape = 'u32[]', space=smem, size = 0x4, offset = 0x4, fixed_abs, tag = 'smem constant byte address 0x4 - core index']
  #allocation1 [shape = 'u32[144,128]{1,0:T(1,128)}', space=vmem, size = 0x12000, scoped, tag = 'internal scratch']
  #allocation2 [shape = 'f32[16,64]{1,0:T(8,128)}', space=vmem, size = 0x2000, scoped, tag = 'scratch operand']
  %s0 = inlined_call_operand.hbm [shape: f32[16,32], index: 0, kind: input, shape index: {}]
  %s1 = inlined_call_operand.hbm [shape: bf16[32,64], index: 1, kind: input, shape index: {}]
  %s2 = inlined_call_operand.hbm [shape: f32[1,64], index: 2, kind: input, shape index: {}]
  %s3 = inlined_call_operand.hbm [shape: f32[16,64], index: 3, kind: output, shape index: {}]
  %s4 = sld [smem:[#allocation0]]
  $region42: #{decoder_forward.21} parent=0
    _
  %s6 = ssub.s32 1, %s4
  %s7 = scalar_select 0, %s6, %s4
  $region1: #{decoder_forward.21} parent=0
    #allocation3 [shape = 'u8[8192]{0}', space=vmem, size = 0x2000, scoped, tag = 'input window, operand 0, single buffered']
    #allocation4 [shape = 's32[1]{0}', space=sflag, size = 0x4, scoped, tag = 'scoped memory for decoder_forward.21']
    #allocation5 [shape = 's32[1]{0}', space=sflag, size = 0x4, scoped, tag = 'scoped memory for decoder_forward.21']
    #allocation6 [shape = 'u8[8192]{0}', space=vmem, size = 0x2000, scoped, tag = 'input window, operand 1, single buffered']
    #allocation7 [shape = 's32[1]{0}', space=sflag, size = 0x4, scoped, tag = 'scoped memory for decoder_forward.21']
    #allocation8 [shape = 'u8[512]{0}', space=vmem, size = 0x400, scoped, tag = 'input window, operand 2, single buffered']
    #allocation9 [shape = 'u8[8192]{0}', space=vmem, size = 0x2000, scoped, tag = 'output window, operand 0, single buffered']
    %8 = vsyncpa [#allocation4], 0
    %9 = vsyncpa [#allocation7], 0
    %10 = vsyncpa [#allocation5], 0
    // Predicated region
    $region2: #{decoder_forward.21} parent=1 // pred_check
      _
    $region3: #{decoder_forward.21} parent=1 // pred_check_branch
      %12 = sbr.rel (0) target = $region5
    $region4: #{decoder_forward.21} parent=1 // pred_region
      %s14 = ssub.s32 256, 256
      %15 = vsyncadd [#allocation4], %s14
      %s16 = sshll.u32 [#allocation3], 4
      %s17 = int_to_ptr.vmem [resolvable:$true] %s16
      %22 = dma.hbm_to_vmem [thread:$0]  %s0, 256, %s17, [#allocation4], 128, 128, 8
    $region5: #{decoder_forward.21} parent=1 // pred_fallthru
      _
    // Predicated region
    $region6: #{decoder_forward.21} parent=1 // pred_check
      _
    $region7: #{decoder_forward.21} parent=1 // pred_check_branch
      %24 = sbr.rel (0) target = $region9
    $region8: #{decoder_forward.21} parent=1 // pred_region
      %s26 = ssub.s32 256, 256
      %27 = vsyncadd [#allocation7], %s26
      %s28 = sshll.u32 [#allocation6], 4
      %s29 = int_to_ptr.vmem [resolvable:$true] %s28
      %34 = dma.hbm_to_vmem [thread:$0]  %s1, 256, %s29, [#allocation7], 64, 64, 4
    $region9: #{decoder_forward.21} parent=1 // pred_fallthru
      _
    // Predicated region
    $region10: #{decoder_forward.21} parent=1 // pred_check
      _
    $region11: #{decoder_forward.21} parent=1 // pred_check_branch
      %36 = sbr.rel (0) target = $region13
    $region12: #{decoder_forward.21} parent=1 // pred_region
      %s38 = ssub.s32 16, 16
      %39 = vsyncadd [#allocation7], %s38
      %s41 = sshll.u32 [#allocation8], 4
      %s42 = int_to_ptr.vmem [resolvable:$true] %s41
      %44 = dma.hbm_to_vmem [thread:$0]  %s2, 16, %s42, [#allocation7]
    $region13: #{decoder_forward.21} parent=1 // pred_fallthru
      _
    // Predicated region
    $region14: #{decoder_forward.21} parent=1 // pred_check
      _
    $region15: #{decoder_forward.21} parent=1 // pred_check_branch
      %46 = sbr.rel (0) target = $region17
    $region16: #{decoder_forward.21} parent=1 // pred_region
      %47 = dma.done [#allocation4], 256
    $region17: #{decoder_forward.21} parent=1 // pred_fallthru
      _
    // Predicated region
    $region18: #{decoder_forward.21} parent=1 // pred_check
      _
    $region19: #{decoder_forward.21} parent=1 // pred_check_branch
      %49 = sbr.rel (0) target = $region21
    $region20: #{decoder_forward.21} parent=1 // pred_region
      %50 = dma.done [#allocation7], 256
    $region21: #{decoder_forward.21} parent=1 // pred_fallthru
      _
    // Predicated region
    $region22: #{decoder_forward.21} parent=1 // pred_check
      _
    $region23: #{decoder_forward.21} parent=1 // pred_check_branch
      %52 = sbr.rel (0) target = $region25
    $region24: #{decoder_forward.21} parent=1 // pred_region
      %53 = dma.done [#allocation7], 16
    $region25: #{decoder_forward.21} parent=1 // pred_fallthru
      _
    %p55 = scmp.eq.s32.totalorder 0, 0
    // Predicated region
    $region26: #{decoder_forward.21} parent=1 // pred_check
      %p56 = pneg %p55
    $region27: #{decoder_forward.21} parent=1 // pred_check_branch
      %58 = sbr.rel (%p56) target = $region29
    $region28: #{decoder_forward.21} parent=1 // pred_region
      %vm59 = vcmask 523264
      %60 = vst.msk [vmem:[#allocation2] sm:$0xff] %vm59, 0.0
      %61 = vst.msk [vmem:[#allocation2 + $0x8] sm:$0xff] %vm59, 0.0
    $region29: #{decoder_forward.21} parent=1 // pred_fallthru
      _
    %v62 = vld [vmem:[#allocation2] sm:$0xff]
    %v63 = vld [vmem:[#allocation2 + $0x8] sm:$0xff]
    %v64 = vld [vmem:[#allocation3] sm:$0xff]
    %v65 = vld [vmem:[#allocation3 + $0x8] sm:$0xff]
    %v66 = vpack.c.bf16 %v65, %v64
    %v67 = vld [vmem:[#allocation6] sm:$0xf]
    %v68 = vld [vmem:[#allocation6 + $0x4] sm:$0xf]
    %v69 = vld [vmem:[#allocation6 + $0x8] sm:$0xf]
    %v70 = vld [vmem:[#allocation6 + $0xc] sm:$0xf]
    %v75 = vunpack.c.l.b16 %v67
    %v76 = vunpack.c.l.b16 %v68
    %v77 = vunpack.c.l.b16 %v69
    %v78 = vunpack.c.l.b16 %v70
    %v79 = vpack.c.b16 %v76, %v75
    %v80 = vpack.c.b16 %v78, %v77
    %vm83 = vcmask 261120
    %v85 = vsel %vm83, %v66, 0
    %87 = vmatprep.subr.bf16.mxu0 0
    %88 = vmatpush1.bf16.msra.mxu0 %v79
    %89 = vmatprep.subr.bf16.mxu0 0
    %90 = vmatpush1.bf16.msra.mxu0 %v80
    %91 = vmatprep.subr.bf16.mxu0 0
    %92 = vmatpush1.bf16.msra.mxu0 0
    %93 = vmatprep.subr.bf16.mxu0 0
    %94 = vmatpush1.bf16.msra.mxu0 0
    %95 = vmatprep.subr.bf16.mxu0 0
    %96 = vmatpush1.bf16.msra.mxu0 0
    %97 = vmatprep.subr.bf16.mxu0 0
    %98 = vmatpush1.bf16.msra.mxu0 0
    %99 = vmatprep.subr.bf16.mxu0 0
    %100 = vmatpush1.bf16.msra.mxu0 0
    %101 = vmatprep.subr.bf16.mxu0 0
    %102 = vmatpush1.bf16.msra.mxu0 0
    %103 = vmatprep.subr.bf16.mxu0 0
    %104 = vmatpush1.bf16.msra.mxu0 0
    %105 = vmatprep.subr.bf16.mxu0 0
    %106 = vmatpush1.bf16.msra.mxu0 0
    %107 = vmatprep.subr.bf16.mxu0 0
    %108 = vmatpush1.bf16.msra.mxu0 0
    %109 = vmatprep.subr.bf16.mxu0 0
    %110 = vmatpush1.bf16.msra.mxu0 0
    %111 = vmatprep.subr.bf16.mxu0 0
    %112 = vmatpush1.bf16.msra.mxu0 0
    %113 = vmatprep.subr.bf16.mxu0 0
    %114 = vmatpush1.bf16.msra.mxu0 0
    %115 = vmatprep.subr.bf16.mxu0 0
    %116 = vmatpush1.bf16.msra.mxu0 0
    %117 = vmatprep.subr.bf16.mxu0 0
    %118 = vmatpush1.bf16.msra.mxu0 0
    %119 = vmatprep.mubr.bf16.mxu0 0
    %120 = vmatmul.mubr.bf16.gmra.mrb[0].mxu0 %v85
    %v121 = vpop.f32.mrb[0].mxu0
    %v122 = vadd.f32 0.0, %v121
    %v123 = vpop.f32.mrb[0].mxu0
    %v124 = vpop.f32.mrb[0].mxu0
    %v125 = vadd.f32 0.0, %v124
    %v126 = vpop.f32.mrb[0].mxu0
    %127 = vdwg.mxu0
    %v128 = vadd.f32 %v62, %v122
    %v129 = vadd.f32 %v63, %v125
    %vm130 = vcmask 523264
    %131 = vst.msk [vmem:[#allocation2] sm:$0xff] %vm130, %v128
    %132 = vst.msk [vmem:[#allocation2 + $0x8] sm:$0xff] %vm130, %v129
    // Predicated region
    $region30: #{decoder_forward.21} parent=1 // pred_check
      %p133 = pneg %p55
    $region31: #{decoder_forward.21} parent=1 // pred_check_branch
      %135 = sbr.rel (%p133) target = $region33
    $region32: #{decoder_forward.21} parent=1 // pred_region
      %v136 = vld [vmem:[#allocation2] sm:$0xff]
      %v137 = vld [vmem:[#allocation2 + $0x8] sm:$0xff]
      %v138 = vld [vmem:[#allocation8] sm:$0x1]
      %v140 = vlaneseq
      %v141 = vshrl.u32 %v140, 7
      %v142 = vsub.s32 0, %v141
      %v143 = vrot.slane %v138, %v142
      %v145 = vadd.f32 %v136, %v143
      %v146 = vadd.f32 %v137, %v143
      %147 = vst.msk [vmem:[#allocation9] sm:$0xff] %vm130, %v145
      %148 = vst.msk [vmem:[#allocation9 + $0x8] sm:$0xff] %vm130, %v146
    $region33: #{decoder_forward.21} parent=1 // pred_fallthru
      _
    // Predicated region
    $region34: #{decoder_forward.21} parent=1 // pred_check
      _
    $region35: #{decoder_forward.21} parent=1 // pred_check_branch
      %150 = sbr.rel (0) target = $region37
    $region36: #{decoder_forward.21} parent=1 // pred_region
      %s152 = ssub.s32 256, 256
      %153 = vsyncadd [#allocation5], %s152
      %s154 = sshll.u32 [#allocation9], 4
      %s155 = int_to_ptr.vmem [resolvable:$true] %s154
      %160 = dma.vmem_to_hbm [thread:$0]  %s155, 256, %s3, [#allocation5], 128, 128, 8
    $region37: #{decoder_forward.21} parent=1 // pred_fallthru
      _
    // Predicated region
    $region38: #{decoder_forward.21} parent=1 // pred_check
      _
    $region39: #{decoder_forward.21} parent=1 // pred_check_branch
      %162 = sbr.rel (0) target = $region41
    $region40: #{decoder_forward.21} parent=1 // pred_region
      %163 = dma.done [#allocation5], 256
    $region41: #{decoder_forward.21} parent=1 // pred_fallthru
      _
    %164 = vsyncpa [#allocation4], 1
    %165 = vsyncpa [#allocation7], 1
    %166 = vsyncpa [#allocation5], 1

// kernel: decoder_forward.33
$region0: #{decoder_forward.33}
  #allocation0 [shape = 'u32[]', space=smem, size = 0x4, offset = 0x4, fixed_abs, tag = 'smem constant byte address 0x4 - core index']
  #allocation1 [shape = 'u32[144,128]{1,0:T(1,128)}', space=vmem, size = 0x12000, scoped, tag = 'internal scratch']
  %s0 = inlined_call_operand.hbm [shape: f32[16,32], index: 0, kind: input, shape index: {}]
  %s1 = inlined_call_operand.hbm [shape: f32[1,32], index: 1, kind: input, shape index: {}]
  %s2 = inlined_call_operand.hbm [shape: f32[1,32], index: 2, kind: input, shape index: {}]
  %s3 = inlined_call_operand.hbm [shape: f32[64,32], index: 3, kind: input, shape index: {}]
  %s4 = inlined_call_operand.hbm [shape: f32[16,64], index: 4, kind: output, shape index: {}]
  %s5 = sld [smem:[#allocation0]]
  $region42: #{decoder_forward.33} parent=0
    _
  %s7 = ssub.s32 1, %s5
  %s8 = scalar_select 0, %s7, %s5
  $region1: #{decoder_forward.33} parent=0
    #allocation2 [shape = 'u8[8192]{0}', space=vmem, size = 0x2000, scoped, tag = 'input window, operand 0, single buffered']
    #allocation3 [shape = 's32[1]{0}', space=sflag, size = 0x4, scoped, tag = 'scoped memory for decoder_forward.33']
    #allocation4 [shape = 's32[1]{0}', space=sflag, size = 0x4, scoped, tag = 'scoped memory for decoder_forward.33']
    #allocation5 [shape = 'u8[512]{0}', space=vmem, size = 0x400, scoped, tag = 'input window, operand 1, single buffered']
    #allocation6 [shape = 's32[1]{0}', space=sflag, size = 0x4, scoped, tag = 'scoped memory for decoder_forward.33']
    #allocation7 [shape = 'u8[512]{0}', space=vmem, size = 0x400, scoped, tag = 'input window, operand 2, single buffered']
    #allocation8 [shape = 'u8[32768]{0}', space=vmem, size = 0x8000, scoped, tag = 'input window, operand 3, single buffered']
    #allocation9 [shape = 's32[1]{0}', space=sflag, size = 0x4, scoped, tag = 'scoped memory for decoder_forward.33']
    #allocation10 [shape = 'u8[8192]{0}', space=vmem, size = 0x2000, scoped, tag = 'output window, operand 0, single buffered']
    %9 = vsyncpa [#allocation3], 0
    %10 = vsyncpa [#allocation6], 0
    %11 = vsyncpa [#allocation9], 0
    %12 = vsyncpa [#allocation4], 0
    // Predicated region
    $region2: #{decoder_forward.33} parent=1 // pred_check
      _
    $region3: #{decoder_forward.33} parent=1 // pred_check_branch
      %14 = sbr.rel (0) target = $region5
    $region4: #{decoder_forward.33} parent=1 // pred_region
      %s16 = ssub.s32 256, 256
      %17 = vsyncadd [#allocation3], %s16
      %s18 = sshll.u32 [#allocation2], 4
      %s19 = int_to_ptr.vmem [resolvable:$true] %s18
      %24 = dma.hbm_to_vmem [thread:$0]  %s0, 256, %s19, [#allocation3], 128, 128, 8
    $region5: #{decoder_forward.33} parent=1 // pred_fallthru
      _
    // Predicated region
    $region6: #{decoder_forward.33} parent=1 // pred_check
      _
    $region7: #{decoder_forward.33} parent=1 // pred_check_branch
      %26 = sbr.rel (0) target = $region9
    $region8: #{decoder_forward.33} parent=1 // pred_region
      %s28 = ssub.s32 16, 16
      %29 = vsyncadd [#allocation6], %s28
      %s31 = sshll.u32 [#allocation5], 4
      %s32 = int_to_ptr.vmem [resolvable:$true] %s31
      %34 = dma.hbm_to_vmem [thread:$0]  %s1, 16, %s32, [#allocation6]
    $region9: #{decoder_forward.33} parent=1 // pred_fallthru
      _
    // Predicated region
    $region10: #{decoder_forward.33} parent=1 // pred_check
      _
    $region11: #{decoder_forward.33} parent=1 // pred_check_branch
      %36 = sbr.rel (0) target = $region13
    $region12: #{decoder_forward.33} parent=1 // pred_region
      %s38 = ssub.s32 16, 16
      %39 = vsyncadd [#allocation6], %s38
      %s41 = sshll.u32 [#allocation7], 4
      %s42 = int_to_ptr.vmem [resolvable:$true] %s41
      %44 = dma.hbm_to_vmem [thread:$0]  %s2, 16, %s42, [#allocation6]
    $region13: #{decoder_forward.33} parent=1 // pred_fallthru
      _
    // Predicated region
    $region14: #{decoder_forward.33} parent=1 // pred_check
      _
    $region15: #{decoder_forward.33} parent=1 // pred_check_branch
      %46 = sbr.rel (0) target = $region17
    $region16: #{decoder_forward.33} parent=1 // pred_region
      %s48 = ssub.s32 1024, 1024
      %49 = vsyncadd [#allocation9], %s48
      %s50 = sshll.u32 [#allocation8], 4
      %s51 = int_to_ptr.vmem [resolvable:$true] %s50
      %56 = dma.hbm_to_vmem [thread:$0]  %s3, 1024, %s51, [#allocation9], 128, 128, 8
    $region17: #{decoder_forward.33} parent=1 // pred_fallthru
      _
    // Predicated region
    $region18: #{decoder_forward.33} parent=1 // pred_check
      _
    $region19: #{decoder_forward.33} parent=1 // pred_check_branch
      %58 = sbr.rel (0) target = $region21
    $region20: #{decoder_forward.33} parent=1 // pred_region
      %59 = dma.done [#allocation3], 256
    $region21: #{decoder_forward.33} parent=1 // pred_fallthru
      _
    // Predicated region
    $region22: #{decoder_forward.33} parent=1 // pred_check
      _
    $region23: #{decoder_forward.33} parent=1 // pred_check_branch
      %61 = sbr.rel (0) target = $region25
    $region24: #{decoder_forward.33} parent=1 // pred_region
      %62 = dma.done [#allocation6], 16
    $region25: #{decoder_forward.33} parent=1 // pred_fallthru
      _
    // Predicated region
    $region26: #{decoder_forward.33} parent=1 // pred_check
      _
    $region27: #{decoder_forward.33} parent=1 // pred_check_branch
      %64 = sbr.rel (0) target = $region29
    $region28: #{decoder_forward.33} parent=1 // pred_region
      %65 = dma.done [#allocation6], 16
    $region29: #{decoder_forward.33} parent=1 // pred_fallthru
      _
    // Predicated region
    $region30: #{decoder_forward.33} parent=1 // pred_check
      _
    $region31: #{decoder_forward.33} parent=1 // pred_check_branch
      %67 = sbr.rel (0) target = $region33
    $region32: #{decoder_forward.33} parent=1 // pred_region
      %68 = dma.done [#allocation9], 1024
    $region33: #{decoder_forward.33} parent=1 // pred_fallthru
      _
    %v70 = vld [vmem:[#allocation2] sm:$0xff]
    %v71 = vld [vmem:[#allocation2 + $0x8] sm:$0xff]
    %vm72 = vcmask 261120
    %v73 = vsel %vm72, %v70, 0.0
    %74 = vadd.xlane.f32.xlu0 %v73
    %v75 = vpop.xlane.xlu0 %74
    %v76 = vsel %vm72, %v71, 0.0
    %77 = vadd.xlane.f32.xlu0 %v76
    %v78 = vpop.xlane.xlu0 %77
    %v79 = vrcp.pop 32.0
    %v80 = vmul.f32 %v75, %v79
    %v81 = vmul.f32 %v78, %v79
    %v82 = vsub.f32 %v70, %v80
    %v83 = vsub.f32 %v71, %v81
    %v84 = vmul.f32 %v82, %v82
    %v85 = vmul.f32 %v83, %v83
    %v86 = vsel %vm72, %v84, 0.0
    %87 = vadd.xlane.f32.xlu0 %v86
    %v88 = vpop.xlane.xlu0 %87
    %v89 = vsel %vm72, %v85, 0.0
    %90 = vadd.xlane.f32.xlu0 %v89
    %v91 = vpop.xlane.xlu0 %90
    %v92 = vmul.f32 %v88, %v79
    %v93 = vmul.f32 %v91, %v79
    %v94 = vadd.f32 %v92, 1e-05
    %v95 = vadd.f32 %v93, 1e-05
    %v96 = vrsqrt.pop %v94
    %v97 = vrsqrt.pop %v95
    %v98 = vmul.f32 %v82, %v96
    %v99 = vmul.f32 %v83, %v97
    %v100 = vld [vmem:[#allocation5] sm:$0x1]
    %v102 = vlaneseq
    %v103 = vshrl.u32 %v102, 7
    %v104 = vsub.s32 0, %v103
    %v105 = vrot.slane %v100, %v104
    %v107 = vmul.f32 %v98, %v105
    %v108 = vmul.f32 %v99, %v105
    %v109 = vld [vmem:[#allocation7] sm:$0x1]
    %v111 = vlaneseq
    %v112 = vshrl.u32 %v111, 7
    %v113 = vsub.s32 0, %v112
    %v114 = vrot.slane %v109, %v113
    %v116 = vadd.f32 %v107, %v114
    %v117 = vadd.f32 %v108, %v114
    %v118 = vpack.c.bf16 %v117, %v116
    %v119 = vld [vmem:[#allocation8] sm:$0xff]
    %v120 = vld [vmem:[#allocation8 + $0x8] sm:$0xff]
    %v121 = vld [vmem:[#allocation8 + $0x10] sm:$0xff]
    %v122 = vld [vmem:[#allocation8 + $0x18] sm:$0xff]
    %v123 = vld [vmem:[#allocation8 + $0x20] sm:$0xff]
    %v124 = vld [vmem:[#allocation8 + $0x28] sm:$0xff]
    %v125 = vld [vmem:[#allocation8 + $0x30] sm:$0xff]
    %v126 = vld [vmem:[#allocation8 + $0x38] sm:$0xff]
    %v127 = vpack.c.bf16 %v120, %v119
    %v128 = vpack.c.bf16 %v122, %v121
    %v129 = vpack.c.bf16 %v124, %v123
    %v130 = vpack.c.bf16 %v126, %v125
    %v132 = vsel %vm72, %v118, 0
    %v135 = vsel %vm72, %v127, 0
    %v138 = vsel %vm72, %v128, 0
    %v141 = vsel %vm72, %v129, 0
    %v144 = vsel %vm72, %v130, 0
    %146 = vmatprep.subr.bf16.mxu0 0
    %147 = vmatpush1.bf16.xpose.msra.mxu0 %v135
    %148 = vmatprep.subr.bf16.mxu0 0
    %149 = vmatpush1.bf16.xpose.msra.mxu0 %v138
    %150 = vmatprep.subr.bf16.mxu0 0
    %151 = vmatpush1.bf16.xpose.msra.mxu0 %v141
    %152 = vmatprep.subr.bf16.mxu0 0
    %153 = vmatpush1.bf16.xpose.msra.mxu0 %v144
    %154 = vmatprep.subr.bf16.mxu0 0
    %155 = vmatpush1.bf16.xpose.msra.mxu0 0
    %156 = vmatprep.subr.bf16.mxu0 0
    %157 = vmatpush1.bf16.xpose.msra.mxu0 0
    %158 = vmatprep.subr.bf16.mxu0 0
    %159 = vmatpush1.bf16.xpose.msra.mxu0 0
    %160 = vmatprep.subr.bf16.mxu0 0
    %161 = vmatpush1.bf16.xpose.msra.mxu0 0
    %162 = vmatprep.subr.bf16.mxu0 0
    %163 = vmatpush1.bf16.xpose.msra.mxu0 0
    %164 = vmatprep.subr.bf16.mxu0 0
    %165 = vmatpush1.bf16.xpose.msra.mxu0 0
    %166 = vmatprep.subr.bf16.mxu0 0
    %167 = vmatpush1.bf16.xpose.msra.mxu0 0
    %168 = vmatprep.subr.bf16.mxu0 0
    %169 = vmatpush1.bf16.xpose.msra.mxu0 0
    %170 = vmatprep.subr.bf16.mxu0 0
    %171 = vmatpush1.bf16.xpose.msra.mxu0 0
    %172 = vmatprep.subr.bf16.mxu0 0
    %173 = vmatpush1.bf16.xpose.msra.mxu0 0
    %174 = vmatprep.subr.bf16.mxu0 0
    %175 = vmatpush1.bf16.xpose.msra.mxu0 0
    %176 = vmatprep.subr.bf16.mxu0 0
    %177 = vmatpush1.bf16.xpose.msra.mxu0 0
    %178 = vmatprep.mubr.bf16.mxu0 0
    %179 = vmatmul.mubr.bf16.gmra.mrb[0].mxu0 %v132
    %v180 = vpop.f32.mrb[0].mxu0
    %v181 = vadd.f32 0.0, %v180
    %v182 = vpop.f32.mrb[0].mxu0
    %v183 = vpop.f32.mrb[0].mxu0
    %v184 = vadd.f32 0.0, %v183
    %v185 = vpop.f32.mrb[0].mxu0
    %186 = vdwg.mxu0
    %vm187 = vcmask 523264
    %188 = vst.msk [vmem:[#allocation10] sm:$0xff] %vm187, %v181
    %189 = vst.msk [vmem:[#allocation10 + $0x8] sm:$0xff] %vm187, %v184
    // Predicated region
    $region34: #{decoder_forward.33} parent=1 // pred_check
      _
    $region35: #{decoder_forward.33} parent=1 // pred_check_branch
      %191 = sbr.rel (0) target = $region37
    $region36: #{decoder_forward.33} parent=1 // pred_region
      %s193 = ssub.s32 256, 256
      %194 = vsyncadd [#allocation4], %s193
      %s195 = sshll.u32 [#allocation10], 4
      %s196 = int_to_ptr.vmem [resolvable:$true] %s195
      %201 = dma.vmem_to_hbm [thread:$0]  %s196, 256, %s4, [#allocation4], 128, 128, 8
    $region37: #{decoder_forward.33} parent=1 // pred_fallthru
      _
    // Predicated region
    $region38: #{decoder_forward.33} parent=1 // pred_check
      _
    $region39: #{decoder_forward.33} parent=1 // pred_check_branch
      %203 = sbr.rel (0) target = $region41
    $region40: #{decoder_forward.33} parent=1 // pred_region
      %204 = dma.done [#allocation4], 256
    $region41: #{decoder_forward.33} parent=1 // pred_fallthru
      _
    %205 = vsyncpa [#allocation3], 1
    %206 = vsyncpa [#allocation6], 1
    %207 = vsyncpa [#allocation9], 1
    %208 = vsyncpa [#allocation4], 1

// kernel: decoder_forward.22
$region0: #{decoder_forward.22}
  #allocation0 [shape = 'u32[]', space=smem, size = 0x4, offset = 0x4, fixed_abs, tag = 'smem constant byte address 0x4 - core index']
  #allocation1 [shape = 'u32[144,128]{1,0:T(1,128)}', space=vmem, size = 0x12000, scoped, tag = 'internal scratch']
  %s0 = inlined_call_operand.hbm [shape: f32[2,4,8,8], index: 0, kind: input, shape index: {}]
  %s1 = inlined_call_operand.hbm [shape: f32[2,4,8,8], index: 1, kind: input, shape index: {}]
  %s2 = inlined_call_operand.hbm [shape: f32[2,4,8,8], index: 2, kind: input, shape index: {}]
  %s3 = inlined_call_operand.hbm [shape: f32[2,4,8,8], index: 3, kind: output, shape index: {}]
  %s4 = sld [smem:[#allocation0]]
  $region57: #{decoder_forward.22} parent=0
    _
  %s6 = ssub.s32 1, %s4
  %s7 = scalar_select 0, %s6, %s4
  $region1: #{decoder_forward.22} parent=0
    #allocation2 [shape = 'u8[32768]{0}', space=vmem, size = 0x8000, scoped, tag = 'input window, operand 0']
    #allocation3 [shape = 's32[2]{0}', space=sflag, size = 0x8, scoped, tag = 'scoped memory for decoder_forward.22']
    #allocation4 [shape = 's32[2]{0}', space=sflag, size = 0x8, scoped, tag = 'scoped memory for decoder_forward.22']
    #allocation5 [shape = 'u8[32768]{0}', space=vmem, size = 0x8000, scoped, tag = 'input window, operand 1']
    #allocation6 [shape = 's32[2]{0}', space=sflag, size = 0x8, scoped, tag = 'scoped memory for decoder_forward.22']
    #allocation7 [shape = 'u8[32768]{0}', space=vmem, size = 0x8000, scoped, tag = 'input window, operand 2']
    #allocation8 [shape = 'u8[32768]{0}', space=vmem, size = 0x8000, scoped, tag = 'output window, operand 0']
    %8 = vsyncpa [#allocation3], 0
    %s9 = scalar_lea.sflag [#allocation3], 1
    %10 = vsyncpa %s9, 0
    %11 = vsyncpa [#allocation6], 0
    %s12 = scalar_lea.sflag [#allocation6], 1
    %13 = vsyncpa %s12, 0
    %14 = vsyncpa [#allocation4], 0
    %s15 = scalar_lea.sflag [#allocation4], 1
    %16 = vsyncpa %s15, 0
    loop: start=0, step=1, limit=4
    $region2: #{decoder_forward.22} parent=1 // loop_pre_header
      _
    $region3: #{decoder_forward.22} parent=1 // loop_header
      %s18 = sphi 0, %s22
      %p19 = scmp.ge.s32.totalorder %s18, 4
      %s25 = sphi 0, %s37
      %s26 = sphi 0, %s33
      %s27 = sphi 0, %s25
      %s28 = sphi 0, %s26
      %s29 = sphi 0, %s27
      %s30 = sphi 0, %s28
      %s42 = sphi 0, %s44
      %s45 = sphi 0, %s42
      %s46 = sphi 0, %s45
      %s62 = sphi 0, %s46
      %s70 = sphi 0, %s72
      %s73 = sphi 0, %s70
      %s74 = sphi 0, %s73
      %s90 = sphi 0, %s74
      %s98 = sphi 0, %s100
      %s101 = sphi 0, %s98
      %s102 = sphi 0, %s101
      %s118 = sphi 0, %s102
      %s126 = sphi 0, %s128
      %s129 = sphi 0, %s126
      %s130 = sphi 0, %s129
      %s146 = sphi 0, %s130
    $region4: #{decoder_forward.22} parent=1 // loop_header_branch
      %21 = sbr.rel (%p19) target = $region8
    $region5: #{decoder_forward.22} parent=1 // loop_body
      %s23 = ssub.s32 %s18, 1
      %s24 = ssub.s32 %s18, 2
      %s31 = sadd.s32 1, %s26
      %p32 = scmp.ge.s32.totalorder %s31, 1
      %s33 = scalar_select %p32, 0, %s31
      %s34 = sadd.s32 1, %s25
      %s35 = scalar_select %p32, %s34, %s25
      %p36 = scmp.ge.s32.totalorder %s35, 2
      %s37 = scalar_select %p36, 0, %s35
      %s38 = ssub.s32 %s25, %s37
      %s39 = ssub.s32 %s26, %s33
      %s40 = sor.u32 %s38, %s39
      %p41 = scmp.eq.s32.totalorder %s40, 0
      %s43 = sadd.s32 %s42, 1
      %s44 = scalar_select %p41, %s42, %s43
      %p47 = pneg %p41
      %p48 = scmp.eq.s32.totalorder %s18, 1
      %p49 = por %p47, %p48
      %p50 = scmp.ne.s32.totalorder %s42, %s45
      %p51 = scmp.eq.s32.totalorder %s18, 0
      %p52 = por %p50, %p51
      %p53 = scmp.ne.s32.totalorder %s42, %s45
      %p54 = scmp.eq.s32.totalorder %s23, 1
      %p55 = por %p53, %p54
      %p56 = scmp.ne.s32.totalorder %s45, %s46
      %p57 = scmp.eq.s32.totalorder %s23, 0
      %p58 = por %p56, %p57
      %p59 = scmp.ne.s32.totalorder %s45, %s46
      %p60 = scmp.eq.s32.totalorder %s24, 1
      %p61 = por %p59, %p60
      %p63 = scmp.ne.s32.totalorder %s46, %s62
      %p64 = scmp.eq.s32.totalorder %s24, 0
      %p65 = por %p63, %p64
      %s66 = ssub.s32 %s25, %s37
      %s67 = ssub.s32 %s26, %s33
      %s68 = sor.u32 %s66, %s67
      %p69 = scmp.eq.s32.totalorder %s68, 0
      %s71 = sadd.s32 %s70, 1
      %s72 = scalar_select %p69, %s70, %s71
      %p75 = pneg %p69
      %p76 = scmp.eq.s32.totalorder %s18, 1
      %p77 = por %p75, %p76
      %p78 = scmp.ne.s32.totalorder %s70, %s73
      %p79 = scmp.eq.s32.totalorder %s18, 0
      %p80 = por %p78, %p79
      %p81 = scmp.ne.s32.totalorder %s70, %s73
      %p82 = scmp.eq.s32.totalorder %s23, 1
      %p83 = por %p81, %p82
      %p84 = scmp.ne.s32.totalorder %s73, %s74
      %p85 = scmp.eq.s32.totalorder %s23, 0
      %p86 = por %p84, %p85
      %p87 = scmp.ne.s32.totalorder %s73, %s74
      %p88 = scmp.eq.s32.totalorder %s24, 1
      %p89 = por %p87, %p88
      %p91 = scmp.ne.s32.totalorder %s74, %s90
      %p92 = scmp.eq.s32.totalorder %s24, 0
      %p93 = por %p91, %p92
      %s94 = ssub.s32 %s25, %s37
      %s95 = ssub.s32 %s26, %s33
      %s96 = sor.u32 %s94, %s95
      %p97 = scmp.eq.s32.totalorder %s96, 0
      %s99 = sadd.s32 %s98, 1
      %s100 = scalar_select %p97, %s98, %s99
      %p103 = pneg %p97
      %p104 = scmp.eq.s32.totalorder %s18, 1
      %p105 = por %p103, %p104
      %p106 = scmp.ne.s32.totalorder %s98, %s101
      %p107 = scmp.eq.s32.totalorder %s18, 0
      %p108 = por %p106, %p107
      %p109 = scmp.ne.s32.totalorder %s98, %s101
      %p110 = scmp.eq.s32.totalorder %s23, 1
      %p111 = por %p109, %p110
      %p112 = scmp.ne.s32.totalorder %s101, %s102
      %p113 = scmp.eq.s32.totalorder %s23, 0
      %p114 = por %p112, %p113
      %p115 = scmp.ne.s32.totalorder %s101, %s102
      %p116 = scmp.eq.s32.totalorder %s24, 1
      %p117 = por %p115, %p116
      %p119 = scmp.ne.s32.totalorder %s102, %s118
      %p120 = scmp.eq.s32.totalorder %s24, 0
      %p121 = por %p119, %p120
      %s122 = ssub.s32 %s25, %s37
      %s123 = ssub.s32 %s26, %s33
      %s124 = sor.u32 %s122, %s123
      %p125 = scmp.eq.s32.totalorder %s124, 0
      %s127 = sadd.s32 %s126, 1
      %s128 = scalar_select %p125, %s126, %s127
      %p131 = pneg %p125
      %p132 = scmp.eq.s32.totalorder %s18, 1
      %p133 = por %p131, %p132
      %p134 = scmp.ne.s32.totalorder %s126, %s129
      %p135 = scmp.eq.s32.totalorder %s18, 0
      %p136 = por %p134, %p135
      %p137 = scmp.ne.s32.totalorder %s126, %s129
      %p138 = scmp.eq.s32.totalorder %s23, 1
      %p139 = por %p137, %p138
      %p140 = scmp.ne.s32.totalorder %s129, %s130
      %p141 = scmp.eq.s32.totalorder %s23, 0
      %p142 = por %p140, %p141
      %p143 = scmp.ne.s32.totalorder %s129, %s130
      %p144 = scmp.eq.s32.totalorder %s24, 1
      %p145 = por %p143, %p144
      %p147 = scmp.ne.s32.totalorder %s130, %s146
      %p148 = scmp.eq.s32.totalorder %s24, 0
      %p149 = por %p147, %p148
      %p150 = scmp.le.s32.totalorder 1, %s18
      %p151 = scmp.lt.s32.totalorder %s18, 3
      %p152 = pnand %p150, %p151
      %p153 = pneg %p152
      // Predicated region
      $region9: #{decoder_forward.22} parent=5 // pred_check
        _
      $region10: #{decoder_forward.22} parent=5 // pred_check_branch
        %155 = sbr.rel (%p152) target = $region12
      $region11: #{decoder_forward.22} parent=5 // pred_region
        %s156 = ssub.s32 %s18, 1
      $region12: #{decoder_forward.22} parent=5 // pred_fallthru
        _
      %p157 = scmp.lt.s32.totalorder %s18, 2
      // Predicated region
      $region13: #{decoder_forward.22} parent=5 // pred_check
        %p158 = pneg %p157
      $region14: #{decoder_forward.22} parent=5 // pred_check_branch
        %160 = sbr.rel (%p158) target = $region16
      $region15: #{decoder_forward.22} parent=5 // pred_region
        // Predicated region
        $region17: #{decoder_forward.22} parent=15 // pred_check
          %p161 = pneg %p52
        $region18: #{decoder_forward.22} parent=15 // pred_check_branch
          %163 = sbr.rel (%p161) target = $region20
        $region19: #{decoder_forward.22} parent=15 // pred_region
          %s164 = sand.u32 %s42, 1
          %s165 = scalar_lea.sflag [#allocation3], %s164
          %s166 = sand.u32 %s42, 1
          %s167 = smul.addr %s166, 32
          %s168 = scalar_lea.vmem [#allocation2], %s167
          %s169 = smul.u32 4, %s26
          %s171 = ssub.s32 512, 512
          %172 = vsyncadd %s165, %s171
          %s173 = smul.addr %s25, 4
          %s174 = sadd.s32 %s169, %s173
          %s175 = smul.addr %s174, 128
          %s176 = scalar_lea.hbm %s0, %s175
          %s177 = sshll.u32 %s168, 4
          %s178 = int_to_ptr.vmem [resolvable:$true] %s177
          %183 = dma.hbm_to_vmem [thread:$0]  %s176, 512, %s178, %s165, 128, 128, 8
        $region20: #{decoder_forward.22} parent=15 // pred_fallthru
          _
        // Predicated region
        $region21: #{decoder_forward.22} parent=15 // pred_check
          %p184 = pneg %p80
        $region22: #{decoder_forward.22} parent=15 // pred_check_branch
          %186 = sbr.rel (%p184) target = $region24
        $region23: #{decoder_forward.22} parent=15 // pred_region
          %s187 = sand.u32 %s18, 1
          %s188 = scalar_lea.sflag [#allocation6], %s187
          %s189 = sand.u32 %s70, 1
          %s190 = smul.addr %s189, 32
          %s191 = scalar_lea.vmem [#allocation5], %s190
          %s192 = smul.u32 4, %s26
          %s194 = ssub.s32 512, 512
          %195 = vsyncadd %s188, %s194
          %s196 = smul.addr %s25, 4
          %s197 = sadd.s32 %s192, %s196
          %s198 = smul.addr %s197, 128
          %s199 = scalar_lea.hbm %s1, %s198
          %s200 = sshll.u32 %s191, 4
          %s201 = int_to_ptr.vmem [resolvable:$true] %s200
          %206 = dma.hbm_to_vmem [thread:$0]  %s199, 512, %s201, %s188, 128, 128, 8
        $region24: #{decoder_forward.22} parent=15 // pred_fallthru
          _
        // Predicated region
        $region25: #{decoder_forward.22} parent=15 // pred_check
          %p207 = pneg %p108
        $region26: #{decoder_forward.22} parent=15 // pred_check_branch
          %209 = sbr.rel (%p207) target = $region28
        $region27: #{decoder_forward.22} parent=15 // pred_region
          %s210 = sand.u32 %s18, 1
          %s211 = scalar_lea.sflag [#allocation6], %s210
          %s212 = sand.u32 %s98, 1
          %s213 = smul.addr %s212, 32
          %s214 = scalar_lea.vmem [#allocation7], %s213
          %s215 = smul.u32 4, %s26
          %s217 = ssub.s32 512, 512
          %218 = vsyncadd %s211, %s217
          %s219 = smul.addr %s25, 4
          %s220 = sadd.s32 %s215, %s219
          %s221 = smul.addr %s220, 128
          %s222 = scalar_lea.hbm %s2, %s221
          %s223 = sshll.u32 %s214, 4
          %s224 = int_to_ptr.vmem [resolvable:$true] %s223
          %229 = dma.hbm_to_vmem [thread:$0]  %s222, 512, %s224, %s211, 128, 128, 8
        $region28: #{decoder_forward.22} parent=15 // pred_fallthru
          _
      $region16: #{decoder_forward.22} parent=5 // pred_fallthru
        _
      %p230 = scmp.le.s32.totalorder 1, %s18
      %p231 = scmp.lt.s32.totalorder %s18, 3
      %p232 = pnand %p230, %p231
      %p233 = pneg %p232
      // Predicated region
      $region29: #{decoder_forward.22} parent=5 // pred_check
        _
      $region30: #{decoder_forward.22} parent=5 // pred_check_branch
        %235 = sbr.rel (%p232) target = $region32
      $region31: #{decoder_forward.22} parent=5 // pred_region
        %s236 = ssub.s32 %s18, 1
        %s237 = sand.u32 %s45, 1
        %s238 = scalar_lea.sflag [#allocation3], %s237
        %s239 = sand.u32 %s45, 1
        %s240 = smul.addr %s239, 32
        %s241 = scalar_lea.vmem [#allocation2], %s240
        // Predicated region
        $region33: #{decoder_forward.22} parent=31 // pred_check
          %p242 = pneg %p58
        $region34: #{decoder_forward.22} parent=31 // pred_check_branch
          %244 = sbr.rel (%p242) target = $region36
        $region35: #{decoder_forward.22} parent=31 // pred_region
          %245 = dma.done %s238, 512
        $region36: #{decoder_forward.22} parent=31 // pred_fallthru
          _
        %s246 = sand.u32 %s23, 1
        %s247 = scalar_lea.sflag [#allocation6], %s246
        %s248 = sand.u32 %s73, 1
        %s249 = smul.addr %s248, 32
        %s250 = scalar_lea.vmem [#allocation5], %s249
        // Predicated region
        $region37: #{decoder_forward.22} parent=31 // pred_check
          %p251 = pneg %p86
        $region38: #{decoder_forward.22} parent=31 // pred_check_branch
          %253 = sbr.rel (%p251) target = $region40
        $region39: #{decoder_forward.22} parent=31 // pred_region
          %254 = dma.done %s247, 512
        $region40: #{decoder_forward.22} parent=31 // pred_fallthru
          _
        %s255 = sand.u32 %s23, 1
        %s256 = scalar_lea.sflag [#allocation6], %s255
        %s257 = sand.u32 %s101, 1
        %s258 = smul.addr %s257, 32
        %s259 = scalar_lea.vmem [#allocation7], %s258
        // Predicated region
        $region41: #{decoder_forward.22} parent=31 // pred_check
          %p260 = pneg %p114
        $region42: #{decoder_forward.22} parent=31 // pred_check_branch
          %262 = sbr.rel (%p260) target = $region44
        $region43: #{decoder_forward.22} parent=31 // pred_region
          %263 = dma.done %s256, 512
        $region44: #{decoder_forward.22} parent=31 // pred_fallthru
          _
        %s264 = sand.u32 %s45, 1
        %s265 = scalar_lea.sflag [#allocation3], %s264
        %s266 = sand.u32 %s45, 1
        %s267 = smul.addr %s266, 32
        %s268 = scalar_lea.vmem [#allocation2], %s267
        %p269 = pneg %p58
        %p270 = pneg %p55
        %s271 = sand.u32 %s23, 1
        %s272 = scalar_lea.sflag [#allocation6], %s271
        %s273 = sand.u32 %s73, 1
        %s274 = smul.addr %s273, 32
        %s275 = scalar_lea.vmem [#allocation5], %s274
        %p276 = pneg %p86
        %p277 = pneg %p83
        %s278 = sand.u32 %s23, 1
        %s279 = scalar_lea.sflag [#allocation6], %s278
        %s280 = sand.u32 %s101, 1
        %s281 = smul.addr %s280, 32
        %s282 = scalar_lea.vmem [#allocation7], %s281
        %p283 = pneg %p114
        %p284 = pneg %p111
        %p285 = pneg %p142
        %p286 = pneg %p139
        %s287 = sand.u32 %s129, 1
        %s288 = scalar_lea.sflag [#allocation4], %s287
        %s289 = sand.u32 %s129, 1
        %s290 = smul.addr %s289, 32
        %s291 = scalar_lea.vmem [#allocation8], %s290
        %s292 = smul.u32 4, %s28
        %s293 = smul.u32 4, %s28
        %s294 = smul.u32 4, %s28
        %s295 = smul.u32 4, %s28
        %v297 = vld [vmem:[%s241] sm:$0xff]
        %v298 = vld [vmem:[%s241 + $0x8] sm:$0xff]
        %v299 = vld [vmem:[%s241 + $0x10] sm:$0xff]
        %v300 = vld [vmem:[%s241 + $0x18] sm:$0xff]
        %v301 = vmul.f32 %v297, 0.35355338
        %v302 = vmul.f32 %v298, 0.35355338
        %v303 = vmul.f32 %v299, 0.35355338
        %v304 = vmul.f32 %v300, 0.35355338
        %v305 = vld [vmem:[%s250] sm:$0xff]
        %v306 = vld [vmem:[%s250 + $0x8] sm:$0xff]
        %v307 = vld [vmem:[%s250 + $0x10] sm:$0xff]
        %v308 = vld [vmem:[%s250 + $0x18] sm:$0xff]
        %v309 = vld [vmem:[%s259] sm:$0xff]
        %v310 = vld [vmem:[%s259 + $0x8] sm:$0xff]
        %v311 = vld [vmem:[%s259 + $0x10] sm:$0xff]
        %v312 = vld [vmem:[%s259 + $0x18] sm:$0xff]
        %v313 = vpack.c.bf16 %v301, %v301
        %v314 = vpack.c.bf16 %v302, %v302
        %v315 = vpack.c.bf16 %v303, %v303
        %v316 = vpack.c.bf16 %v304, %v304
        %v317 = vpack.c.bf16 %v305, %v305
        %v318 = vpack.c.bf16 %v306, %v306
        %v319 = vpack.c.bf16 %v307, %v307
        %v320 = vpack.c.bf16 %v308, %v308
        %vm321 = vcmask 64512
        %v323 = vsel %vm321, %v313, 0
        %v326 = vsel %vm321, %v317, 0
        %328 = vmatprep.subr.bf16.mxu0 0
        %329 = vmatpush1.bf16.xpose.msra.mxu0 %v326
        %330 = vmatprep.subr.bf16.mxu0 0
        %331 = vmatpush1.bf16.xpose.msra.mxu0 0
        %332 = vmatprep.subr.bf16.mxu0 0
        %333 = vmatpush1.bf16.xpose.msra.mxu0 0
        %334 = vmatprep.subr.bf16.mxu0 0
        %335 = vmatpush1.bf16.xpose.msra.mxu0 0
        %336 = vmatprep.subr.bf16.mxu0 0
        %337 = vmatpush1.bf16.xpose.msra.mxu0 0
        %338 = vmatprep.subr.bf16.mxu0 0
        %339 = vmatpush1.bf16.xpose.msra.mxu0 0
        %340 = vmatprep.subr.bf16.mxu0 0
        %341 = vmatpush1.bf16.xpose.msra.mxu0 0
        %342 = vmatprep.subr.bf16.mxu0 0
        %343 = vmatpush1.bf16.xpose.msra.mxu0 0
        %344 = vmatprep.subr.bf16.mxu0 0
        %345 = vmatpush1.bf16.xpose.msra.mxu0 0
        %346 = vmatprep.subr.bf16.mxu0 0
        %347 = vmatpush1.bf16.xpose.msra.mxu0 0
        %348 = vmatprep.subr.bf16.mxu0 0
        %349 = vmatpush1.bf16.xpose.msra.mxu0 0
        %350 = vmatprep.subr.bf16.mxu0 0
        %351 = vmatpush1.bf16.xpose.msra.mxu0 0
        %352 = vmatprep.subr.bf16.mxu0 0
        %353 = vmatpush1.bf16.xpose.msra.mxu0 0
        %354 = vmatprep.subr.bf16.mxu0 0
        %355 = vmatpush1.bf16.xpose.msra.mxu0 0
        %356 = vmatprep.subr.bf16.mxu0 0
        %357 = vmatpush1.bf16.xpose.msra.mxu0 0
        %358 = vmatprep.subr.bf16.mxu0 0
        %359 = vmatpush1.bf16.xpose.msra.mxu0 0
        %360 = vmatprep.mubr.bf16.mxu0 0
        %361 = vmatmul.mubr.bf16.gmra.mrb[0].mxu0 %v323
        %v362 = vpop.f32.mrb[0].mxu0
        %v363 = vadd.f32 0.0, %v362
        %v364 = vpop.f32.mrb[0].mxu0
        %v365 = vpop.f32.mrb[0].mxu0
        %v366 = vpop.f32.mrb[0].mxu0
        %367 = vdwg.mxu0
        %v369 = vsel %vm321, %v314, 0
        %v372 = vsel %vm321, %v318, 0
        %374 = vmatprep.subr.bf16.mxu0 0
        %375 = vmatpush1.bf16.xpose.msra.mxu0 %v372
        %376 = vmatprep.subr.bf16.mxu0 0
        %377 = vmatpush1.bf16.xpose.msra.mxu0 0
        %378 = vmatprep.subr.bf16.mxu0 0
        %379 = vmatpush1.bf16.xpose.msra.mxu0 0
        %380 = vmatprep.subr.bf16.mxu0 0
        %381 = vmatpush1.bf16.xpose.msra.mxu0 0
        %382 = vmatprep.subr.bf16.mxu0 0
        %383 = vmatpush1.bf16.xpose.msra.mxu0 0
        %384 = vmatprep.subr.bf16.mxu0 0
        %385 = vmatpush1.bf16.xpose.msra.mxu0 0
        %386 = vmatprep.subr.bf16.mxu0 0
        %387 = vmatpush1.bf16.xpose.msra.mxu0 0
        %388 = vmatprep.subr.bf16.mxu0 0
        %389 = vmatpush1.bf16.xpose.msra.mxu0 0
        %390 = vmatprep.subr.bf16.mxu0 0
        %391 = vmatpush1.bf16.xpose.msra.mxu0 0
        %392 = vmatprep.subr.bf16.mxu0 0
        %393 = vmatpush1.bf16.xpose.msra.mxu0 0
        %394 = vmatprep.subr.bf16.mxu0 0
        %395 = vmatpush1.bf16.xpose.msra.mxu0 0
        %396 = vmatprep.subr.bf16.mxu0 0
        %397 = vmatpush1.bf16.xpose.msra.mxu0 0
        %398 = vmatprep.subr.bf16.mxu0 0
        %399 = vmatpush1.bf16.xpose.msra.mxu0 0
        %400 = vmatprep.subr.bf16.mxu0 0
        %401 = vmatpush1.bf16.xpose.msra.mxu0 0
        %402 = vmatprep.subr.bf16.mxu0 0
        %403 = vmatpush1.bf16.xpose.msra.mxu0 0
        %404 = vmatprep.subr.bf16.mxu0 0
        %405 = vmatpush1.bf16.xpose.msra.mxu0 0
        %406 = vmatprep.mubr.bf16.mxu0 0
        %407 = vmatmul.mubr.bf16.gmra.mrb[0].mxu0 %v369
        %v408 = vpop.f32.mrb[0].mxu0
        %v409 = vadd.f32 0.0, %v408
        %v410 = vpop.f32.mrb[0].mxu0
        %v411 = vpop.f32.mrb[0].mxu0
        %v412 = vpop.f32.mrb[0].mxu0
        %413 = vdwg.mxu0
        %v415 = vsel %vm321, %v315, 0
        %v418 = vsel %vm321, %v319, 0
        %420 = vmatprep.subr.bf16.mxu0 0
        %421 = vmatpush1.bf16.xpose.msra.mxu0 %v418
        %422 = vmatprep.subr.bf16.mxu0 0
        %423 = vmatpush1.bf16.xpose.msra.mxu0 0
        %424 = vmatprep.subr.bf16.mxu0 0
        %425 = vmatpush1.bf16.xpose.msra.mxu0 0
        %426 = vmatprep.subr.bf16.mxu0 0
        %427 = vmatpush1.bf16.xpose.msra.mxu0 0
        %428 = vmatprep.subr.bf16.mxu0 0
        %429 = vmatpush1.bf16.xpose.msra.mxu0 0
        %430 = vmatprep.subr.bf16.mxu0 0
        %431 = vmatpush1.bf16.xpose.msra.mxu0 0
        %432 = vmatprep.subr.bf16.mxu0 0
        %433 = vmatpush1.bf16.xpose.msra.mxu0 0
        %434 = vmatprep.subr.bf16.mxu0 0
        %435 = vmatpush1.bf16.xpose.msra.mxu0 0
        %436 = vmatprep.subr.bf16.mxu0 0
        %437 = vmatpush1.bf16.xpose.msra.mxu0 0
        %438 = vmatprep.subr.bf16.mxu0 0
        %439 = vmatpush1.bf16.xpose.msra.mxu0 0
        %440 = vmatprep.subr.bf16.mxu0 0
        %441 = vmatpush1.bf16.xpose.msra.mxu0 0
        %442 = vmatprep.subr.bf16.mxu0 0
        %443 = vmatpush1.bf16.xpose.msra.mxu0 0
        %444 = vmatprep.subr.bf16.mxu0 0
        %445 = vmatpush1.bf16.xpose.msra.mxu0 0
        %446 = vmatprep.subr.bf16.mxu0 0
        %447 = vmatpush1.bf16.xpose.msra.mxu0 0
        %448 = vmatprep.subr.bf16.mxu0 0
        %449 = vmatpush1.bf16.xpose.msra.mxu0 0
        %450 = vmatprep.subr.bf16.mxu0 0
        %451 = vmatpush1.bf16.xpose.msra.mxu0 0
        %452 = vmatprep.mubr.bf16.mxu0 0
        %453 = vmatmul.mubr.bf16.gmra.mrb[0].mxu0 %v415
        %v454 = vpop.f32.mrb[0].mxu0
        %v455 = vadd.f32 0.0, %v454
        %v456 = vpop.f32.mrb[0].mxu0
        %v457 = vpop.f32.mrb[0].mxu0
        %v458 = vpop.f32.mrb[0].mxu0
        %459 = vdwg.mxu0
        %v461 = vsel %vm321, %v316, 0
        %v464 = vsel %vm321, %v320, 0
        %466 = vmatprep.subr.bf16.mxu0 0
        %467 = vmatpush1.bf16.xpose.msra.mxu0 %v464
        %468 = vmatprep.subr.bf16.mxu0 0
        %469 = vmatpush1.bf16.xpose.msra.mxu0 0
        %470 = vmatprep.subr.bf16.mxu0 0
        %471 = vmatpush1.bf16.xpose.msra.mxu0 0
        %472 = vmatprep.subr.bf16.mxu0 0
        %473 = vmatpush1.bf16.xpose.msra.mxu0 0
        %474 = vmatprep.subr.bf16.mxu0 0
        %475 = vmatpush1.bf16.xpose.msra.mxu0 0
        %476 = vmatprep.subr.bf16.mxu0 0
        %477 = vmatpush1.bf16.xpose.msra.mxu0 0
        %478 = vmatprep.subr.bf16.mxu0 0
        %479 = vmatpush1.bf16.xpose.msra.mxu0 0
        %480 = vmatprep.subr.bf16.mxu0 0
        %481 = vmatpush1.bf16.xpose.msra.mxu0 0
        %482 = vmatprep.subr.bf16.mxu0 0
        %483 = vmatpush1.bf16.xpose.msra.mxu0 0
        %484 = vmatprep.subr.bf16.mxu0 0
        %485 = vmatpush1.bf16.xpose.msra.mxu0 0
        %486 = vmatprep.subr.bf16.mxu0 0
        %487 = vmatpush1.bf16.xpose.msra.mxu0 0
        %488 = vmatprep.subr.bf16.mxu0 0
        %489 = vmatpush1.bf16.xpose.msra.mxu0 0
        %490 = vmatprep.subr.bf16.mxu0 0
        %491 = vmatpush1.bf16.xpose.msra.mxu0 0
        %492 = vmatprep.subr.bf16.mxu0 0
        %493 = vmatpush1.bf16.xpose.msra.mxu0 0
        %494 = vmatprep.subr.bf16.mxu0 0
        %495 = vmatpush1.bf16.xpose.msra.mxu0 0
        %496 = vmatprep.subr.bf16.mxu0 0
        %497 = vmatpush1.bf16.xpose.msra.mxu0 0
        %498 = vmatprep.mubr.bf16.mxu0 0
        %499 = vmatmul.mubr.bf16.gmra.mrb[0].mxu0 %v461
        %v500 = vpop.f32.mrb[0].mxu0
        %v501 = vadd.f32 0.0, %v500
        %v502 = vpop.f32.mrb[0].mxu0
        %v503 = vpop.f32.mrb[0].mxu0
        %v504 = vpop.f32.mrb[0].mxu0
        %505 = vdwg.mxu0
        %v506 = vsel %vm321, %v363, -inf
        %507 = vmax.xlane.f32.xlu0 %v506
        %v508 = vpop.xlane.xlu0 %507
        %v509 = vsel %vm321, %v409, -inf
        %510 = vmax.xlane.f32.xlu0 %v509
        %v511 = vpop.xlane.xlu0 %510
        %v512 = vsel %vm321, %v455, -inf
        %513 = vmax.xlane.f32.xlu0 %v512
        %v514 = vpop.xlane.xlu0 %513
        %v515 = vsel %vm321, %v501, -inf
        %516 = vmax.xlane.f32.xlu0 %v515
        %v517 = vpop.xlane.xlu0 %516
        %v518 = vsub.f32 %v363, %v508
        %v519 = vsub.f32 %v409, %v511
        %v520 = vsub.f32 %v455, %v514
        %v521 = vsub.f32 %v501, %v517
        %v522 = vmul.f32 %v518, 1.442695
        %v523 = vpow.pop %v522
        %v524 = vmul.f32 %v519, 1.442695
        %v525 = vpow.pop %v524
        %v526 = vmul.f32 %v520, 1.442695
        %v527 = vpow.pop %v526
        %v528 = vmul.f32 %v521, 1.442695
        %v529 = vpow.pop %v528
        %v530 = vsel %vm321, %v523, 0.0
        %531 = vadd.xlane.f32.xlu0 %v530
        %v532 = vpop.xlane.xlu0 %531
        %v533 = vsel %vm321, %v525, 0.0
        %534 = vadd.xlane.f32.xlu0 %v533
        %v535 = vpop.xlane.xlu0 %534
        %v536 = vsel %vm321, %v527, 0.0
        %537 = vadd.xlane.f32.xlu0 %v536
        %v538 = vpop.xlane.xlu0 %537
        %v539 = vsel %vm321, %v529, 0.0
        %540 = vadd.xlane.f32.xlu0 %v539
        %v541 = vpop.xlane.xlu0 %540
        %v542 = vrcp.pop %v532
        %v543 = vrcp.pop %v535
        %v544 = vrcp.pop %v538
        %v545 = vrcp.pop %v541
        %v546 = vmul.f32 %v523, %v542
        %v547 = vmul.f32 %v525, %v543
        %v548 = vmul.f32 %v527, %v544
        %v549 = vmul.f32 %v529, %v545
        %v550 = vpack.c.bf16 %v546, %v546
        %v551 = vpack.c.bf16 %v547, %v547
        %v552 = vpack.c.bf16 %v548, %v548
        %v553 = vpack.c.bf16 %v549, %v549
        %v554 = vpack.c.bf16 %v309, %v309
        %v555 = vpack.c.bf16 %v310, %v310
        %v556 = vpack.c.bf16 %v311, %v311
        %v557 = vpack.c.bf16 %v312, %v312
        %v559 = vsel %vm321, %v550, 0
        %vm561 = vcmask 1043456
        %v563 = vsel %vm561, %v554, 0
        %565 = vmatprep.subr.bf16.mxu0 0
        %566 = vmatpush1.bf16.msra.mxu0 %v563
        %567 = vmatprep.subr.bf16.mxu0 0
        %568 = vmatpush1.bf16.msra.mxu0 0
        %569 = vmatprep.subr.bf16.mxu0 0
        %570 = vmatpush1.bf16.msra.mxu0 0
        %571 = vmatprep.subr.bf16.mxu0 0
        %572 = vmatpush1.bf16.msra.mxu0 0
        %573 = vmatprep.subr.bf16.mxu0 0
        %574 = vmatpush1.bf16.msra.mxu0 0
        %575 = vmatprep.subr.bf16.mxu0 0
        %576 = vmatpush1.bf16.msra.mxu0 0
        %577 = vmatprep.subr.bf16.mxu0 0
        %578 = vmatpush1.bf16.msra.mxu0 0
        %579 = vmatprep.subr.bf16.mxu0 0
        %580 = vmatpush1.bf16.msra.mxu0 0
        %581 = vmatprep.subr.bf16.mxu0 0
        %582 = vmatpush1.bf16.msra.mxu0 0
        %583 = vmatprep.subr.bf16.mxu0 0
        %584 = vmatpush1.bf16.msra.mxu0 0
        %585 = vmatprep.subr.bf16.mxu0 0
        %586 = vmatpush1.bf16.msra.mxu0 0
        %587 = vmatprep.subr.bf16.mxu0 0
        %588 = vmatpush1.bf16.msra.mxu0 0
        %589 = vmatprep.subr.bf16.mxu0 0
        %590 = vmatpush1.bf16.msra.mxu0 0
        %591 = vmatprep.subr.bf16.mxu0 0
        %592 = vmatpush1.bf16.msra.mxu0 0
        %593 = vmatprep.subr.bf16.mxu0 0
        %594 = vmatpush1.bf16.msra.mxu0 0
        %595 = vmatprep.subr.bf16.mxu0 0
        %596 = vmatpush1.bf16.msra.mxu0 0
        %597 = vmatprep.mubr.bf16.mxu0 0
        %598 = vmatmul.mubr.bf16.gmra.mrb[0].mxu0 %v559
        %v599 = vpop.f32.mrb[0].mxu0
        %v600 = vadd.f32 0.0, %v599
        %v601 = vpop.f32.mrb[0].mxu0
        %v602 = vpop.f32.mrb[0].mxu0
        %v603 = vpop.f32.mrb[0].mxu0
        %604 = vdwg.mxu0
        %v606 = vsel %vm321, %v551, 0
        %v609 = vsel %vm561, %v555, 0
        %611 = vmatprep.subr.bf16.mxu0 0
        %612 = vmatpush1.bf16.msra.mxu0 %v609
        %613 = vmatprep.subr.bf16.mxu0 0
        %614 = vmatpush1.bf16.msra.mxu0 0
        %615 = vmatprep.subr.bf16.mxu0 0
        %616 = vmatpush1.bf16.msra.mxu0 0
        %617 = vmatprep.subr.bf16.mxu0 0
        %618 = vmatpush1.bf16.msra.mxu0 0
        %619 = vmatprep.subr.bf16.mxu0 0
        %620 = vmatpush1.bf16.msra.mxu0 0
        %621 = vmatprep.subr.bf16.mxu0 0
        %622 = vmatpush1.bf16.msra.mxu0 0
        %623 = vmatprep.subr.bf16.mxu0 0
        %624 = vmatpush1.bf16.msra.mxu0 0
        %625 = vmatprep.subr.bf16.mxu0 0
        %626 = vmatpush1.bf16.msra.mxu0 0
        %627 = vmatprep.subr.bf16.mxu0 0
        %628 = vmatpush1.bf16.msra.mxu0 0
        %629 = vmatprep.subr.bf16.mxu0 0
        %630 = vmatpush1.bf16.msra.mxu0 0
        %631 = vmatprep.subr.bf16.mxu0 0
        %632 = vmatpush1.bf16.msra.mxu0 0
        %633 = vmatprep.subr.bf16.mxu0 0
        %634 = vmatpush1.bf16.msra.mxu0 0
        %635 = vmatprep.subr.bf16.mxu0 0
        %636 = vmatpush1.bf16.msra.mxu0 0
        %637 = vmatprep.subr.bf16.mxu0 0
        %638 = vmatpush1.bf16.msra.mxu0 0
        %639 = vmatprep.subr.bf16.mxu0 0
        %640 = vmatpush1.bf16.msra.mxu0 0
        %641 = vmatprep.subr.bf16.mxu0 0
        %642 = vmatpush1.bf16.msra.mxu0 0
        %643 = vmatprep.mubr.bf16.mxu0 0
        %644 = vmatmul.mubr.bf16.gmra.mrb[0].mxu0 %v606
        %v645 = vpop.f32.mrb[0].mxu0
        %v646 = vadd.f32 0.0, %v645
        %v647 = vpop.f32.mrb[0].mxu0
        %v648 = vpop.f32.mrb[0].mxu0
        %v649 = vpop.f32.mrb[0].mxu0
        %650 = vdwg.mxu0
        %v652 = vsel %vm321, %v552, 0
        %v655 = vsel %vm561, %v556, 0
        %657 = vmatprep.subr.bf16.mxu0 0
        %658 = vmatpush1.bf16.msra.mxu0 %v655
        %659 = vmatprep.subr.bf16.mxu0 0
        %660 = vmatpush1.bf16.msra.mxu0 0
        %661 = vmatprep.subr.bf16.mxu0 0
        %662 = vmatpush1.bf16.msra.mxu0 0
        %663 = vmatprep.subr.bf16.mxu0 0
        %664 = vmatpush1.bf16.msra.mxu0 0
        %665 = vmatprep.subr.bf16.mxu0 0
        %666 = vmatpush1.bf16.msra.mxu0 0
        %667 = vmatprep.subr.bf16.mxu0 0
        %668 = vmatpush1.bf16.msra.mxu0 0
        %669 = vmatprep.subr.bf16.mxu0 0
        %670 = vmatpush1.bf16.msra.mxu0 0
        %671 = vmatprep.subr.bf16.mxu0 0
        %672 = vmatpush1.bf16.msra.mxu0 0
        %673 = vmatprep.subr.bf16.mxu0 0
        %674 = vmatpush1.bf16.msra.mxu0 0
        %675 = vmatprep.subr.bf16.mxu0 0
        %676 = vmatpush1.bf16.msra.mxu0 0
        %677 = vmatprep.subr.bf16.mxu0 0
        %678 = vmatpush1.bf16.msra.mxu0 0
        %679 = vmatprep.subr.bf16.mxu0 0
        %680 = vmatpush1.bf16.msra.mxu0 0
        %681 = vmatprep.subr.bf16.mxu0 0
        %682 = vmatpush1.bf16.msra.mxu0 0
        %683 = vmatprep.subr.bf16.mxu0 0
        %684 = vmatpush1.bf16.msra.mxu0 0
        %685 = vmatprep.subr.bf16.mxu0 0
        %686 = vmatpush1.bf16.msra.mxu0 0
        %687 = vmatprep.subr.bf16.mxu0 0
        %688 = vmatpush1.bf16.msra.mxu0 0
        %689 = vmatprep.mubr.bf16.mxu0 0
        %690 = vmatmul.mubr.bf16.gmra.mrb[0].mxu0 %v652
        %v691 = vpop.f32.mrb[0].mxu0
        %v692 = vadd.f32 0.0, %v691
        %v693 = vpop.f32.mrb[0].mxu0
        %v694 = vpop.f32.mrb[0].mxu0
        %v695 = vpop.f32.mrb[0].mxu0
        %696 = vdwg.mxu0
        %v698 = vsel %vm321, %v553, 0
        %v701 = vsel %vm561, %v557, 0
        %703 = vmatprep.subr.bf16.mxu0 0
        %704 = vmatpush1.bf16.msra.mxu0 %v701
        %705 = vmatprep.subr.bf16.mxu0 0
        %706 = vmatpush1.bf16.msra.mxu0 0
        %707 = vmatprep.subr.bf16.mxu0 0
        %708 = vmatpush1.bf16.msra.mxu0 0
        %709 = vmatprep.subr.bf16.mxu0 0
        %710 = vmatpush1.bf16.msra.mxu0 0
        %711 = vmatprep.subr.bf16.mxu0 0
        %712 = vmatpush1.bf16.msra.mxu0 0
        %713 = vmatprep.subr.bf16.mxu0 0
        %714 = vmatpush1.bf16.msra.mxu0 0
        %715 = vmatprep.subr.bf16.mxu0 0
        %716 = vmatpush1.bf16.msra.mxu0 0
        %717 = vmatprep.subr.bf16.mxu0 0
        %718 = vmatpush1.bf16.msra.mxu0 0
        %719 = vmatprep.subr.bf16.mxu0 0
        %720 = vmatpush1.bf16.msra.mxu0 0
        %721 = vmatprep.subr.bf16.mxu0 0
        %722 = vmatpush1.bf16.msra.mxu0 0
        %723 = vmatprep.subr.bf16.mxu0 0
        %724 = vmatpush1.bf16.msra.mxu0 0
        %725 = vmatprep.subr.bf16.mxu0 0
        %726 = vmatpush1.bf16.msra.mxu0 0
        %727 = vmatprep.subr.bf16.mxu0 0
        %728 = vmatpush1.bf16.msra.mxu0 0
        %729 = vmatprep.subr.bf16.mxu0 0
        %730 = vmatpush1.bf16.msra.mxu0 0
        %731 = vmatprep.subr.bf16.mxu0 0
        %732 = vmatpush1.bf16.msra.mxu0 0
        %733 = vmatprep.subr.bf16.mxu0 0
        %734 = vmatpush1.bf16.msra.mxu0 0
        %735 = vmatprep.mubr.bf16.mxu0 0
        %736 = vmatmul.mubr.bf16.gmra.mrb[0].mxu0 %v698
        %v737 = vpop.f32.mrb[0].mxu0
        %v738 = vadd.f32 0.0, %v737
        %v739 = vpop.f32.mrb[0].mxu0
        %v740 = vpop.f32.mrb[0].mxu0
        %v741 = vpop.f32.mrb[0].mxu0
        %742 = vdwg.mxu0
        %743 = vst.msk [vmem:[%s291] sm:$0xff] %vm321, %v600
        %744 = vst.msk [vmem:[%s291 + $0x8] sm:$0xff] %vm321, %v646
        %745 = vst.msk [vmem:[%s291 + $0x10] sm:$0xff] %vm321, %v692
        %746 = vst.msk [vmem:[%s291 + $0x18] sm:$0xff] %vm321, %v738
        %s747 = sand.u32 %s129, 1
        %s748 = scalar_lea.sflag [#allocation4], %s747
        %s749 = sand.u32 %s129, 1
        %s750 = smul.addr %s749, 32
        %s751 = scalar_lea.vmem [#allocation8], %s750
        // Predicated region
        $region45: #{decoder_forward.22} parent=31 // pred_check
          %p752 = pneg %p139
        $region46: #{decoder_forward.22} parent=31 // pred_check_branch
          %754 = sbr.rel (%p752) target = $region48
        $region47: #{decoder_forward.22} parent=31 // pred_region
          %s755 = smul.u32 4, %s28
          %s757 = ssub.s32 512, 512
          %758 = vsyncadd %s748, %s757
          %s759 = smul.addr %s27, 4
          %s760 = sadd.s32 %s755, %s759
          %s761 = smul.addr %s760, 128
          %s762 = scalar_lea.hbm %s3, %s761
          %s763 = sshll.u32 %s751, 4
          %s764 = int_to_ptr.vmem [resolvable:$true] %s763
          %769 = dma.vmem_to_hbm [thread:$0]  %s764, 512, %s762, %s748, 128, 128, 8
        $region48: #{decoder_forward.22} parent=31 // pred_fallthru
          _
      $region32: #{decoder_forward.22} parent=5 // pred_fallthru
        _
      %p770 = scmp.le.s32.totalorder 2, %s18
      // Predicated region
      $region49: #{decoder_forward.22} parent=5 // pred_check
        %p771 = pneg %p770
      $region50: #{decoder_forward.22} parent=5 // pred_check_branch
        %773 = sbr.rel (%p771) target = $region52
      $region51: #{decoder_forward.22} parent=5 // pred_region
        %s774 = ssub.s32 %s18, 2
        // Predicated region
        $region53: #{decoder_forward.22} parent=51 // pred_check
          %p775 = pneg %p145
        $region54: #{decoder_forward.22} parent=51 // pred_check_branch
          %777 = sbr.rel (%p775) target = $region56
        $region55: #{decoder_forward.22} parent=51 // pred_region
          %s778 = sand.u32 %s130, 1
          %s779 = scalar_lea.sflag [#allocation4], %s778
          %s780 = sand.u32 %s130, 1
          %s781 = smul.addr %s780, 32
          %s782 = scalar_lea.vmem [#allocation8], %s781
          %783 = dma.done %s779, 512
        $region56: #{decoder_forward.22} parent=51 // pred_fallthru
          _
      $region52: #{decoder_forward.22} parent=5 // pred_fallthru
        _
    $region6: #{decoder_forward.22} parent=1 // loop_footer
      %s22 = sadd.s32 1, %s18
    $region7: #{decoder_forward.22} parent=1 // loop_footer_branch
      %17 = sbr.rel target = $region3
    $region8: #{decoder_forward.22} parent=1 // loop_exit
      _
    %784 = vsyncpa [#allocation3], 1
    %s785 = scalar_lea.sflag [#allocation3], 1
    %786 = vsyncpa %s785, 1
    %787 = vsyncpa [#allocation6], 1
    %s788 = scalar_lea.sflag [#allocation6], 1
    %789 = vsyncpa %s788, 1
    %790 = vsyncpa [#allocation4], 1
    %s791 = scalar_lea.sflag [#allocation4], 1
    %792 = vsyncpa %s791, 1

// kernel: decoder_forward.24
$region0: #{decoder_forward.24}
  #allocation0 [shape = 'u32[]', space=smem, size = 0x4, offset = 0x4, fixed_abs, tag = 'smem constant byte address 0x4 - core index']
  #allocation1 [shape = 'u32[144,128]{1,0:T(1,128)}', space=vmem, size = 0x12000, scoped, tag = 'internal scratch']
  %s0 = inlined_call_operand.hbm [shape: f32[16,32], index: 0, kind: input, shape index: {}]
  %s1 = inlined_call_operand.hbm [shape: f32[1,32], index: 1, kind: input, shape index: {}]
  %s2 = inlined_call_operand.hbm [shape: f32[1,32], index: 2, kind: input, shape index: {}]
  %s3 = inlined_call_operand.hbm [shape: bf16[32,128], index: 3, kind: input, shape index: {}]
  %s4 = inlined_call_operand.hbm [shape: f32[1,128], index: 4, kind: input, shape index: {}]
  %s5 = inlined_call_operand.hbm [shape: bf16[128,32], index: 5, kind: input, shape index: {}]
  %s6 = inlined_call_operand.hbm [shape: f32[1,32], index: 6, kind: input, shape index: {}]
  %s7 = inlined_call_operand.hbm [shape: f32[16,32], index: 7, kind: output, shape index: {}]
  %s8 = sld [smem:[#allocation0]]
  $region66: #{decoder_forward.24} parent=0
    _
  %s10 = ssub.s32 1, %s8
  %s11 = scalar_select 0, %s10, %s8
  $region1: #{decoder_forward.24} parent=0
    #allocation2 [shape = 'u8[8192]{0}', space=vmem, size = 0x2000, scoped, tag = 'input window, operand 0, single buffered']
    #allocation3 [shape = 's32[1]{0}', space=sflag, size = 0x4, scoped, tag = 'scoped memory for decoder_forward.24']
    #allocation4 [shape = 's32[1]{0}', space=sflag, size = 0x4, scoped, tag = 'scoped memory for decoder_forward.24']
    #allocation5 [shape = 'u8[512]{0}', space=vmem, size = 0x400, scoped, tag = 'input window, operand 1, single buffered']
    #allocation6 [shape = 's32[1]{0}', space=sflag, size = 0x4, scoped, tag = 'scoped memory for decoder_forward.24']
    #allocation7 [shape = 'u8[512]{0}', space=vmem, size = 0x400, scoped, tag = 'input window, operand 2, single buffered']
    #allocation8 [shape = 'u8[8192]{0}', space=vmem, size = 0x2000, scoped, tag = 'input window, operand 3, single buffered']
    #allocation9 [shape = 's32[1]{0}', space=sflag, size = 0x4, scoped, tag = 'scoped memory for decoder_forward.24']
    #allocation10 [shape = 'u8[512]{0}', space=vmem, size = 0x400, scoped, tag = 'input window, operand 4, single buffered']
    #allocation11 [shape = 'u8[32768]{0}', space=vmem, size = 0x8000, scoped, tag = 'input window, operand 5, single buffered']
    #allocation12 [shape = 's32[1]{0}', space=sflag, size = 0x4, scoped, tag = 'scoped memory for decoder_forward.24']
    #allocation13 [shape = 'u8[512]{0}', space=vmem, size = 0x400, scoped, tag = 'input window, operand 6, single buffered']
    #allocation14 [shape = 'u8[8192]{0}', space=vmem, size = 0x2000, scoped, tag = 'output window, operand 0, single buffered']
    %12 = vsyncpa [#allocation3], 0
    %13 = vsyncpa [#allocation6], 0
    %14 = vsyncpa [#allocation9], 0
    %15 = vsyncpa [#allocation12], 0
    %16 = vsyncpa [#allocation4], 0
    // Predicated region
    $region2: #{decoder_forward.24} parent=1 // pred_check
      _
    $region3: #{decoder_forward.24} parent=1 // pred_check_branch
      %18 = sbr.rel (0) target = $region5
    $region4: #{decoder_forward.24} parent=1 // pred_region
      %s20 = ssub.s32 256, 256
      %21 = vsyncadd [#allocation3], %s20
      %s22 = sshll.u32 [#allocation2], 4
      %s23 = int_to_ptr.vmem [resolvable:$true] %s22
      %28 = dma.hbm_to_vmem [thread:$0]  %s0, 256, %s23, [#allocation3], 128, 128, 8
    $region5: #{decoder_forward.24} parent=1 // pred_fallthru
      _
    // Predicated region
    $region6: #{decoder_forward.24} parent=1 // pred_check
      _
    $region7: #{decoder_forward.24} parent=1 // pred_check_branch
      %30 = sbr.rel (0) target = $region9
    $region8: #{decoder_forward.24} parent=1 // pred_region
      %s32 = ssub.s32 16, 16
      %33 = vsyncadd [#allocation6], %s32
      %s35 = sshll.u32 [#allocation5], 4
      %s36 = int_to_ptr.vmem [resolvable:$true] %s35
      %38 = dma.hbm_to_vmem [thread:$0]  %s1, 16, %s36, [#allocation6]
    $region9: #{decoder_forward.24} parent=1 // pred_fallthru
      _
    // Predicated region
    $region10: #{decoder_forward.24} parent=1 // pred_check
      _
    $region11: #{decoder_forward.24} parent=1 // pred_check_branch
      %40 = sbr.rel (0) target = $region13
    $region12: #{decoder_forward.24} parent=1 // pred_region
      %s42 = ssub.s32 16, 16
      %43 = vsyncadd [#allocation6], %s42
      %s45 = sshll.u32 [#allocation7], 4
      %s46 = int_to_ptr.vmem [resolvable:$true] %s45
      %48 = dma.hbm_to_vmem [thread:$0]  %s2, 16, %s46, [#allocation6]
    $region13: #{decoder_forward.24} parent=1 // pred_fallthru
      _
    // Predicated region
    $region14: #{decoder_forward.24} parent=1 // pred_check
      _
    $region15: #{decoder_forward.24} parent=1 // pred_check_branch
      %50 = sbr.rel (0) target = $region17
    $region16: #{decoder_forward.24} parent=1 // pred_region
      %s52 = ssub.s32 256, 256
      %53 = vsyncadd [#allocation9], %s52
      %s54 = sshll.u32 [#allocation8], 4
      %s55 = int_to_ptr.vmem [resolvable:$true] %s54
      %60 = dma.hbm_to_vmem [thread:$0]  %s3, 256, %s55, [#allocation9], 64, 64, 4
    $region17: #{decoder_forward.24} parent=1 // pred_fallthru
      _
    // Predicated region
    $region18: #{decoder_forward.24} parent=1 // pred_check
      _
    $region19: #{decoder_forward.24} parent=1 // pred_check_branch
      %62 = sbr.rel (0) target = $region21
    $region20: #{decoder_forward.24} parent=1 // pred_region
      %s64 = ssub.s32 16, 16
      %65 = vsyncadd [#allocation9], %s64
      %s67 = sshll.u32 [#allocation10], 4
      %s68 = int_to_ptr.vmem [resolvable:$true] %s67
      %70 = dma.hbm_to_vmem [thread:$0]  %s4, 16, %s68, [#allocation9]
    $region21: #{decoder_forward.24} parent=1 // pred_fallthru
      _
    // Predicated region
    $region22: #{decoder_forward.24} parent=1 // pred_check
      _
    $region23: #{decoder_forward.24} parent=1 // pred_check_branch
      %72 = sbr.rel (0) target = $region25
    $region24: #{decoder_forward.24} parent=1 // pred_region
      %s74 = ssub.s32 1024, 1024
      %75 = vsyncadd [#allocation12], %s74
      %s76 = sshll.u32 [#allocation11], 4
      %s77 = int_to_ptr.vmem [resolvable:$true] %s76
      %82 = dma.hbm_to_vmem [thread:$0]  %s5, 1024, %s77, [#allocation12], 64, 64, 4
    $region25: #{decoder_forward.24} parent=1 // pred_fallthru
      _
    // Predicated region
    $region26: #{decoder_forward.24} parent=1 // pred_check
      _
    $region27: #{decoder_forward.24} parent=1 // pred_check_branch
      %84 = sbr.rel (0) target = $region29
    $region28: #{decoder_forward.24} parent=1 // pred_region
      %s86 = ssub.s32 16, 16
      %87 = vsyncadd [#allocation12], %s86
      %s89 = sshll.u32 [#allocation13], 4
      %s90 = int_to_ptr.vmem [resolvable:$true] %s89
      %92 = dma.hbm_to_vmem [thread:$0]  %s6, 16, %s90, [#allocation12]
    $region29: #{decoder_forward.24} parent=1 // pred_fallthru
      _
    // Predicated region
    $region30: #{decoder_forward.24} parent=1 // pred_check
      _
    $region31: #{decoder_forward.24} parent=1 // pred_check_branch
      %94 = sbr.rel (0) target = $region33
    $region32: #{decoder_forward.24} parent=1 // pred_region
      %95 = dma.done [#allocation3], 256
    $region33: #{decoder_forward.24} parent=1 // pred_fallthru
      _
    // Predicated region
    $region34: #{decoder_forward.24} parent=1 // pred_check
      _
    $region35: #{decoder_forward.24} parent=1 // pred_check_branch
      %97 = sbr.rel (0) target = $region37
    $region36: #{decoder_forward.24} parent=1 // pred_region
      %98 = dma.done [#allocation6], 16
    $region37: #{decoder_forward.24} parent=1 // pred_fallthru
      _
    // Predicated region
    $region38: #{decoder_forward.24} parent=1 // pred_check
      _
    $region39: #{decoder_forward.24} parent=1 // pred_check_branch
      %100 = sbr.rel (0) target = $region41
    $region40: #{decoder_forward.24} parent=1 // pred_region
      %101 = dma.done [#allocation6], 16
    $region41: #{decoder_forward.24} parent=1 // pred_fallthru
      _
    // Predicated region
    $region42: #{decoder_forward.24} parent=1 // pred_check
      _
    $region43: #{decoder_forward.24} parent=1 // pred_check_branch
      %103 = sbr.rel (0) target = $region45
    $region44: #{decoder_forward.24} parent=1 // pred_region
      %104 = dma.done [#allocation9], 256
    $region45: #{decoder_forward.24} parent=1 // pred_fallthru
      _
    // Predicated region
    $region46: #{decoder_forward.24} parent=1 // pred_check
      _
    $region47: #{decoder_forward.24} parent=1 // pred_check_branch
      %106 = sbr.rel (0) target = $region49
    $region48: #{decoder_forward.24} parent=1 // pred_region
      %107 = dma.done [#allocation9], 16
    $region49: #{decoder_forward.24} parent=1 // pred_fallthru
      _
    // Predicated region
    $region50: #{decoder_forward.24} parent=1 // pred_check
      _
    $region51: #{decoder_forward.24} parent=1 // pred_check_branch
      %109 = sbr.rel (0) target = $region53
    $region52: #{decoder_forward.24} parent=1 // pred_region
      %110 = dma.done [#allocation12], 1024
    $region53: #{decoder_forward.24} parent=1 // pred_fallthru
      _
    // Predicated region
    $region54: #{decoder_forward.24} parent=1 // pred_check
      _
    $region55: #{decoder_forward.24} parent=1 // pred_check_branch
      %112 = sbr.rel (0) target = $region57
    $region56: #{decoder_forward.24} parent=1 // pred_region
      %113 = dma.done [#allocation12], 16
    $region57: #{decoder_forward.24} parent=1 // pred_fallthru
      _
    %v115 = vld [vmem:[#allocation2] sm:$0xff]
    %v116 = vld [vmem:[#allocation2 + $0x8] sm:$0xff]
    %vm117 = vcmask 261120
    %v118 = vsel %vm117, %v115, 0.0
    %119 = vadd.xlane.f32.xlu0 %v118
    %v120 = vpop.xlane.xlu0 %119
    %v121 = vsel %vm117, %v116, 0.0
    %122 = vadd.xlane.f32.xlu0 %v121
    %v123 = vpop.xlane.xlu0 %122
    %v124 = vrcp.pop 32.0
    %v125 = vmul.f32 %v120, %v124
    %v126 = vmul.f32 %v123, %v124
    %v127 = vsub.f32 %v115, %v125
    %v128 = vsub.f32 %v116, %v126
    %v129 = vmul.f32 %v127, %v127
    %v130 = vmul.f32 %v128, %v128
    %v131 = vsel %vm117, %v129, 0.0
    %132 = vadd.xlane.f32.xlu0 %v131
    %v133 = vpop.xlane.xlu0 %132
    %v134 = vsel %vm117, %v130, 0.0
    %135 = vadd.xlane.f32.xlu0 %v134
    %v136 = vpop.xlane.xlu0 %135
    %v137 = vmul.f32 %v133, %v124
    %v138 = vmul.f32 %v136, %v124
    %v139 = vadd.f32 %v137, 1e-05
    %v140 = vadd.f32 %v138, 1e-05
    %v141 = vrsqrt.pop %v139
    %v142 = vrsqrt.pop %v140
    %v143 = vmul.f32 %v127, %v141
    %v144 = vmul.f32 %v128, %v142
    %v145 = vld [vmem:[#allocation5] sm:$0x1]
    %v147 = vlaneseq
    %v148 = vshrl.u32 %v147, 7
    %v149 = vsub.s32 0, %v148
    %v150 = vrot.slane %v145, %v149
    %v152 = vmul.f32 %v143, %v150
    %v153 = vmul.f32 %v144, %v150
    %v154 = vld [vmem:[#allocation7] sm:$0x1]
    %v156 = vlaneseq
    %v157 = vshrl.u32 %v156, 7
    %v158 = vsub.s32 0, %v157
    %v159 = vrot.slane %v154, %v158
    %v161 = vadd.f32 %v152, %v159
    %v162 = vadd.f32 %v153, %v159
    %v163 = vpack.c.bf16 %v162, %v161
    %v164 = vld [vmem:[#allocation8] sm:$0xf]
    %v165 = vld [vmem:[#allocation8 + $0x4] sm:$0xf]
    %v166 = vld [vmem:[#allocation8 + $0x8] sm:$0xf]
    %v167 = vld [vmem:[#allocation8 + $0xc] sm:$0xf]
    %v168 = vld [vmem:[#allocation10] sm:$0x1]
    %v170 = vlaneseq
    %v171 = vshrl.u32 %v170, 7
    %v172 = vsub.s32 0, %v171
    %v173 = vrot.slane %v168, %v172
    %v179 = vunpack.c.l.b16 %v164
    %v180 = vunpack.c.l.b16 %v165
    %v181 = vunpack.c.l.b16 %v166
    %v182 = vunpack.c.l.b16 %v167
    %v183 = vpack.c.b16 %v180, %v179
    %v184 = vpack.c.b16 %v182, %v181
    %v188 = vsel %vm117, %v163, 0
    %190 = vmatprep.subr.bf16.mxu0 0
    %191 = vmatpush1.bf16.msra.mxu0 %v183
    %192 = vmatprep.subr.bf16.mxu0 0
    %193 = vmatpush1.bf16.msra.mxu0 %v184
    %194 = vmatprep.subr.bf16.mxu0 0
    %195 = vmatpush1.bf16.msra.mxu0 0
    %196 = vmatprep.subr.bf16.mxu0 0
    %197 = vmatpush1.bf16.msra.mxu0 0
    %198 = vmatprep.subr.bf16.mxu0 0
    %199 = vmatpush1.bf16.msra.mxu0 0
    %200 = vmatprep.subr.bf16.mxu0 0
    %201 = vmatpush1.bf16.msra.mxu0 0
    %202 = vmatprep.subr.bf16.mxu0 0
    %203 = vmatpush1.bf16.msra.mxu0 0
    %204 = vmatprep.subr.bf16.mxu0 0
    %205 = vmatpush1.bf16.msra.mxu0 0
    %206 = vmatprep.subr.bf16.mxu0 0
    %207 = vmatpush1.bf16.msra.mxu0 0
    %208 = vmatprep.subr.bf16.mxu0 0
    %209 = vmatpush1.bf16.msra.mxu0 0
    %210 = vmatprep.subr.bf16.mxu0 0
    %211 = vmatpush1.bf16.msra.mxu0 0
    %212 = vmatprep.subr.bf16.mxu0 0
    %213 = vmatpush1.bf16.msra.mxu0 0
    %214 = vmatprep.subr.bf16.mxu0 0
    %215 = vmatpush1.bf16.msra.mxu0 0
    %216 = vmatprep.subr.bf16.mxu0 0
    %217 = vmatpush1.bf16.msra.mxu0 0
    %218 = vmatprep.subr.bf16.mxu0 0
    %219 = vmatpush1.bf16.msra.mxu0 0
    %220 = vmatprep.subr.bf16.mxu0 0
    %221 = vmatpush1.bf16.msra.mxu0 0
    %222 = vmatprep.mubr.bf16.mxu0 0
    %223 = vmatmul.mubr.bf16.gmra.mrb[0].mxu0 %v188
    %v224 = vpop.f32.mrb[0].mxu0
    %v225 = vadd.f32 %v173, %v224
    %v226 = vpop.f32.mrb[0].mxu0
    %v227 = vpop.f32.mrb[0].mxu0
    %v228 = vadd.f32 %v173, %v227
    %v229 = vpop.f32.mrb[0].mxu0
    %230 = vdwg.mxu0
    %v231 = vmul.f32 %v225, 0.5
    %v232 = vmul.f32 %v228, 0.5
    %v233 = vmul.f32 %v225, 0.044715
    %v234 = vmul.f32 %v228, 0.044715
    %v235 = vmul.f32 %v233, %v225
    %v236 = vmul.f32 %v234, %v228
    %v237 = vmul.f32 %v235, %v225
    %v238 = vmul.f32 %v236, %v228
    %v239 = vadd.f32 %v225, %v237
    %v240 = vadd.f32 %v228, %v238
    %v241 = vmul.f32 %v239, 0.7978846
    %v242 = vmul.f32 %v240, 0.7978846
    %v243 = vtanh.pop %v241
    %v244 = vtanh.pop %v242
    %v245 = vadd.f32 %v243, 1.0
    %v246 = vadd.f32 %v244, 1.0
    %v247 = vmul.f32 %v231, %v245
    %v248 = vmul.f32 %v232, %v246
    %v249 = vpack.c.bf16 %v248, %v247
    %v250 = vld [vmem:[#allocation11] sm:$0xf]
    %v251 = vld [vmem:[#allocation11 + $0x4] sm:$0xf]
    %v252 = vld [vmem:[#allocation11 + $0x8] sm:$0xf]
    %v253 = vld [vmem:[#allocation11 + $0xc] sm:$0xf]
    %v254 = vld [vmem:[#allocation11 + $0x10] sm:$0xf]
    %v255 = vld [vmem:[#allocation11 + $0x14] sm:$0xf]
    %v256 = vld [vmem:[#allocation11 + $0x18] sm:$0xf]
    %v257 = vld [vmem:[#allocation11 + $0x1c] sm:$0xf]
    %v258 = vld [vmem:[#allocation11 + $0x20] sm:$0xf]
    %v259 = vld [vmem:[#allocation11 + $0x24] sm:$0xf]
    %v260 = vld [vmem:[#allocation11 + $0x28] sm:$0xf]
    %v261 = vld [vmem:[#allocation11 + $0x2c] sm:$0xf]
    %v262 = vld [vmem:[#allocation11 + $0x30] sm:$0xf]
    %v263 = vld [vmem:[#allocation11 + $0x34] sm:$0xf]
    %v264 = vld [vmem:[#allocation11 + $0x38] sm:$0xf]
    %v265 = vld [vmem:[#allocation11 + $0x3c] sm:$0xf]
    %v266 = vld [vmem:[#allocation13] sm:$0x1]
    %v268 = vlaneseq
    %v269 = vshrl.u32 %v268, 7
    %v270 = vsub.s32 0, %v269
    %v271 = vrot.slane %v266, %v270
    %v289 = vunpack.c.l.b16 %v250
    %v290 = vunpack.c.l.b16 %v251
    %v291 = vunpack.c.l.b16 %v252
    %v292 = vunpack.c.l.b16 %v253
    %v293 = vunpack.c.l.b16 %v254
    %v294 = vunpack.c.l.b16 %v255
    %v295 = vunpack.c.l.b16 %v256
    %v296 = vunpack.c.l.b16 %v257
    %v297 = vunpack.c.l.b16 %v258
    %v298 = vunpack.c.l.b16 %v259
    %v299 = vunpack.c.l.b16 %v260
    %v300 = vunpack.c.l.b16 %v261
    %v301 = vunpack.c.l.b16 %v262
    %v302 = vunpack.c.l.b16 %v263
    %v303 = vunpack.c.l.b16 %v264
    %v304 = vunpack.c.l.b16 %v265
    %v305 = vpack.c.b16 %v290, %v289
    %v306 = vpack.c.b16 %v292, %v291
    %v307 = vpack.c.b16 %v294, %v293
    %v308 = vpack.c.b16 %v296, %v295
    %v309 = vpack.c.b16 %v298, %v297
    %v310 = vpack.c.b16 %v300, %v299
    %v311 = vpack.c.b16 %v302, %v301
    %v312 = vpack.c.b16 %v304, %v303
    %321 = vmatprep.subr.bf16.mxu0 0
    %322 = vmatpush1.bf16.msra.mxu0 %v305
    %323 = vmatprep.subr.bf16.mxu0 0
    %324 = vmatpush1.bf16.msra.mxu0 %v306
    %325 = vmatprep.subr.bf16.mxu0 0
    %326 = vmatpush1.bf16.msra.mxu0 %v307
    %327 = vmatprep.subr.bf16.mxu0 0
    %328 = vmatpush1.bf16.msra.mxu0 %v308
    %329 = vmatprep.subr.bf16.mxu0 0
    %330 = vmatpush1.bf16.msra.mxu0 %v309
    %331 = vmatprep.subr.bf16.mxu0 0
    %332 = vmatpush1.bf16.msra.mxu0 %v310
    %333 = vmatprep.subr.bf16.mxu0 0
    %334 = vmatpush1.bf16.msra.mxu0 %v311
    %335 = vmatprep.subr.bf16.mxu0 0
    %336 = vmatpush1.bf16.msra.mxu0 %v312
    %337 = vmatprep.subr.bf16.mxu0 0
    %338 = vmatpush1.bf16.msra.mxu0 0
    %339 = vmatprep.subr.bf16.mxu0 0
    %340 = vmatpush1.bf16.msra.mxu0 0
    %341 = vmatprep.subr.bf16.mxu0 0
    %342 = vmatpush1.bf16.msra.mxu0 0
    %343 = vmatprep.subr.bf16.mxu0 0
    %344 = vmatpush1.bf16.msra.mxu0 0
    %345 = vmatprep.subr.bf16.mxu0 0
    %346 = vmatpush1.bf16.msra.mxu0 0
    %347 = vmatprep.subr.bf16.mxu0 0
    %348 = vmatpush1.bf16.msra.mxu0 0
    %349 = vmatprep.subr.bf16.mxu0 0
    %350 = vmatpush1.bf16.msra.mxu0 0
    %351 = vmatprep.subr.bf16.mxu0 0
    %352 = vmatpush1.bf16.msra.mxu0 0
    %353 = vmatprep.mubr.bf16.mxu0 0
    %354 = vmatmul.mubr.bf16.gmra.mrb[0].mxu0 %v249
    %v355 = vpop.f32.mrb[0].mxu0
    %v356 = vadd.f32 %v271, %v355
    %v357 = vpop.f32.mrb[0].mxu0
    %v358 = vpop.f32.mrb[0].mxu0
    %v359 = vadd.f32 %v271, %v358
    %v360 = vpop.f32.mrb[0].mxu0
    %361 = vdwg.mxu0
    %v362 = vadd.f32 %v356, %v115
    %v363 = vadd.f32 %v359, %v116
    %364 = vst.msk [vmem:[#allocation14] sm:$0xff] %vm117, %v362
    %365 = vst.msk [vmem:[#allocation14 + $0x8] sm:$0xff] %vm117, %v363
    // Predicated region
    $region58: #{decoder_forward.24} parent=1 // pred_check
      _
    $region59: #{decoder_forward.24} parent=1 // pred_check_branch
      %367 = sbr.rel (0) target = $region61
    $region60: #{decoder_forward.24} parent=1 // pred_region
      %s369 = ssub.s32 256, 256
      %370 = vsyncadd [#allocation4], %s369
      %s371 = sshll.u32 [#allocation14], 4
      %s372 = int_to_ptr.vmem [resolvable:$true] %s371
      %377 = dma.vmem_to_hbm [thread:$0]  %s372, 256, %s7, [#allocation4], 128, 128, 8
    $region61: #{decoder_forward.24} parent=1 // pred_fallthru
      _
    // Predicated region
    $region62: #{decoder_forward.24} parent=1 // pred_check
      _
    $region63: #{decoder_forward.24} parent=1 // pred_check_branch
      %379 = sbr.rel (0) target = $region65
    $region64: #{decoder_forward.24} parent=1 // pred_region
      %380 = dma.done [#allocation4], 256
    $region65: #{decoder_forward.24} parent=1 // pred_fallthru
      _
    %381 = vsyncpa [#allocation3], 1
    %382 = vsyncpa [#allocation6], 1
    %383 = vsyncpa [#allocation9], 1
    %384 = vsyncpa [#allocation12], 1
    %385 = vsyncpa [#allocation4], 1

</llo_original>
